<compile_context>
chip_gen: v7x
topology: tpu7x:2x2x1
jax: 0.10.0
libtpu: 0.0.40
codegen_flags: <defaults>
</compile_context>

<pallas_src>
import functools

import jax
import jax.numpy as jnp
from jax.experimental import pallas as pl
from jax.experimental.pallas import tpu as pltpu


# ----------------------------------------------------------------------------
# Kernel 1: masked pairwise C-alpha distances (ProteinFeatures._dist).
# p = [x, 1, |x|^2], q = [-2x, |x|^2, 1]  =>  p_i . q_j = |x_i - x_j|^2, so one
# MXU dot per (batch, row-tile) yields the squared-distance block directly.
# ----------------------------------------------------------------------------
def _dist_kernel(p_ref, q_ref, mc_ref, mr_ref, d_ref):
    p = p_ref[0]            # (TM, 5) query rows
    q = q_ref[0]            # (N, 5)  all keys
    mc = mc_ref[0]          # (TM, 1) mask of query rows
    mr = mr_ref[0]          # (1, N)  mask of keys
    d2 = jax.lax.dot_general(p, q, (((1,), (1,)), ((), ())),
                             preferred_element_type=jnp.float32)   # (TM, N)
    d2 = jnp.maximum(d2, 0.0)
    m2 = mc * mr                                                   # (TM, N)
    dist = m2 * jnp.sqrt(d2 + 1e-6)
    d_max = jnp.max(dist, axis=-1, keepdims=True)                  # (TM, 1)
    d_ref[0] = dist + (1.0 - m2) * d_max


def _pairwise_dist(ca, mask):
    """ca: (B, N, 3) float32 (pre-centered), mask: (B, N) float32."""
    B, N, _ = ca.shape
    sq = jnp.sum(ca * ca, axis=-1, keepdims=True)                  # (B, N, 1)
    ones = jnp.ones_like(sq)
    p = jnp.concatenate([ca, ones, sq], axis=-1)                   # (B, N, 5)
    q = jnp.concatenate([-2.0 * ca, sq, ones], axis=-1)            # (B, N, 5)
    mask_col = mask[:, :, None]                                    # (B, N, 1)
    mask_row = mask[:, None, :]                                    # (B, 1, N)

    TM = N if N <= 512 else 512   # row tiling keeps the (TM,N) block in v7x VMEM
    return pl.pallas_call(
        _dist_kernel,
        out_shape=jax.ShapeDtypeStruct((B, N, N), jnp.float32),
        grid=(B, pl.cdiv(N, TM)),
        in_specs=[
            pl.BlockSpec((1, TM, 5), lambda b, r: (b, r, 0)),
            pl.BlockSpec((1, N, 5), lambda b, r: (b, 0, 0)),
            pl.BlockSpec((1, TM, 1), lambda b, r: (b, r, 0)),
            pl.BlockSpec((1, 1, N), lambda b, r: (b, 0, 0)),
        ],
        out_specs=pl.BlockSpec((1, TM, N), lambda b, r: (b, r, 0)),
        compiler_params=pltpu.CompilerParams(
            dimension_semantics=("parallel", "parallel"),
            vmem_limit_bytes=48 * 1024 * 1024),
    )(p, q, mask_col, mask_row)


# ----------------------------------------------------------------------------
# Kernel 2: W projection. h_j / h_E stream in as bf16 (R, H) operands and hit
# the MXU (f32 accumulate); the per-node (V@W_i + b) term is hoisted and
# broadcast-added across K; the residue mask and the k==0 eye(20) selector
# (computed in-kernel from an iota) are fused into one multiplier. Single
# lane-dense 512-wide f32 output.
# ----------------------------------------------------------------------------
def _proj_kernel(hj_ref, he_ref, np_ref, wj_ref, we_ref, eye_ref, m_ref, o_ref,
                 *, k):
    tr, odp = o_ref.shape
    acc = jnp.dot(hj_ref[...], wj_ref[...], preferred_element_type=jnp.float32)
    acc = acc + jnp.dot(he_ref[...], we_ref[...],
                        preferred_element_type=jnp.float32)
    # Hoisted node term, one row per node, repeated K times along rows.
    node = np_ref[...]                                          # (TR//K, ODP)
    node_rep = jnp.broadcast_to(node[:, None, :], (tr // k, k, odp))
    node_rep = node_rep.reshape(tr, odp)
    y = acc + node_rep
    # Fused epilogue: central-residue mask * (eye(20) on k==0 rows, 1 elsewhere).
    # TR (and any clamped block start) is a multiple of K, so row % k == k-index.
    row = jax.lax.broadcasted_iota(jnp.int32, (tr, 1), 0)
    k0 = (row % k) == 0
    mult = m_ref[...] * jnp.where(k0, eye_ref[...], 1.0)
    o_ref[...] = y * mult


# ----------------------------------------------------------------------------
# Forward pass of AblatedPairEnergies
# ----------------------------------------------------------------------------
def ablated_pair_energies(params, V_embed, E_embed, X, x_mask, chain_idx,
                          *, k_neighbors):
    del chain_idx  # only affects chain-relative features in the featurizer,
    #                never E_idx, so it does not change this module's output.
    B, N, H = V_embed.shape
    K = k_neighbors
    assert K <= N
    OD = 400        # 20 x 20 Potts pair-energy table
    ODP = 512       # lane-dense padded width
    assert params["b"].shape[0] == OD

    x_mask = x_mask.astype(jnp.float32)
    ca = X[:, :, 1, :].astype(jnp.float32)
    # Center CA per structure (translation-invariant) to tame Gram cancellation.
    denom = jnp.maximum(jnp.sum(x_mask, axis=1, keepdims=True), 1.0)   # (B, 1)
    cen = jnp.sum(ca * x_mask[:, :, None], axis=1, keepdims=True) / denom[:, :, None]
    ca = ca - cen

    # --- kNN edge indices from masked Ca distances (Pallas dist kernel) ---
    d_adjust = _pairwise_dist(ca, x_mask)
    _, E_idx = jax.lax.top_k(-d_adjust, K)              # (B, N, K) int32
    # TODO(synk): top-k selection stays in JAX (no clean Pallas TPU top-k);
    # tie-breaking may differ from torch.topk(largest=False) on degenerate rows.

    # --- neighbor gathers (cast to bf16 BEFORE gathering; h_i needs no gather:
    #     the reference gathers via E_idx[:,:,0], which is the self edge = i) ---
    V_bf = V_embed.astype(jnp.bfloat16)
    E_bf = E_embed.astype(jnp.bfloat16)
    b_ar = jnp.arange(B)[:, None, None]
    E_nb = jnp.take_along_axis(E_bf, E_idx[..., None], axis=2)     # (B,N,K,H)
    h_j = V_bf[b_ar, E_idx]                                        # (B,N,K,H)

    R = B * N * K
    hj = h_j.reshape(R, H)
    he = E_nb.reshape(R, H)

    # --- split / pad W; hoist the node third of the projection (+ bias) ---
    w_t = params["w"].T.astype(jnp.float32)                        # (3H, 400)
    pad = ((0, 0), (0, ODP - OD))
    wi = jnp.pad(w_t[:H], pad).astype(jnp.bfloat16)                # (H, 512)
    wj = jnp.pad(w_t[H:2 * H], pad).astype(jnp.bfloat16)
    we = jnp.pad(w_t[2 * H:], pad).astype(jnp.bfloat16)
    bias_p = jnp.pad(params["b"].astype(jnp.float32), (0, ODP - OD))
    node_proj = jnp.dot(V_bf.reshape(B * N, H), wi,
                        preferred_element_type=jnp.float32) + bias_p[None, :]

    eye_p = jnp.pad(jnp.eye(20, dtype=jnp.float32).reshape(OD),
                    (0, ODP - OD)).reshape(1, ODP)
    mask_rows = jnp.broadcast_to(x_mask[:, :, None], (B, N, K)).reshape(R, 1)

    # Row tile: large (~2048) to amortize per-step overhead; multiple of 8*K so
    # the per-node block meets the sublane constraint and rows stay K-aligned.
    if R <= 2048:
        TR = R
    else:
        step = 8 * K
        TR = max(step, (2048 // step) * step)
    # TODO(synk): optionally sweep pl.Buffered(3) on hj/he/out specs on v5e/v6e.

    etab = pl.pallas_call(
        functools.partial(_proj_kernel, k=K),
        out_shape=jax.ShapeDtypeStruct((R, ODP), jnp.float32),
        grid=(pl.cdiv(R, TR),),
        in_specs=[
            pl.BlockSpec((TR, H), lambda i: (i, 0)),
            pl.BlockSpec((TR, H), lambda i: (i, 0)),
            pl.BlockSpec((TR // K, ODP), lambda i: (i, 0)),
            pl.BlockSpec((H, ODP), lambda i: (0, 0)),
            pl.BlockSpec((H, ODP), lambda i: (0, 0)),
            pl.BlockSpec((1, ODP), lambda i: (0, 0)),
            pl.BlockSpec((TR, 1), lambda i: (i, 0)),
        ],
        out_specs=pl.BlockSpec((TR, ODP), lambda i: (i, 0)),
        compiler_params=pltpu.CompilerParams(
            dimension_semantics=("parallel",),
            vmem_limit_bytes=48 * 1024 * 1024),
    )(hj, he, node_proj, wj, we, eye_p, mask_rows)

    # --- merge_duplicate_pairE via reverse-index gather: no dense (B,N,N,20,20),
    #     20x20 transpose applied in XLA only to the gathered reverse rows,
    #     and only the 400 real columns are gathered/averaged.
    etab_rows = etab[:, :OD].reshape(B, N * K, OD)
    nbr_of_nbr = E_idx[b_ar, E_idx]                       # (B,N,K,K) = E_idx[b,j,l]
    i_ar = jnp.arange(N)[None, :, None, None]
    match = nbr_of_nbr == i_ar
    found = jnp.any(match, axis=-1)                       # (B,N,K)
    l_rev = jnp.argmax(match, axis=-1)                    # first l with a match
    rev_row = jnp.where(found, E_idx * K + l_rev, 0).reshape(B, N * K)
    # TODO(synk): the data-dependent reverse-edge row gather stays in XLA.
    rev = jnp.take_along_axis(etab_rows, rev_row[..., None], axis=1)
    rev = rev.reshape(B, N * K, 20, 20).swapaxes(-1, -2).reshape(B, N * K, OD)
    rev = rev * found.reshape(B, N * K, 1).astype(rev.dtype)
    merged = (etab_rows + rev) * 0.5
    return merged.reshape(B, N, K, OD), E_idx


if __name__ == "__main__":
    key = jax.random.PRNGKey(0)
    B, N, K, H = 2, 16, 8, 32        # batch, residues, k_neighbors, hidden dim
    out_dim = 400                    # 20 x 20 Potts pair-energy table

    k1, k2, k3, k4, k5 = jax.random.split(key, 5)
    V_embed = jax.random.normal(k1, (B, N, H), jnp.float32)
    E_embed = jax.random.normal(k2, (B, N, N, H), jnp.float32)
    X = jax.random.normal(k3, (B, N, 4, 3), jnp.float32) * 3.0
    x_mask = jnp.ones((B, N), jnp.float32).at[1, N - 2:].set(0.0)
    chain_idx = jnp.zeros((B, N), jnp.int32)

    # Deterministic synthetic parameters for W = nn.Linear(3*H, 400)
    params = {
        "w": jax.random.normal(k4, (out_dim, 3 * H), jnp.float32) * 0.05,
        "b": jax.random.normal(k5, (out_dim,), jnp.float32) * 0.01,
    }

    fwd = jax.jit(functools.partial(ablated_pair_energies, k_neighbors=K))
    etab, E_idx = fwd(params, V_embed, E_embed, X, x_mask, chain_idx)
    jax.block_until_ready((etab, E_idx))

    assert etab.shape == (B, N, K, out_dim) and etab.dtype == jnp.float32
    assert E_idx.shape == (B, N, K)
    assert bool(jnp.all(jnp.isfinite(etab)))
    print("KERNEL_OK")
</pallas_src>

<mosaic_0001>
module attributes {stable_mosaic.version = 11 : i64} {
  func.func @_dist_kernel(%arg0: i32, %arg1: i32, %arg2: memref<1x16x5xf32, #tpu.memory_space<vmem>>, %arg3: memref<1x16x5xf32, #tpu.memory_space<vmem>>, %arg4: memref<1x16x1xf32, #tpu.memory_space<vmem>>, %arg5: memref<1x1x16xf32, #tpu.memory_space<vmem>>, %arg6: memref<1x16x16xf32, #tpu.memory_space<vmem>>) attributes {dimension_semantics = [#tpu.dimension_semantics<parallel>, #tpu.dimension_semantics<parallel>], iteration_bounds = array<i64: 2, 1>, scalar_prefetch = 0 : i64, scratch_operands = 0 : i64, tpu.core_type = #tpu.core_type<tc>, window_params = [{transform_indices = @transform_0, window_bounds = array<i64: 1, 16, 5>}, {transform_indices = @transform_1, window_bounds = array<i64: 1, 16, 5>}, {transform_indices = @transform_2, window_bounds = array<i64: 1, 16, 1>}, {transform_indices = @transform_3, window_bounds = array<i64: 1, 1, 16>}, {transform_indices = @transform_4, window_bounds = array<i64: 1, 16, 16>}]} {
    %c0 = arith.constant 0 : index
    %c0_0 = arith.constant 0 : index
    %c0_1 = arith.constant 0 : index
    %0 = vector.load %arg2[%c0, %c0_0, %c0_1] : memref<1x16x5xf32, #tpu.memory_space<vmem>>, vector<1x16x5xf32>
    %1 = vector.shape_cast %0 : vector<1x16x5xf32> to vector<16x5xf32>
    %c0_2 = arith.constant 0 : index
    %c0_3 = arith.constant 0 : index
    %c0_4 = arith.constant 0 : index
    %2 = vector.load %arg3[%c0_2, %c0_3, %c0_4] : memref<1x16x5xf32, #tpu.memory_space<vmem>>, vector<1x16x5xf32>
    %3 = vector.shape_cast %2 : vector<1x16x5xf32> to vector<16x5xf32>
    %c0_5 = arith.constant 0 : index
    %c0_6 = arith.constant 0 : index
    %c0_7 = arith.constant 0 : index
    %4 = vector.load %arg4[%c0_5, %c0_6, %c0_7] : memref<1x16x1xf32, #tpu.memory_space<vmem>>, vector<1x16x1xf32>
    %5 = vector.shape_cast %4 : vector<1x16x1xf32> to vector<16x1xf32>
    %c0_8 = arith.constant 0 : index
    %c0_9 = arith.constant 0 : index
    %c0_10 = arith.constant 0 : index
    %6 = vector.load %arg5[%c0_8, %c0_9, %c0_10] : memref<1x1x16xf32, #tpu.memory_space<vmem>>, vector<1x1x16xf32>
    %7 = vector.shape_cast %6 : vector<1x1x16xf32> to vector<1x16xf32>
    %cst = arith.constant dense<0.000000e+00> : vector<16x16xf32>
    %8 = tpu.matmul %1, %3, %cst {dimension_numbers = #tpu.dot_dimension_numbers<[1], [1], [0], [0], [0, 0, 1, 0], [], []>} : vector<16x5xf32>, vector<16x5xf32>, vector<16x16xf32> -> vector<16x16xf32>
    %cst_11 = arith.constant 0.000000e+00 : f32
    %9 = vector.broadcast %cst_11 : f32 to vector<16x16xf32>
    %10 = arith.maximumf %8, %9 : vector<16x16xf32>
    %11 = vector.broadcast %5 : vector<16x1xf32> to vector<16x16xf32>
    %12 = vector.broadcast %7 : vector<1x16xf32> to vector<16x16xf32>
    %13 = arith.mulf %11, %12 : vector<16x16xf32>
    %cst_12 = arith.constant 9.99999997E-7 : f32
    %14 = vector.broadcast %cst_12 : f32 to vector<16x16xf32>
    %15 = arith.addf %10, %14 : vector<16x16xf32>
    %16 = math.sqrt %15 : vector<16x16xf32>
    %17 = arith.mulf %13, %16 : vector<16x16xf32>
    %cst_13 = arith.constant dense<0xFF800000> : vector<16xf32>
    %18 = vector.multi_reduction <maximumf>, %17, %cst_13 [1] : vector<16x16xf32> to vector<16xf32>
    %19 = vector.shape_cast %18 : vector<16xf32> to vector<16x1xf32>
    %cst_14 = arith.constant 1.000000e+00 : f32
    %20 = vector.broadcast %cst_14 : f32 to vector<16x16xf32>
    %21 = arith.subf %20, %13 : vector<16x16xf32>
    %22 = vector.broadcast %19 : vector<16x1xf32> to vector<16x16xf32>
    %23 = arith.mulf %21, %22 : vector<16x16xf32>
    %24 = arith.addf %17, %23 : vector<16x16xf32>
    %c0_15 = arith.constant 0 : index
    %c0_16 = arith.constant 0 : index
    %c0_17 = arith.constant 0 : index
    %25 = vector.load %arg6[%c0_15, %c0_16, %c0_17] : memref<1x16x16xf32, #tpu.memory_space<vmem>>, vector<1x16x16xf32>
    %26 = vector.shape_cast %25 : vector<1x16x16xf32> to vector<16x16xf32>
    %27 = vector.shape_cast %24 : vector<16x16xf32> to vector<1x16x16xf32>
    tpu.vector_store %arg6[%c0_15, %c0_16, %c0_17], %27 {strides = array<i32>} : memref<1x16x16xf32, #tpu.memory_space<vmem>>, vector<1x16x16xf32>,
    return
  }
  func.func @transform_0(%arg0: i32, %arg1: i32) -> (i32, i32, i32) {
    %c0_i32 = arith.constant 0 : i32
    %c0_i32_0 = arith.constant 0 : i32
    return %arg0, %arg1, %c0_i32 : i32, i32, i32
  }
  func.func @transform_1(%arg0: i32, %arg1: i32) -> (i32, i32, i32) {
    %c0_i32 = arith.constant 0 : i32
    %c0_i32_0 = arith.constant 0 : i32
    %c0_i32_1 = arith.constant 0 : i32
    return %arg0, %c0_i32, %c0_i32_0 : i32, i32, i32
  }
  func.func @transform_2(%arg0: i32, %arg1: i32) -> (i32, i32, i32) {
    %c0_i32 = arith.constant 0 : i32
    %c0_i32_0 = arith.constant 0 : i32
    return %arg0, %arg1, %c0_i32 : i32, i32, i32
  }
  func.func @transform_3(%arg0: i32, %arg1: i32) -> (i32, i32, i32) {
    %c0_i32 = arith.constant 0 : i32
    %c0_i32_0 = arith.constant 0 : i32
    %c0_i32_1 = arith.constant 0 : i32
    return %arg0, %c0_i32, %c0_i32_0 : i32, i32, i32
  }
  func.func @transform_4(%arg0: i32, %arg1: i32) -> (i32, i32, i32) {
    %c0_i32 = arith.constant 0 : i32
    %c0_i32_0 = arith.constant 0 : i32
    return %arg0, %arg1, %c0_i32 : i32, i32, i32
  }
}

module attributes {stable_mosaic.version = 11 : i64} {
  func.func @_proj_kernel(%arg0: i32, %arg1: memref<256x32xbf16, #tpu.memory_space<vmem>>, %arg2: memref<256x32xbf16, #tpu.memory_space<vmem>>, %arg3: memref<32x512xf32, #tpu.memory_space<vmem>>, %arg4: memref<32x512xbf16, #tpu.memory_space<vmem>>, %arg5: memref<32x512xbf16, #tpu.memory_space<vmem>>, %arg6: memref<1x512xf32, #tpu.memory_space<vmem>>, %arg7: memref<256x1xf32, #tpu.memory_space<vmem>>, %arg8: memref<256x512xf32, #tpu.memory_space<vmem>>) attributes {dimension_semantics = [#tpu.dimension_semantics<parallel>], iteration_bounds = array<i64: 1>, scalar_prefetch = 0 : i64, scratch_operands = 0 : i64, tpu.core_type = #tpu.core_type<tc>, window_params = [{transform_indices = @transform_0, window_bounds = array<i64: 256, 32>}, {transform_indices = @transform_1, window_bounds = array<i64: 256, 32>}, {transform_indices = @transform_2, window_bounds = array<i64: 32, 512>}, {pipeline_mode = #tpu.pipeline_mode<synchronous>, transform_indices = @transform_3, window_bounds = array<i64: 32, 512>}, {pipeline_mode = #tpu.pipeline_mode<synchronous>, transform_indices = @transform_4, window_bounds = array<i64: 32, 512>}, {pipeline_mode = #tpu.pipeline_mode<synchronous>, transform_indices = @transform_5, window_bounds = array<i64: 1, 512>}, {transform_indices = @transform_6, window_bounds = array<i64: 256, 1>}, {transform_indices = @transform_7, window_bounds = array<i64: 256, 512>}]} {
    %c0 = arith.constant 0 : index
    %c0_0 = arith.constant 0 : index
    %0 = vector.load %arg1[%c0, %c0_0] : memref<256x32xbf16, #tpu.memory_space<vmem>>, vector<256x32xbf16>
    %c0_1 = arith.constant 0 : index
    %c0_2 = arith.constant 0 : index
    %1 = vector.load %arg4[%c0_1, %c0_2] : memref<32x512xbf16, #tpu.memory_space<vmem>>, vector<32x512xbf16>
    %cst = arith.constant dense<0.000000e+00> : vector<256x512xf32>
    %2 = tpu.matmul %0, %1, %cst {dimension_numbers = #tpu.dot_dimension_numbers<[1], [0], [0], [1], [0, 0, 1, 1], [], []>} : vector<256x32xbf16>, vector<32x512xbf16>, vector<256x512xf32> -> vector<256x512xf32>
    %c0_3 = arith.constant 0 : index
    %c0_4 = arith.constant 0 : index
    %3 = vector.load %arg2[%c0_3, %c0_4] : memref<256x32xbf16, #tpu.memory_space<vmem>>, vector<256x32xbf16>
    %c0_5 = arith.constant 0 : index
    %c0_6 = arith.constant 0 : index
    %4 = vector.load %arg5[%c0_5, %c0_6] : memref<32x512xbf16, #tpu.memory_space<vmem>>, vector<32x512xbf16>
    %cst_7 = arith.constant dense<0.000000e+00> : vector<256x512xf32>
    %5 = tpu.matmul %3, %4, %cst_7 {dimension_numbers = #tpu.dot_dimension_numbers<[1], [0], [0], [1], [0, 0, 1, 1], [], []>} : vector<256x32xbf16>, vector<32x512xbf16>, vector<256x512xf32> -> vector<256x512xf32>
    %6 = arith.addf %2, %5 : vector<256x512xf32>
    %c0_8 = arith.constant 0 : index
    %c0_9 = arith.constant 0 : index
    %7 = vector.load %arg3[%c0_8, %c0_9] : memref<32x512xf32, #tpu.memory_space<vmem>>, vector<32x512xf32>
    %8 = vector.shape_cast %7 : vector<32x512xf32> to vector<32x1x512xf32>
    %9 = vector.shape_cast %8 : vector<32x1x512xf32> to vector<32x1x512xf32>
    %10 = vector.broadcast %9 : vector<32x1x512xf32> to vector<32x8x512xf32>
    %11 = vector.shape_cast %10 : vector<32x8x512xf32> to vector<256x512xf32>
    %12 = arith.addf %6, %11 : vector<256x512xf32>
    %13 = tpu.iota {dimensions = array<i32: 0>} : vector<256x1xi32>
    %c8_i32 = arith.constant 8 : i32
    %c0_i32 = arith.constant 0 : i32
    %14 = arith.cmpi eq, %c8_i32, %c0_i32 : i32
    %c1_i32 = arith.constant 1 : i32
    %15 = arith.select %14, %c1_i32, %c8_i32 : i32
    %16 = vector.broadcast %15 : i32 to vector<256x1xi32>
    %17 = arith.remsi %13, %16 : vector<256x1xi32>
    %c0_i32_10 = arith.constant 0 : i32
    %18 = vector.broadcast %c0_i32_10 : i32 to vector<256x1xi32>
    %19 = arith.cmpi ne, %17, %18 : vector<256x1xi32>
    %c0_i32_11 = arith.constant 0 : i32
    %20 = vector.broadcast %c0_i32_11 : i32 to vector<256x1xi32>
    %21 = arith.cmpi slt, %17, %20 : vector<256x1xi32>
    %c0_i32_12 = arith.constant 0 : i32
    %22 = arith.cmpi slt, %15, %c0_i32_12 : i32
    %23 = vector.broadcast %22 : i1 to vector<256x1xi1>
    %24 = vector.broadcast %23 : vector<256x1xi1> to vector<256x1xi1>
    %25 = arith.xori %21, %24 : vector<256x1xi1>
    %26 = arith.andi %25, %19 : vector<256x1xi1>
    %27 = vector.broadcast %15 : i32 to vector<256x1xi32>
    %28 = arith.addi %17, %27 : vector<256x1xi32>
    %29 = arith.select %26, %28, %17 : vector<256x1xi1>, vector<256x1xi32>
    %c0_i32_13 = arith.constant 0 : i32
    %30 = vector.broadcast %c0_i32_13 : i32 to vector<256x1xi32>
    %31 = arith.cmpi eq, %29, %30 : vector<256x1xi32>
    %c0_14 = arith.constant 0 : index
    %c0_15 = arith.constant 0 : index
    %32 = vector.load %arg7[%c0_14, %c0_15] : memref<256x1xf32, #tpu.memory_space<vmem>>, vector<256x1xf32>
    %c0_16 = arith.constant 0 : index
    %c0_17 = arith.constant 0 : index
    %33 = vector.load %arg6[%c0_16, %c0_17] : memref<1x512xf32, #tpu.memory_space<vmem>>, vector<1x512xf32>
    %cst_18 = arith.constant 1.000000e+00 : f32
    %34 = vector.shape_cast %31 : vector<256x1xi1> to vector<256x1xi1>
    %35 = vector.broadcast %34 : vector<256x1xi1> to vector<256x512xi1>
    %36 = vector.shape_cast %33 : vector<1x512xf32> to vector<1x512xf32>
    %37 = vector.broadcast %36 : vector<1x512xf32> to vector<256x512xf32>
    %38 = vector.broadcast %cst_18 : f32 to vector<256x512xf32>
    %39 = arith.select %35, %37, %38 : vector<256x512xi1>, vector<256x512xf32>
    %40 = vector.broadcast %32 : vector<256x1xf32> to vector<256x512xf32>
    %41 = arith.mulf %40, %39 : vector<256x512xf32>
    %42 = arith.mulf %12, %41 : vector<256x512xf32>
    %c0_19 = arith.constant 0 : index
    %c0_20 = arith.constant 0 : index
    %43 = vector.load %arg8[%c0_19, %c0_20] : memref<256x512xf32, #tpu.memory_space<vmem>>, vector<256x512xf32>
    tpu.vector_store %arg8[%c0_19, %c0_20], %42 {strides = array<i32>} : memref<256x512xf32, #tpu.memory_space<vmem>>, vector<256x512xf32>,
    return
  }
  func.func @transform_0(%arg0: i32) -> (i32, i32) {
    %c0_i32 = arith.constant 0 : i32
    %c0_i32_0 = arith.constant 0 : i32
    return %arg0, %c0_i32 : i32, i32
  }
  func.func @transform_1(%arg0: i32) -> (i32, i32) {
    %c0_i32 = arith.constant 0 : i32
    %c0_i32_0 = arith.constant 0 : i32
    return %arg0, %c0_i32 : i32, i32
  }
  func.func @transform_2(%arg0: i32) -> (i32, i32) {
    %c0_i32 = arith.constant 0 : i32
    %c0_i32_0 = arith.constant 0 : i32
    return %arg0, %c0_i32 : i32, i32
  }
  func.func @transform_3(%arg0: i32) -> (i32, i32) {
    %c0_i32 = arith.constant 0 : i32
    %c0_i32_0 = arith.constant 0 : i32
    %c0_i32_1 = arith.constant 0 : i32
    return %c0_i32, %c0_i32_0 : i32, i32
  }
  func.func @transform_4(%arg0: i32) -> (i32, i32) {
    %c0_i32 = arith.constant 0 : i32
    %c0_i32_0 = arith.constant 0 : i32
    %c0_i32_1 = arith.constant 0 : i32
    return %c0_i32, %c0_i32_0 : i32, i32
  }
  func.func @transform_5(%arg0: i32) -> (i32, i32) {
    %c0_i32 = arith.constant 0 : i32
    %c0_i32_0 = arith.constant 0 : i32
    %c0_i32_1 = arith.constant 0 : i32
    return %c0_i32, %c0_i32_0 : i32, i32
  }
  func.func @transform_6(%arg0: i32) -> (i32, i32) {
    %c0_i32 = arith.constant 0 : i32
    %c0_i32_0 = arith.constant 0 : i32
    return %arg0, %c0_i32 : i32, i32
  }
  func.func @transform_7(%arg0: i32) -> (i32, i32) {
    %c0_i32 = arith.constant 0 : i32
    %c0_i32_0 = arith.constant 0 : i32
    return %arg0, %c0_i32 : i32, i32
  }
}

</mosaic_0001>

<llo_original>
// kernel: neg.1
$region0: #{neg.1}
  #allocation0 [shape = 's32[1]{0}', space=sflag, size = 0x4, scoped, tag = 'scoped memory for neg.1']
  %s0 = inlined_call_operand.vmem [shape: f32[2,16,16], index: 0, kind: input, shape index: {}]
  %s1 = inlined_call_operand.vmem [shape: f32[2,16,16], index: 1, kind: output, shape index: {}]
  %v2 = vld [vmem:[%s0] sm:$0xff]
  %3 = xla_tuple %v2
  %4 = xla_tuple %3
  %v5 = vxor.u32 %v2, 2147483648
  %6 = xla_tuple %v5
  %7 = vst [vmem:[%s1] sm:$0xff] %v5
  %s8 = scalar_lea.vmem %s0, 16
  %v9 = vld [vmem:[%s8] sm:$0xff]
  %10 = xla_tuple %v9
  %11 = xla_tuple %10
  %v12 = vxor.u32 %v9, 2147483648
  %13 = xla_tuple %v12
  %s14 = scalar_lea.vmem %s1, 16
  %15 = vst [vmem:[%s14] sm:$0xff] %v12
  %s16 = scalar_lea.vmem %s0, 8
  %v17 = vld [vmem:[%s16] sm:$0xff]
  %18 = xla_tuple %v17
  %19 = xla_tuple %18
  %v20 = vxor.u32 %v17, 2147483648
  %21 = xla_tuple %v20
  %s22 = scalar_lea.vmem %s1, 8
  %23 = vst [vmem:[%s22] sm:$0xff] %v20
  %s24 = scalar_lea.vmem %s0, 24
  %v25 = vld [vmem:[%s24] sm:$0xff]
  %26 = xla_tuple %v25
  %27 = xla_tuple %26
  %v28 = vxor.u32 %v25, 2147483648
  %29 = xla_tuple %v28
  %s30 = scalar_lea.vmem %s1, 24
  %31 = vst [vmem:[%s30] sm:$0xff] %v28

// kernel: ablated_pair_energies.2
$region0: #{ablated_pair_energies.2}
  #allocation0 [shape = 'u32[]', space=smem, size = 0x4, offset = 0x4, fixed_abs, tag = 'smem constant byte address 0x4 - core index']
  #allocation1 [shape = 'u32[144,128]{1,0:T(1,128)}', space=vmem, size = 0x12000, scoped, tag = 'internal scratch']
  %s0 = inlined_call_operand.vmem [shape: f32[2,16,5], index: 0, kind: input, shape index: {}]
  %s1 = inlined_call_operand.vmem [shape: f32[2,16,5], index: 1, kind: input, shape index: {}]
  %s2 = inlined_call_operand.vmem [shape: f32[2,16,1], index: 2, kind: input, shape index: {}]
  %s3 = inlined_call_operand.hbm [shape: f32[2,1,16], index: 3, kind: input, shape index: {}]
  %s4 = inlined_call_operand.vmem [shape: f32[2,16,16], index: 4, kind: output, shape index: {}]
  %s5 = sld [smem:[#allocation0]]
  $region53: #{ablated_pair_energies.2} parent=0
    _
  %s7 = ssub.s32 1, %s5
  %s8 = scalar_select 0, %s7, %s5
  $region1: #{ablated_pair_energies.2} parent=0
    #allocation2 [shape = 'u8[1024]{0}', space=vmem, size = 0x400, scoped, tag = 'input window, operand 3']
    #allocation3 [shape = 's32[2]{0}', space=sflag, size = 0x8, scoped, tag = 'scoped memory for ablated_pair_energies.2']
    %9 = vsyncpa [#allocation3], 0
    %s10 = scalar_lea.sflag [#allocation3], 1
    %11 = vsyncpa %s10, 0
    loop: start=0, step=1, limit=4
    $region2: #{ablated_pair_energies.2} parent=1 // loop_pre_header
      _
    $region3: #{ablated_pair_energies.2} parent=1 // loop_header
      %s13 = sphi 0, %s17
      %p14 = scmp.ge.s32.totalorder %s13, 4
      %s20 = sphi 0, %s32
      %s21 = sphi 0, %s28
      %s22 = sphi 0, %s20
      %s23 = sphi 0, %s21
      %s24 = sphi 0, %s22
      %s25 = sphi 0, %s23
      %s37 = sphi 0, %s39
      %s40 = sphi 0, %s37
      %s41 = sphi 0, %s40
      %s57 = sphi 0, %s41
      %s63 = sphi 0, %s65
      %s66 = sphi 0, %s63
      %s67 = sphi 0, %s66
      %s83 = sphi 0, %s67
      %s91 = sphi 0, %s93
      %s94 = sphi 0, %s91
      %s95 = sphi 0, %s94
      %s111 = sphi 0, %s95
      %s117 = sphi 0, %s119
      %s120 = sphi 0, %s117
      %s121 = sphi 0, %s120
      %s137 = sphi 0, %s121
      %s145 = sphi 0, %s147
      %s148 = sphi 0, %s145
      %s149 = sphi 0, %s148
      %s165 = sphi 0, %s149
    $region4: #{ablated_pair_energies.2} parent=1 // loop_header_branch
      %16 = sbr.rel (%p14) target = $region8
    $region5: #{ablated_pair_energies.2} parent=1 // loop_body
      %s18 = ssub.s32 %s13, 1
      %s19 = ssub.s32 %s13, 2
      %s26 = sadd.s32 1, %s21
      %p27 = scmp.ge.s32.totalorder %s26, 1
      %s28 = scalar_select %p27, 0, %s26
      %s29 = sadd.s32 1, %s20
      %s30 = scalar_select %p27, %s29, %s20
      %p31 = scmp.ge.s32.totalorder %s30, 2
      %s32 = scalar_select %p31, 0, %s30
      %s33 = ssub.s32 %s20, %s32
      %s34 = ssub.s32 %s21, %s28
      %s35 = sor.u32 %s33, %s34
      %p36 = scmp.eq.s32.totalorder %s35, 0
      %s38 = sadd.s32 %s37, 1
      %s39 = scalar_select %p36, %s37, %s38
      %p42 = pneg %p36
      %p43 = scmp.eq.s32.totalorder %s13, 1
      %p44 = por %p42, %p43
      %p45 = scmp.ne.s32.totalorder %s37, %s40
      %p46 = scmp.eq.s32.totalorder %s13, 0
      %p47 = por %p45, %p46
      %p48 = scmp.ne.s32.totalorder %s37, %s40
      %p49 = scmp.eq.s32.totalorder %s18, 1
      %p50 = por %p48, %p49
      %p51 = scmp.ne.s32.totalorder %s40, %s41
      %p52 = scmp.eq.s32.totalorder %s18, 0
      %p53 = por %p51, %p52
      %p54 = scmp.ne.s32.totalorder %s40, %s41
      %p55 = scmp.eq.s32.totalorder %s19, 1
      %p56 = por %p54, %p55
      %p58 = scmp.ne.s32.totalorder %s41, %s57
      %p59 = scmp.eq.s32.totalorder %s19, 0
      %p60 = por %p58, %p59
      %s61 = ssub.s32 %s20, %s32
      %p62 = scmp.eq.s32.totalorder %s61, 0
      %s64 = sadd.s32 %s63, 1
      %s65 = scalar_select %p62, %s63, %s64
      %p68 = pneg %p62
      %p69 = scmp.eq.s32.totalorder %s13, 1
      %p70 = por %p68, %p69
      %p71 = scmp.ne.s32.totalorder %s63, %s66
      %p72 = scmp.eq.s32.totalorder %s13, 0
      %p73 = por %p71, %p72
      %p74 = scmp.ne.s32.totalorder %s63, %s66
      %p75 = scmp.eq.s32.totalorder %s18, 1
      %p76 = por %p74, %p75
      %p77 = scmp.ne.s32.totalorder %s66, %s67
      %p78 = scmp.eq.s32.totalorder %s18, 0
      %p79 = por %p77, %p78
      %p80 = scmp.ne.s32.totalorder %s66, %s67
      %p81 = scmp.eq.s32.totalorder %s19, 1
      %p82 = por %p80, %p81
      %p84 = scmp.ne.s32.totalorder %s67, %s83
      %p85 = scmp.eq.s32.totalorder %s19, 0
      %p86 = por %p84, %p85
      %s87 = ssub.s32 %s20, %s32
      %s88 = ssub.s32 %s21, %s28
      %s89 = sor.u32 %s87, %s88
      %p90 = scmp.eq.s32.totalorder %s89, 0
      %s92 = sadd.s32 %s91, 1
      %s93 = scalar_select %p90, %s91, %s92
      %p96 = pneg %p90
      %p97 = scmp.eq.s32.totalorder %s13, 1
      %p98 = por %p96, %p97
      %p99 = scmp.ne.s32.totalorder %s91, %s94
      %p100 = scmp.eq.s32.totalorder %s13, 0
      %p101 = por %p99, %p100
      %p102 = scmp.ne.s32.totalorder %s91, %s94
      %p103 = scmp.eq.s32.totalorder %s18, 1
      %p104 = por %p102, %p103
      %p105 = scmp.ne.s32.totalorder %s94, %s95
      %p106 = scmp.eq.s32.totalorder %s18, 0
      %p107 = por %p105, %p106
      %p108 = scmp.ne.s32.totalorder %s94, %s95
      %p109 = scmp.eq.s32.totalorder %s19, 1
      %p110 = por %p108, %p109
      %p112 = scmp.ne.s32.totalorder %s95, %s111
      %p113 = scmp.eq.s32.totalorder %s19, 0
      %p114 = por %p112, %p113
      %s115 = ssub.s32 %s20, %s32
      %p116 = scmp.eq.s32.totalorder %s115, 0
      %s118 = sadd.s32 %s117, 1
      %s119 = scalar_select %p116, %s117, %s118
      %p122 = pneg %p116
      %p123 = scmp.eq.s32.totalorder %s13, 1
      %p124 = por %p122, %p123
      %p125 = scmp.ne.s32.totalorder %s117, %s120
      %p126 = scmp.eq.s32.totalorder %s13, 0
      %p127 = por %p125, %p126
      %p128 = scmp.ne.s32.totalorder %s117, %s120
      %p129 = scmp.eq.s32.totalorder %s18, 1
      %p130 = por %p128, %p129
      %p131 = scmp.ne.s32.totalorder %s120, %s121
      %p132 = scmp.eq.s32.totalorder %s18, 0
      %p133 = por %p131, %p132
      %p134 = scmp.ne.s32.totalorder %s120, %s121
      %p135 = scmp.eq.s32.totalorder %s19, 1
      %p136 = por %p134, %p135
      %p138 = scmp.ne.s32.totalorder %s121, %s137
      %p139 = scmp.eq.s32.totalorder %s19, 0
      %p140 = por %p138, %p139
      %s141 = ssub.s32 %s20, %s32
      %s142 = ssub.s32 %s21, %s28
      %s143 = sor.u32 %s141, %s142
      %p144 = scmp.eq.s32.totalorder %s143, 0
      %s146 = sadd.s32 %s145, 1
      %s147 = scalar_select %p144, %s145, %s146
      %p150 = pneg %p144
      %p151 = scmp.eq.s32.totalorder %s13, 1
      %p152 = por %p150, %p151
      %p153 = scmp.ne.s32.totalorder %s145, %s148
      %p154 = scmp.eq.s32.totalorder %s13, 0
      %p155 = por %p153, %p154
      %p156 = scmp.ne.s32.totalorder %s145, %s148
      %p157 = scmp.eq.s32.totalorder %s18, 1
      %p158 = por %p156, %p157
      %p159 = scmp.ne.s32.totalorder %s148, %s149
      %p160 = scmp.eq.s32.totalorder %s18, 0
      %p161 = por %p159, %p160
      %p162 = scmp.ne.s32.totalorder %s148, %s149
      %p163 = scmp.eq.s32.totalorder %s19, 1
      %p164 = por %p162, %p163
      %p166 = scmp.ne.s32.totalorder %s149, %s165
      %p167 = scmp.eq.s32.totalorder %s19, 0
      %p168 = por %p166, %p167
      %p169 = scmp.le.s32.totalorder 1, %s13
      %p170 = scmp.lt.s32.totalorder %s13, 3
      %p171 = pnand %p169, %p170
      %p172 = pneg %p171
      // Predicated region
      $region9: #{ablated_pair_energies.2} parent=5 // pred_check
        _
      $region10: #{ablated_pair_energies.2} parent=5 // pred_check_branch
        %174 = sbr.rel (%p171) target = $region12
      $region11: #{ablated_pair_energies.2} parent=5 // pred_region
        %s175 = ssub.s32 %s13, 1
      $region12: #{ablated_pair_energies.2} parent=5 // pred_fallthru
        _
      %p176 = scmp.lt.s32.totalorder %s13, 2
      // Predicated region
      $region13: #{ablated_pair_energies.2} parent=5 // pred_check
        %p177 = pneg %p176
      $region14: #{ablated_pair_energies.2} parent=5 // pred_check_branch
        %179 = sbr.rel (%p177) target = $region16
      $region15: #{ablated_pair_energies.2} parent=5 // pred_region
        // Predicated region
        $region17: #{ablated_pair_energies.2} parent=15 // pred_check
          %p180 = pneg %p47
        $region18: #{ablated_pair_energies.2} parent=15 // pred_check_branch
          %182 = sbr.rel (%p180) target = $region20
        $region19: #{ablated_pair_energies.2} parent=15 // pred_region
          %s183 = smul.u32 2, %s21
          %p184 = scmp.lt.s32.totalorder %s20, 1
          %s185 = scalar_select %p184, %s20, 1
          %p186 = scmp.lt.s32.totalorder %s183, 1
          %s187 = scalar_select %p186, %s183, 1
          %s188 = smul.addr %s185, 2
          %s189 = sadd.s32 %s187, %s188
          %s190 = smul.addr %s189, 8
          %s191 = scalar_lea.vmem %s0, %s190
          %s192 = smul.u32 2, %s21
        $region20: #{ablated_pair_energies.2} parent=15 // pred_fallthru
          _
        // Predicated region
        $region21: #{ablated_pair_energies.2} parent=15 // pred_check
          %p193 = pneg %p73
        $region22: #{ablated_pair_energies.2} parent=15 // pred_check_branch
          %195 = sbr.rel (%p193) target = $region24
        $region23: #{ablated_pair_energies.2} parent=15 // pred_region
          %p196 = scmp.lt.s32.totalorder %s20, 1
          %s197 = scalar_select %p196, %s20, 1
          %s198 = smul.addr %s197, 2
          %s199 = smul.addr %s198, 8
          %s200 = scalar_lea.vmem %s1, %s199
        $region24: #{ablated_pair_energies.2} parent=15 // pred_fallthru
          _
        // Predicated region
        $region25: #{ablated_pair_energies.2} parent=15 // pred_check
          %p201 = pneg %p101
        $region26: #{ablated_pair_energies.2} parent=15 // pred_check_branch
          %203 = sbr.rel (%p201) target = $region28
        $region27: #{ablated_pair_energies.2} parent=15 // pred_region
          %s204 = smul.u32 2, %s21
          %p205 = scmp.lt.s32.totalorder %s20, 1
          %s206 = scalar_select %p205, %s20, 1
          %p207 = scmp.lt.s32.totalorder %s204, 1
          %s208 = scalar_select %p207, %s204, 1
          %s209 = smul.addr %s206, 2
          %s210 = sadd.s32 %s208, %s209
          %s211 = smul.addr %s210, 8
          %s212 = scalar_lea.vmem %s2, %s211
          %s213 = smul.u32 2, %s21
        $region28: #{ablated_pair_energies.2} parent=15 // pred_fallthru
          _
        // Predicated region
        $region29: #{ablated_pair_energies.2} parent=15 // pred_check
          %p214 = pneg %p127
        $region30: #{ablated_pair_energies.2} parent=15 // pred_check_branch
          %216 = sbr.rel (%p214) target = $region32
        $region31: #{ablated_pair_energies.2} parent=15 // pred_region
          %s217 = sand.u32 %s117, 1
          %s218 = scalar_lea.sflag [#allocation3], %s217
          %s219 = sand.u32 %s117, 1
          %s220 = scalar_lea.vmem [#allocation2], %s219
          %s222 = ssub.s32 16, 16
          %223 = vsyncadd %s218, %s222
          %s224 = smul.addr %s20, 16
          %s225 = scalar_lea.hbm %s3, %s224
          %s227 = sshll.u32 %s220, 4
          %s228 = int_to_ptr.vmem [resolvable:$true] %s227
          %230 = dma.hbm_to_vmem [thread:$0]  %s225, 16, %s228, %s218
        $region32: #{ablated_pair_energies.2} parent=15 // pred_fallthru
          _
      $region16: #{ablated_pair_energies.2} parent=5 // pred_fallthru
        _
      %p231 = scmp.le.s32.totalorder 1, %s13
      %p232 = scmp.lt.s32.totalorder %s13, 3
      %p233 = pnand %p231, %p232
      %p234 = pneg %p233
      // Predicated region
      $region33: #{ablated_pair_energies.2} parent=5 // pred_check
        _
      $region34: #{ablated_pair_energies.2} parent=5 // pred_check_branch
        %236 = sbr.rel (%p233) target = $region36
      $region35: #{ablated_pair_energies.2} parent=5 // pred_region
        %s237 = ssub.s32 %s13, 1
        %s238 = sand.u32 %s120, 1
        %s239 = scalar_lea.sflag [#allocation3], %s238
        %s240 = sand.u32 %s120, 1
        %s241 = scalar_lea.vmem [#allocation2], %s240
        // Predicated region
        $region37: #{ablated_pair_energies.2} parent=35 // pred_check
          %p242 = pneg %p133
        $region38: #{ablated_pair_energies.2} parent=35 // pred_check_branch
          %244 = sbr.rel (%p242) target = $region40
        $region39: #{ablated_pair_energies.2} parent=35 // pred_region
          %245 = dma.done %s239, 16
        $region40: #{ablated_pair_energies.2} parent=35 // pred_fallthru
          _
        %s246 = smul.u32 2, %s23
        %p247 = scmp.lt.s32.totalorder %s22, 1
        %s248 = scalar_select %p247, %s22, 1
        %p249 = scmp.lt.s32.totalorder %s246, 1
        %s250 = scalar_select %p249, %s246, 1
        %s251 = smul.addr %s248, 2
        %s252 = sadd.s32 %s250, %s251
        %s253 = smul.addr %s252, 8
        %s254 = scalar_lea.vmem %s0, %s253
        %p255 = pneg %p53
        %p256 = pneg %p50
        %p257 = scmp.lt.s32.totalorder %s22, 1
        %s258 = scalar_select %p257, %s22, 1
        %s259 = smul.addr %s258, 2
        %s260 = smul.addr %s259, 8
        %s261 = scalar_lea.vmem %s1, %s260
        %p262 = pneg %p79
        %p263 = pneg %p76
        %s264 = smul.u32 2, %s23
        %p265 = scmp.lt.s32.totalorder %s22, 1
        %s266 = scalar_select %p265, %s22, 1
        %p267 = scmp.lt.s32.totalorder %s264, 1
        %s268 = scalar_select %p267, %s264, 1
        %s269 = smul.addr %s266, 2
        %s270 = sadd.s32 %s268, %s269
        %s271 = smul.addr %s270, 8
        %s272 = scalar_lea.vmem %s2, %s271
        %p273 = pneg %p107
        %p274 = pneg %p104
        %s275 = sand.u32 %s120, 1
        %s276 = scalar_lea.sflag [#allocation3], %s275
        %s277 = sand.u32 %s120, 1
        %s278 = scalar_lea.vmem [#allocation2], %s277
        %p279 = pneg %p133
        %p280 = pneg %p130
        %p281 = pneg %p161
        %p282 = pneg %p158
        %s283 = smul.u32 2, %s23
        %p284 = scmp.lt.s32.totalorder %s22, 1
        %s285 = scalar_select %p284, %s22, 1
        %p286 = scmp.lt.s32.totalorder %s283, 1
        %s287 = scalar_select %p286, %s283, 1
        %s288 = smul.addr %s285, 2
        %s289 = sadd.s32 %s287, %s288
        %s290 = smul.addr %s289, 8
        %s291 = scalar_lea.vmem %s4, %s290
        %s292 = smul.u32 2, %s23
        %p293 = scmp.lt.s32.totalorder %s22, 1
        %s294 = scalar_select %p293, %s22, 1
        %p295 = scmp.lt.s32.totalorder %s292, 1
        %s296 = scalar_select %p295, %s292, 1
        %s297 = smul.addr %s294, 2
        %s298 = sadd.s32 %s296, %s297
        %s299 = smul.addr %s298, 8
        %s300 = scalar_lea.vmem %s0, %s299
        %s301 = smul.u32 2, %s23
        %p302 = scmp.lt.s32.totalorder %s22, 1
        %s303 = scalar_select %p302, %s22, 1
        %s304 = smul.addr %s303, 2
        %s305 = smul.addr %s304, 8
        %s306 = scalar_lea.vmem %s1, %s305
        %s307 = smul.u32 2, %s23
        %p308 = scmp.lt.s32.totalorder %s22, 1
        %s309 = scalar_select %p308, %s22, 1
        %p310 = scmp.lt.s32.totalorder %s307, 1
        %s311 = scalar_select %p310, %s307, 1
        %s312 = smul.addr %s309, 2
        %s313 = sadd.s32 %s311, %s312
        %s314 = smul.addr %s313, 8
        %s315 = scalar_lea.vmem %s2, %s314
        %s316 = smul.u32 2, %s23
        %s317 = smul.u32 2, %s23
        %p318 = scmp.lt.s32.totalorder %s22, 1
        %s319 = scalar_select %p318, %s22, 1
        %p320 = scmp.lt.s32.totalorder %s317, 1
        %s321 = scalar_select %p320, %s317, 1
        %s322 = smul.addr %s319, 2
        %s323 = sadd.s32 %s321, %s322
        %s324 = smul.addr %s323, 8
        %s325 = scalar_lea.vmem %s4, %s324
        %s326 = smul.u32 2, %s23
        %v327 = vld [vmem:[%s300] sm:$0xff]
        %v328 = vld [vmem:[%s300 + $0x8] sm:$0xff]
        %v329 = vld [vmem:[%s306] sm:$0xff]
        %v330 = vld [vmem:[%s306 + $0x8] sm:$0xff]
        %v331 = vld [vmem:[%s315] sm:$0xff]
        %v332 = vld [vmem:[%s315 + $0x8] sm:$0xff]
        %v333 = vld [vmem:[%s241] sm:$0x1]
        %vm334 = vcmask 39936
        %v336 = vsel %vm334, %v327, 0
        %v339 = vsel %vm334, %v328, 0
        %v342 = vsel %vm334, %v329, 0
        %v345 = vsel %vm334, %v330, 0
        %347 = vmatprep.subr.mxu0 0.0
        %348 = vmatpush1.xpose.msra.mxu0 %v342
        %349 = vmatprep.subr.mxu0 0.0
        %350 = vmatpush1.xpose.msra.mxu0 %v345
        %351 = vmatprep.subr.mxu0 0.0
        %352 = vmatpush1.xpose.msra.mxu0 0.0
        %353 = vmatprep.subr.mxu0 0.0
        %354 = vmatpush1.xpose.msra.mxu0 0.0
        %355 = vmatprep.subr.mxu0 0.0
        %356 = vmatpush1.xpose.msra.mxu0 0.0
        %357 = vmatprep.subr.mxu0 0.0
        %358 = vmatpush1.xpose.msra.mxu0 0.0
        %359 = vmatprep.subr.mxu0 0.0
        %360 = vmatpush1.xpose.msra.mxu0 0.0
        %361 = vmatprep.subr.mxu0 0.0
        %362 = vmatpush1.xpose.msra.mxu0 0.0
        %363 = vmatprep.subr.mxu0 0.0
        %364 = vmatpush1.xpose.msra.mxu0 0.0
        %365 = vmatprep.subr.mxu0 0.0
        %366 = vmatpush1.xpose.msra.mxu0 0.0
        %367 = vmatprep.subr.mxu0 0.0
        %368 = vmatpush1.xpose.msra.mxu0 0.0
        %369 = vmatprep.subr.mxu0 0.0
        %370 = vmatpush1.xpose.msra.mxu0 0.0
        %371 = vmatprep.subr.mxu0 0.0
        %372 = vmatpush1.xpose.msra.mxu0 0.0
        %373 = vmatprep.subr.mxu0 0.0
        %374 = vmatpush1.xpose.msra.mxu0 0.0
        %375 = vmatprep.subr.mxu0 0.0
        %376 = vmatpush1.xpose.msra.mxu0 0.0
        %377 = vmatprep.subr.mxu0 0.0
        %378 = vmatpush1.xpose.msra.mxu0 0.0
        %379 = vmatprep.subr.mxu0 0.0
        %380 = vmatpush1.xpose.msra.mxu0 0.0
        %381 = vmatprep.subr.mxu0 0.0
        %382 = vmatpush1.xpose.msra.mxu0 0.0
        %383 = vmatprep.subr.mxu0 0.0
        %384 = vmatpush1.xpose.msra.mxu0 0.0
        %385 = vmatprep.subr.mxu0 0.0
        %386 = vmatpush1.xpose.msra.mxu0 0.0
        %387 = vmatprep.subr.mxu0 0.0
        %388 = vmatpush1.xpose.msra.mxu0 0.0
        %389 = vmatprep.subr.mxu0 0.0
        %390 = vmatpush1.xpose.msra.mxu0 0.0
        %391 = vmatprep.subr.mxu0 0.0
        %392 = vmatpush1.xpose.msra.mxu0 0.0
        %393 = vmatprep.subr.mxu0 0.0
        %394 = vmatpush1.xpose.msra.mxu0 0.0
        %395 = vmatprep.subr.mxu0 0.0
        %396 = vmatpush1.xpose.msra.mxu0 0.0
        %397 = vmatprep.subr.mxu0 0.0
        %398 = vmatpush1.xpose.msra.mxu0 0.0
        %399 = vmatprep.subr.mxu0 0.0
        %400 = vmatpush1.xpose.msra.mxu0 0.0
        %401 = vmatprep.subr.mxu0 0.0
        %402 = vmatpush1.xpose.msra.mxu0 0.0
        %403 = vmatprep.subr.mxu0 0.0
        %404 = vmatpush1.xpose.msra.mxu0 0.0
        %405 = vmatprep.subr.mxu0 0.0
        %406 = vmatpush1.xpose.msra.mxu0 0.0
        %407 = vmatprep.subr.mxu0 0.0
        %408 = vmatpush1.xpose.msra.mxu0 0.0
        %409 = vmatprep.subr.mxu0 0.0
        %410 = vmatpush1.xpose.msra.mxu0 0.0
        %411 = vmatprep.mubr.f32.mxu0 0.0
        %412 = vmatmul.mubr.f32.gmra.mrb[0].mxu0 %v336
        %v413 = vpop.f32.mrb[0].mxu0
        %v414 = vadd.f32 0.0, %v413
        %v415 = vpop.f32.mrb[0].mxu0
        %416 = vmatprep.mubr.f32.mxu0 0.0
        %417 = vmatmul.mubr.f32.gmra.mrb[0].mxu0 %v339
        %v418 = vpop.f32.mrb[0].mxu0
        %v419 = vadd.f32 0.0, %v418
        %v420 = vpop.f32.mrb[0].mxu0
        %421 = vdwg.mxu0
        %v422 = vmax.f32 %v414, 0.0
        %v423 = vmax.f32 %v419, 0.0
        %425 = vset.pattern.permute.xlu0 0
        %426 = vperm.xlu0 %425, %v331
        %v427 = vpop.permute.xlu0 %426
        %430 = vset.pattern.permute.xlu0 0
        %431 = vperm.xlu0 %430, %v332
        %v432 = vpop.permute.xlu0 %431
        %v435 = vlaneseq
        %v436 = vshrl.u32 %v435, 7
        %v437 = vsub.s32 0, %v436
        %v438 = vrot.slane %v333, %v437
        %v440 = vmul.f32 %v427, %v438
        %v441 = vmul.f32 %v432, %v438
        %v442 = vadd.f32 %v422, 1e-06
        %v443 = vadd.f32 %v423, 1e-06
        %v444 = vrsqrt.pop %v442
        %v445 = vmul.f32 %v442, %v444
        %vm446 = vcmp.eq.f32.partialorder %v442, inf
        %v447 = vsel %vm446, %v442, %v445
        %vm448 = vcmp.eq.f32.partialorder %v442, 0.0
        %v449 = vand.u32 %v442, 2147483648
        %v450 = vsel %vm448, %v449, %v447
        %v451 = vrsqrt.pop %v443
        %v452 = vmul.f32 %v443, %v451
        %vm453 = vcmp.eq.f32.partialorder %v443, inf
        %v454 = vsel %vm453, %v443, %v452
        %vm455 = vcmp.eq.f32.partialorder %v443, 0.0
        %v456 = vand.u32 %v443, 2147483648
        %v457 = vsel %vm455, %v456, %v454
        %v458 = vmul.f32 %v440, %v450
        %v459 = vmul.f32 %v441, %v457
        %vm460 = vcmask 130048
        %v461 = vsel %vm460, %v458, -inf
        %462 = vmax.xlane.f32.xlu0 %v461
        %v463 = vpop.xlane.xlu0 %462
        %v464 = vsel %vm460, %v459, -inf
        %465 = vmax.xlane.f32.xlu0 %v464
        %v466 = vpop.xlane.xlu0 %465
        %v467 = vsub.f32 1.0, %v440
        %v468 = vsub.f32 1.0, %v441
        %v469 = vmul.f32 %v467, %v463
        %v470 = vmul.f32 %v468, %v466
        %v471 = vadd.f32 %v458, %v469
        %v472 = vadd.f32 %v459, %v470
        %473 = vst.msk [vmem:[%s325] sm:$0xff] %vm460, %v471
        %474 = vst.msk [vmem:[%s325 + $0x8] sm:$0xff] %vm460, %v472
        %s475 = smul.u32 2, %s23
        %p476 = scmp.lt.s32.totalorder %s22, 1
        %s477 = scalar_select %p476, %s22, 1
        %p478 = scmp.lt.s32.totalorder %s475, 1
        %s479 = scalar_select %p478, %s475, 1
        %s480 = smul.addr %s477, 2
        %s481 = sadd.s32 %s479, %s480
        %s482 = smul.addr %s481, 8
        %s483 = scalar_lea.vmem %s4, %s482
        // Predicated region
        $region41: #{ablated_pair_energies.2} parent=35 // pred_check
          %p484 = pneg %p158
        $region42: #{ablated_pair_energies.2} parent=35 // pred_check_branch
          %486 = sbr.rel (%p484) target = $region44
        $region43: #{ablated_pair_energies.2} parent=35 // pred_region
          %s487 = smul.u32 2, %s23
        $region44: #{ablated_pair_energies.2} parent=35 // pred_fallthru
          _
      $region36: #{ablated_pair_energies.2} parent=5 // pred_fallthru
        _
      %p488 = scmp.le.s32.totalorder 2, %s13
      // Predicated region
      $region45: #{ablated_pair_energies.2} parent=5 // pred_check
        %p489 = pneg %p488
      $region46: #{ablated_pair_energies.2} parent=5 // pred_check_branch
        %491 = sbr.rel (%p489) target = $region48
      $region47: #{ablated_pair_energies.2} parent=5 // pred_region
        %s492 = ssub.s32 %s13, 2
        // Predicated region
        $region49: #{ablated_pair_energies.2} parent=47 // pred_check
          %p493 = pneg %p164
        $region50: #{ablated_pair_energies.2} parent=47 // pred_check_branch
          %495 = sbr.rel (%p493) target = $region52
        $region51: #{ablated_pair_energies.2} parent=47 // pred_region
          %s496 = smul.u32 2, %s25
          %p497 = scmp.lt.s32.totalorder %s24, 1
          %s498 = scalar_select %p497, %s24, 1
          %p499 = scmp.lt.s32.totalorder %s496, 1
          %s500 = scalar_select %p499, %s496, 1
          %s501 = smul.addr %s498, 2
          %s502 = sadd.s32 %s500, %s501
          %s503 = smul.addr %s502, 8
          %s504 = scalar_lea.vmem %s4, %s503
        $region52: #{ablated_pair_energies.2} parent=47 // pred_fallthru
          _
      $region48: #{ablated_pair_energies.2} parent=5 // pred_fallthru
        _
    $region6: #{ablated_pair_energies.2} parent=1 // loop_footer
      %s17 = sadd.s32 1, %s13
    $region7: #{ablated_pair_energies.2} parent=1 // loop_footer_branch
      %12 = sbr.rel target = $region3
    $region8: #{ablated_pair_energies.2} parent=1 // loop_exit
      _
    %505 = vsyncpa [#allocation3], 1
    %s506 = scalar_lea.sflag [#allocation3], 1
    %507 = vsyncpa %s506, 1

// kernel: ablated_pair_energies.3
$region0: #{ablated_pair_energies.3}
  #allocation0 [shape = 'u32[]', space=smem, size = 0x4, offset = 0x4, fixed_abs, tag = 'smem constant byte address 0x4 - core index']
  #allocation1 [shape = 'u32[144,128]{1,0:T(1,128)}', space=vmem, size = 0x12000, scoped, tag = 'internal scratch']
  %s0 = inlined_call_operand.vmem [shape: bf16[256,32], index: 0, kind: input, shape index: {}]
  %s1 = inlined_call_operand.vmem [shape: bf16[256,32], index: 1, kind: input, shape index: {}]
  %s2 = inlined_call_operand.vmem [shape: f32[32,512], index: 2, kind: input, shape index: {}]
  %s3 = inlined_call_operand.vmem [shape: bf16[32,512], index: 3, kind: input, shape index: {}]
  %s4 = inlined_call_operand.vmem [shape: bf16[32,512], index: 4, kind: input, shape index: {}]
  %s5 = inlined_call_operand.vmem [shape: f32[1,512], index: 5, kind: input, shape index: {}]
  %s6 = inlined_call_operand.vmem [shape: f32[256,1], index: 6, kind: input, shape index: {}]
  %s7 = inlined_call_operand.vmem [shape: f32[256,512], index: 7, kind: output, shape index: {}]
  %s8 = sld [smem:[#allocation0]]
  $region38: #{ablated_pair_energies.3} parent=0
    _
  %s10 = ssub.s32 1, %s8
  %s11 = scalar_select 0, %s10, %s8
  // Predicated region
  $region2: #{ablated_pair_energies.3} parent=0 // pred_check
    _
  $region3: #{ablated_pair_energies.3} parent=0 // pred_check_branch
    %13 = sbr.rel (0) target = $region5
  $region4: #{ablated_pair_energies.3} parent=0 // pred_region
    _
  $region5: #{ablated_pair_energies.3} parent=0 // pred_fallthru
    _
  // Predicated region
  $region6: #{ablated_pair_energies.3} parent=0 // pred_check
    _
  $region7: #{ablated_pair_energies.3} parent=0 // pred_check_branch
    %15 = sbr.rel (0) target = $region9
  $region8: #{ablated_pair_energies.3} parent=0 // pred_region
    _
  $region9: #{ablated_pair_energies.3} parent=0 // pred_fallthru
    _
  // Predicated region
  $region10: #{ablated_pair_energies.3} parent=0 // pred_check
    _
  $region11: #{ablated_pair_energies.3} parent=0 // pred_check_branch
    %17 = sbr.rel (0) target = $region13
  $region12: #{ablated_pair_energies.3} parent=0 // pred_region
    _
  $region13: #{ablated_pair_energies.3} parent=0 // pred_fallthru
    _
  // Predicated region
  $region14: #{ablated_pair_energies.3} parent=0 // pred_check
    _
  $region15: #{ablated_pair_energies.3} parent=0 // pred_check_branch
    %19 = sbr.rel (0) target = $region17
  $region16: #{ablated_pair_energies.3} parent=0 // pred_region
    _
  $region17: #{ablated_pair_energies.3} parent=0 // pred_fallthru
    _
  // Predicated region
  $region18: #{ablated_pair_energies.3} parent=0 // pred_check
    _
  $region19: #{ablated_pair_energies.3} parent=0 // pred_check_branch
    %21 = sbr.rel (0) target = $region21
  $region20: #{ablated_pair_energies.3} parent=0 // pred_region
    _
  $region21: #{ablated_pair_energies.3} parent=0 // pred_fallthru
    _
  // Predicated region
  $region22: #{ablated_pair_energies.3} parent=0 // pred_check
    _
  $region23: #{ablated_pair_energies.3} parent=0 // pred_check_branch
    %23 = sbr.rel (0) target = $region25
  $region24: #{ablated_pair_energies.3} parent=0 // pred_region
    _
  $region25: #{ablated_pair_energies.3} parent=0 // pred_fallthru
    _
  // Predicated region
  $region26: #{ablated_pair_energies.3} parent=0 // pred_check
    _
  $region27: #{ablated_pair_energies.3} parent=0 // pred_check_branch
    %25 = sbr.rel (0) target = $region29
  $region28: #{ablated_pair_energies.3} parent=0 // pred_region
    _
  $region29: #{ablated_pair_energies.3} parent=0 // pred_fallthru
    _
  %v27 = vld [vmem:[%s0] sm:$0xf]
  %v28 = vld [vmem:[%s0 + $0x4] sm:$0xf]
  %v29 = vld [vmem:[%s0 + $0x8] sm:$0xf]
  %v30 = vld [vmem:[%s0 + $0xc] sm:$0xf]
  %v31 = vld [vmem:[%s0 + $0x10] sm:$0xf]
  %v32 = vld [vmem:[%s0 + $0x14] sm:$0xf]
  %v33 = vld [vmem:[%s0 + $0x18] sm:$0xf]
  %v34 = vld [vmem:[%s0 + $0x1c] sm:$0xf]
  %v35 = vld [vmem:[%s0 + $0x20] sm:$0xf]
  %v36 = vld [vmem:[%s0 + $0x24] sm:$0xf]
  %v37 = vld [vmem:[%s0 + $0x28] sm:$0xf]
  %v38 = vld [vmem:[%s0 + $0x2c] sm:$0xf]
  %v39 = vld [vmem:[%s0 + $0x30] sm:$0xf]
  %v40 = vld [vmem:[%s0 + $0x34] sm:$0xf]
  %v41 = vld [vmem:[%s0 + $0x38] sm:$0xf]
  %v42 = vld [vmem:[%s0 + $0x3c] sm:$0xf]
  %v43 = vld [vmem:[%s0 + $0x40] sm:$0xf]
  %v44 = vld [vmem:[%s0 + $0x44] sm:$0xf]
  %v45 = vld [vmem:[%s0 + $0x48] sm:$0xf]
  %v46 = vld [vmem:[%s0 + $0x4c] sm:$0xf]
  %v47 = vld [vmem:[%s0 + $0x50] sm:$0xf]
  %v48 = vld [vmem:[%s0 + $0x54] sm:$0xf]
  %v49 = vld [vmem:[%s0 + $0x58] sm:$0xf]
  %v50 = vld [vmem:[%s0 + $0x5c] sm:$0xf]
  %v51 = vld [vmem:[%s0 + $0x60] sm:$0xf]
  %v52 = vld [vmem:[%s0 + $0x64] sm:$0xf]
  %v53 = vld [vmem:[%s0 + $0x68] sm:$0xf]
  %v54 = vld [vmem:[%s0 + $0x6c] sm:$0xf]
  %v55 = vld [vmem:[%s0 + $0x70] sm:$0xf]
  %v56 = vld [vmem:[%s0 + $0x74] sm:$0xf]
  %v57 = vld [vmem:[%s0 + $0x78] sm:$0xf]
  %v58 = vld [vmem:[%s0 + $0x7c] sm:$0xf]
  %v59 = vld [vmem:[%s3] sm:$0xff]
  %v60 = vld [vmem:[%s3 + $0x8] sm:$0xff]
  %v61 = vld [vmem:[%s3 + $0x10] sm:$0xff]
  %v62 = vld [vmem:[%s3 + $0x18] sm:$0xff]
  %v63 = vld [vmem:[%s3 + $0x20] sm:$0xff]
  %v64 = vld [vmem:[%s3 + $0x28] sm:$0xff]
  %v65 = vld [vmem:[%s3 + $0x30] sm:$0xff]
  %v66 = vld [vmem:[%s3 + $0x38] sm:$0xff]
  %v67 = vld [vmem:[%s1] sm:$0xf]
  %v68 = vld [vmem:[%s1 + $0x4] sm:$0xf]
  %v69 = vld [vmem:[%s1 + $0x8] sm:$0xf]
  %v70 = vld [vmem:[%s1 + $0xc] sm:$0xf]
  %v71 = vld [vmem:[%s1 + $0x10] sm:$0xf]
  %v72 = vld [vmem:[%s1 + $0x14] sm:$0xf]
  %v73 = vld [vmem:[%s1 + $0x18] sm:$0xf]
  %v74 = vld [vmem:[%s1 + $0x1c] sm:$0xf]
  %v75 = vld [vmem:[%s1 + $0x20] sm:$0xf]
  %v76 = vld [vmem:[%s1 + $0x24] sm:$0xf]
  %v77 = vld [vmem:[%s1 + $0x28] sm:$0xf]
  %v78 = vld [vmem:[%s1 + $0x2c] sm:$0xf]
  %v79 = vld [vmem:[%s1 + $0x30] sm:$0xf]
  %v80 = vld [vmem:[%s1 + $0x34] sm:$0xf]
  %v81 = vld [vmem:[%s1 + $0x38] sm:$0xf]
  %v82 = vld [vmem:[%s1 + $0x3c] sm:$0xf]
  %v83 = vld [vmem:[%s1 + $0x40] sm:$0xf]
  %v84 = vld [vmem:[%s1 + $0x44] sm:$0xf]
  %v85 = vld [vmem:[%s1 + $0x48] sm:$0xf]
  %v86 = vld [vmem:[%s1 + $0x4c] sm:$0xf]
  %v87 = vld [vmem:[%s1 + $0x50] sm:$0xf]
  %v88 = vld [vmem:[%s1 + $0x54] sm:$0xf]
  %v89 = vld [vmem:[%s1 + $0x58] sm:$0xf]
  %v90 = vld [vmem:[%s1 + $0x5c] sm:$0xf]
  %v91 = vld [vmem:[%s1 + $0x60] sm:$0xf]
  %v92 = vld [vmem:[%s1 + $0x64] sm:$0xf]
  %v93 = vld [vmem:[%s1 + $0x68] sm:$0xf]
  %v94 = vld [vmem:[%s1 + $0x6c] sm:$0xf]
  %v95 = vld [vmem:[%s1 + $0x70] sm:$0xf]
  %v96 = vld [vmem:[%s1 + $0x74] sm:$0xf]
  %v97 = vld [vmem:[%s1 + $0x78] sm:$0xf]
  %v98 = vld [vmem:[%s1 + $0x7c] sm:$0xf]
  %v99 = vld [vmem:[%s4] sm:$0xff]
  %v100 = vld [vmem:[%s4 + $0x8] sm:$0xff]
  %v101 = vld [vmem:[%s4 + $0x10] sm:$0xff]
  %v102 = vld [vmem:[%s4 + $0x18] sm:$0xff]
  %v103 = vld [vmem:[%s4 + $0x20] sm:$0xff]
  %v104 = vld [vmem:[%s4 + $0x28] sm:$0xff]
  %v105 = vld [vmem:[%s4 + $0x30] sm:$0xff]
  %v106 = vld [vmem:[%s4 + $0x38] sm:$0xff]
  %v139 = vunpack.c.l.b16 %v67
  %v140 = vunpack.c.l.b16 %v68
  %v141 = vunpack.c.l.b16 %v69
  %v142 = vunpack.c.l.b16 %v70
  %v143 = vunpack.c.l.b16 %v71
  %v144 = vunpack.c.l.b16 %v72
  %v145 = vunpack.c.l.b16 %v73
  %v146 = vunpack.c.l.b16 %v74
  %v147 = vunpack.c.l.b16 %v75
  %v148 = vunpack.c.l.b16 %v76
  %v149 = vunpack.c.l.b16 %v77
  %v150 = vunpack.c.l.b16 %v78
  %v151 = vunpack.c.l.b16 %v79
  %v152 = vunpack.c.l.b16 %v80
  %v153 = vunpack.c.l.b16 %v81
  %v154 = vunpack.c.l.b16 %v82
  %v155 = vunpack.c.l.b16 %v83
  %v156 = vunpack.c.l.b16 %v84
  %v157 = vunpack.c.l.b16 %v85
  %v158 = vunpack.c.l.b16 %v86
  %v159 = vunpack.c.l.b16 %v87
  %v160 = vunpack.c.l.b16 %v88
  %v161 = vunpack.c.l.b16 %v89
  %v162 = vunpack.c.l.b16 %v90
  %v163 = vunpack.c.l.b16 %v91
  %v164 = vunpack.c.l.b16 %v92
  %v165 = vunpack.c.l.b16 %v93
  %v166 = vunpack.c.l.b16 %v94
  %v167 = vunpack.c.l.b16 %v95
  %v168 = vunpack.c.l.b16 %v96
  %v169 = vunpack.c.l.b16 %v97
  %v170 = vunpack.c.l.b16 %v98
  %v171 = vpack.c.b16 %v140, %v139
  %v172 = vpack.c.b16 %v142, %v141
  %v173 = vpack.c.b16 %v144, %v143
  %v174 = vpack.c.b16 %v146, %v145
  %v175 = vpack.c.b16 %v148, %v147
  %v176 = vpack.c.b16 %v150, %v149
  %v177 = vpack.c.b16 %v152, %v151
  %v178 = vpack.c.b16 %v154, %v153
  %v179 = vpack.c.b16 %v156, %v155
  %v180 = vpack.c.b16 %v158, %v157
  %v181 = vpack.c.b16 %v160, %v159
  %v182 = vpack.c.b16 %v162, %v161
  %v183 = vpack.c.b16 %v164, %v163
  %v184 = vpack.c.b16 %v166, %v165
  %v185 = vpack.c.b16 %v168, %v167
  %v186 = vpack.c.b16 %v170, %v169
  %v195 = vunpack.c.l.b16 %v99
  %v196 = vunpack.c.h.b16 %v99
  %v197 = vunpack.c.l.b16 %v100
  %v198 = vunpack.c.h.b16 %v100
  %v199 = vunpack.c.l.b16 %v101
  %v200 = vunpack.c.h.b16 %v101
  %v201 = vunpack.c.l.b16 %v102
  %v202 = vunpack.c.h.b16 %v102
  %v203 = vunpack.c.l.b16 %v103
  %v204 = vunpack.c.h.b16 %v103
  %v205 = vunpack.c.l.b16 %v104
  %v206 = vunpack.c.h.b16 %v104
  %v207 = vunpack.c.l.b16 %v105
  %v208 = vunpack.c.h.b16 %v105
  %v209 = vunpack.c.l.b16 %v106
  %v210 = vunpack.c.h.b16 %v106
  %v211 = vpack.c.b16 %v199, %v195
  %v212 = vpack.c.b16 %v200, %v196
  %v213 = vpack.c.b16 %v201, %v197
  %v214 = vpack.c.b16 %v202, %v198
  %v215 = vpack.c.b16 %v207, %v203
  %v216 = vpack.c.b16 %v208, %v204
  %v217 = vpack.c.b16 %v209, %v205
  %v218 = vpack.c.b16 %v210, %v206
  %vm227 = vcmask 261120
  %v229 = vsel %vm227, %v171, 0
  %v232 = vsel %vm227, %v172, 0
  %v235 = vsel %vm227, %v173, 0
  %v238 = vsel %vm227, %v174, 0
  %v241 = vsel %vm227, %v175, 0
  %v244 = vsel %vm227, %v176, 0
  %v247 = vsel %vm227, %v177, 0
  %v250 = vsel %vm227, %v178, 0
  %v253 = vsel %vm227, %v179, 0
  %v256 = vsel %vm227, %v180, 0
  %v259 = vsel %vm227, %v181, 0
  %v262 = vsel %vm227, %v182, 0
  %v265 = vsel %vm227, %v183, 0
  %v268 = vsel %vm227, %v184, 0
  %v271 = vsel %vm227, %v185, 0
  %v274 = vsel %vm227, %v186, 0
  %276 = vmatprep.subr.bf16.mxu0 %v212
  %277 = vmatpush1.bf16.msra.mxu0 %v211
  %278 = vmatprep.subr.bf16.mxu0 %v216
  %279 = vmatpush1.bf16.msra.mxu0 %v215
  %280 = vmatprep.subr.bf16.mxu0 0
  %281 = vmatpush1.bf16.msra.mxu0 0
  %282 = vmatprep.subr.bf16.mxu0 0
  %283 = vmatpush1.bf16.msra.mxu0 0
  %284 = vmatprep.subr.bf16.mxu0 0
  %285 = vmatpush1.bf16.msra.mxu0 0
  %286 = vmatprep.subr.bf16.mxu0 0
  %287 = vmatpush1.bf16.msra.mxu0 0
  %288 = vmatprep.subr.bf16.mxu0 0
  %289 = vmatpush1.bf16.msra.mxu0 0
  %290 = vmatprep.subr.bf16.mxu0 0
  %291 = vmatpush1.bf16.msra.mxu0 0
  %292 = vmatprep.subr.bf16.mxu0 0
  %293 = vmatpush1.bf16.msra.mxu0 0
  %294 = vmatprep.subr.bf16.mxu0 0
  %295 = vmatpush1.bf16.msra.mxu0 0
  %296 = vmatprep.subr.bf16.mxu0 0
  %297 = vmatpush1.bf16.msra.mxu0 0
  %298 = vmatprep.subr.bf16.mxu0 0
  %299 = vmatpush1.bf16.msra.mxu0 0
  %300 = vmatprep.subr.bf16.mxu0 0
  %301 = vmatpush1.bf16.msra.mxu0 0
  %302 = vmatprep.subr.bf16.mxu0 0
  %303 = vmatpush1.bf16.msra.mxu0 0
  %304 = vmatprep.subr.bf16.mxu0 0
  %305 = vmatpush1.bf16.msra.mxu0 0
  %306 = vmatprep.subr.bf16.mxu0 0
  %307 = vmatpush1.bf16.msra.mxu0 0
  %308 = vmatprep.mubr.bf16.mxu0 0
  %309 = vmatmul.mubr.bf16.gmra.mrb[0].mxu0 %v229
  %v310 = vpop.f32.mrb[0].mxu0
  %v311 = vadd.f32 0.0, %v310
  %v312 = vpop.f32.mrb[0].mxu0
  %v313 = vadd.f32 0.0, %v312
  %v314 = vpop.f32.mrb[0].mxu0
  %v315 = vadd.f32 0.0, %v314
  %v316 = vpop.f32.mrb[0].mxu0
  %v317 = vadd.f32 0.0, %v316
  %318 = vmatprep.mubr.bf16.mxu0 0
  %319 = vmatmul.mubr.bf16.gmra.mrb[0].mxu0 %v232
  %v320 = vpop.f32.mrb[0].mxu0
  %v321 = vadd.f32 0.0, %v320
  %v322 = vpop.f32.mrb[0].mxu0
  %v323 = vadd.f32 0.0, %v322
  %v324 = vpop.f32.mrb[0].mxu0
  %v325 = vadd.f32 0.0, %v324
  %v326 = vpop.f32.mrb[0].mxu0
  %v327 = vadd.f32 0.0, %v326
  %328 = vmatprep.mubr.bf16.mxu0 0
  %329 = vmatmul.mubr.bf16.gmra.mrb[0].mxu0 %v235
  %v330 = vpop.f32.mrb[0].mxu0
  %v331 = vadd.f32 0.0, %v330
  %v332 = vpop.f32.mrb[0].mxu0
  %v333 = vadd.f32 0.0, %v332
  %v334 = vpop.f32.mrb[0].mxu0
  %v335 = vadd.f32 0.0, %v334
  %v336 = vpop.f32.mrb[0].mxu0
  %v337 = vadd.f32 0.0, %v336
  %338 = vmatprep.mubr.bf16.mxu0 0
  %339 = vmatmul.mubr.bf16.gmra.mrb[0].mxu0 %v238
  %v340 = vpop.f32.mrb[0].mxu0
  %v341 = vadd.f32 0.0, %v340
  %v342 = vpop.f32.mrb[0].mxu0
  %v343 = vadd.f32 0.0, %v342
  %v344 = vpop.f32.mrb[0].mxu0
  %v345 = vadd.f32 0.0, %v344
  %v346 = vpop.f32.mrb[0].mxu0
  %v347 = vadd.f32 0.0, %v346
  %348 = vmatprep.mubr.bf16.mxu0 0
  %349 = vmatmul.mubr.bf16.gmra.mrb[0].mxu0 %v241
  %v350 = vpop.f32.mrb[0].mxu0
  %v351 = vadd.f32 0.0, %v350
  %v352 = vpop.f32.mrb[0].mxu0
  %v353 = vadd.f32 0.0, %v352
  %v354 = vpop.f32.mrb[0].mxu0
  %v355 = vadd.f32 0.0, %v354
  %v356 = vpop.f32.mrb[0].mxu0
  %v357 = vadd.f32 0.0, %v356
  %358 = vmatprep.mubr.bf16.mxu0 0
  %359 = vmatmul.mubr.bf16.gmra.mrb[0].mxu0 %v244
  %v360 = vpop.f32.mrb[0].mxu0
  %v361 = vadd.f32 0.0, %v360
  %v362 = vpop.f32.mrb[0].mxu0
  %v363 = vadd.f32 0.0, %v362
  %v364 = vpop.f32.mrb[0].mxu0
  %v365 = vadd.f32 0.0, %v364
  %v366 = vpop.f32.mrb[0].mxu0
  %v367 = vadd.f32 0.0, %v366
  %368 = vmatprep.mubr.bf16.mxu0 0
  %369 = vmatmul.mubr.bf16.gmra.mrb[0].mxu0 %v247
  %v370 = vpop.f32.mrb[0].mxu0
  %v371 = vadd.f32 0.0, %v370
  %v372 = vpop.f32.mrb[0].mxu0
  %v373 = vadd.f32 0.0, %v372
  %v374 = vpop.f32.mrb[0].mxu0
  %v375 = vadd.f32 0.0, %v374
  %v376 = vpop.f32.mrb[0].mxu0
  %v377 = vadd.f32 0.0, %v376
  %378 = vmatprep.mubr.bf16.mxu0 0
  %379 = vmatmul.mubr.bf16.gmra.mrb[0].mxu0 %v250
  %v380 = vpop.f32.mrb[0].mxu0
  %v381 = vadd.f32 0.0, %v380
  %v382 = vpop.f32.mrb[0].mxu0
  %v383 = vadd.f32 0.0, %v382
  %v384 = vpop.f32.mrb[0].mxu0
  %v385 = vadd.f32 0.0, %v384
  %v386 = vpop.f32.mrb[0].mxu0
  %v387 = vadd.f32 0.0, %v386
  %388 = vmatprep.mubr.bf16.mxu0 0
  %389 = vmatmul.mubr.bf16.gmra.mrb[0].mxu0 %v253
  %v390 = vpop.f32.mrb[0].mxu0
  %v391 = vadd.f32 0.0, %v390
  %v392 = vpop.f32.mrb[0].mxu0
  %v393 = vadd.f32 0.0, %v392
  %v394 = vpop.f32.mrb[0].mxu0
  %v395 = vadd.f32 0.0, %v394
  %v396 = vpop.f32.mrb[0].mxu0
  %v397 = vadd.f32 0.0, %v396
  %398 = vmatprep.mubr.bf16.mxu0 0
  %399 = vmatmul.mubr.bf16.gmra.mrb[0].mxu0 %v256
  %v400 = vpop.f32.mrb[0].mxu0
  %v401 = vadd.f32 0.0, %v400
  %v402 = vpop.f32.mrb[0].mxu0
  %v403 = vadd.f32 0.0, %v402
  %v404 = vpop.f32.mrb[0].mxu0
  %v405 = vadd.f32 0.0, %v404
  %v406 = vpop.f32.mrb[0].mxu0
  %v407 = vadd.f32 0.0, %v406
  %408 = vmatprep.mubr.bf16.mxu0 0
  %409 = vmatmul.mubr.bf16.gmra.mrb[0].mxu0 %v259
  %v410 = vpop.f32.mrb[0].mxu0
  %v411 = vadd.f32 0.0, %v410
  %v412 = vpop.f32.mrb[0].mxu0
  %v413 = vadd.f32 0.0, %v412
  %v414 = vpop.f32.mrb[0].mxu0
  %v415 = vadd.f32 0.0, %v414
  %v416 = vpop.f32.mrb[0].mxu0
  %v417 = vadd.f32 0.0, %v416
  %418 = vmatprep.mubr.bf16.mxu0 0
  %419 = vmatmul.mubr.bf16.gmra.mrb[0].mxu0 %v262
  %v420 = vpop.f32.mrb[0].mxu0
  %v421 = vadd.f32 0.0, %v420
  %v422 = vpop.f32.mrb[0].mxu0
  %v423 = vadd.f32 0.0, %v422
  %v424 = vpop.f32.mrb[0].mxu0
  %v425 = vadd.f32 0.0, %v424
  %v426 = vpop.f32.mrb[0].mxu0
  %v427 = vadd.f32 0.0, %v426
  %428 = vmatprep.mubr.bf16.mxu0 0
  %429 = vmatmul.mubr.bf16.gmra.mrb[0].mxu0 %v265
  %v430 = vpop.f32.mrb[0].mxu0
  %v431 = vadd.f32 0.0, %v430
  %v432 = vpop.f32.mrb[0].mxu0
  %v433 = vadd.f32 0.0, %v432
  %v434 = vpop.f32.mrb[0].mxu0
  %v435 = vadd.f32 0.0, %v434
  %v436 = vpop.f32.mrb[0].mxu0
  %v437 = vadd.f32 0.0, %v436
  %438 = vmatprep.mubr.bf16.mxu0 0
  %439 = vmatmul.mubr.bf16.gmra.mrb[0].mxu0 %v268
  %v440 = vpop.f32.mrb[0].mxu0
  %v441 = vadd.f32 0.0, %v440
  %v442 = vpop.f32.mrb[0].mxu0
  %v443 = vadd.f32 0.0, %v442
  %v444 = vpop.f32.mrb[0].mxu0
  %v445 = vadd.f32 0.0, %v444
  %v446 = vpop.f32.mrb[0].mxu0
  %v447 = vadd.f32 0.0, %v446
  %448 = vmatprep.mubr.bf16.mxu0 0
  %449 = vmatmul.mubr.bf16.gmra.mrb[0].mxu0 %v271
  %v450 = vpop.f32.mrb[0].mxu0
  %v451 = vadd.f32 0.0, %v450
  %v452 = vpop.f32.mrb[0].mxu0
  %v453 = vadd.f32 0.0, %v452
  %v454 = vpop.f32.mrb[0].mxu0
  %v455 = vadd.f32 0.0, %v454
  %v456 = vpop.f32.mrb[0].mxu0
  %v457 = vadd.f32 0.0, %v456
  %458 = vmatprep.mubr.bf16.mxu0 0
  %459 = vmatmul.mubr.bf16.gmra.mrb[0].mxu0 %v274
  %v460 = vpop.f32.mrb[0].mxu0
  %v461 = vadd.f32 0.0, %v460
  %v462 = vpop.f32.mrb[0].mxu0
  %v463 = vadd.f32 0.0, %v462
  %v464 = vpop.f32.mrb[0].mxu0
  %v465 = vadd.f32 0.0, %v464
  %v466 = vpop.f32.mrb[0].mxu0
  %v467 = vadd.f32 0.0, %v466
  %468 = vdwg.mxu0
  %469 = vmatprep.subr.bf16.mxu0 %v214
  %470 = vmatpush1.bf16.msra.mxu0 %v213
  %471 = vmatprep.subr.bf16.mxu0 %v218
  %472 = vmatpush1.bf16.msra.mxu0 %v217
  %473 = vmatprep.subr.bf16.mxu0 0
  %474 = vmatpush1.bf16.msra.mxu0 0
  %475 = vmatprep.subr.bf16.mxu0 0
  %476 = vmatpush1.bf16.msra.mxu0 0
  %477 = vmatprep.subr.bf16.mxu0 0
  %478 = vmatpush1.bf16.msra.mxu0 0
  %479 = vmatprep.subr.bf16.mxu0 0
  %480 = vmatpush1.bf16.msra.mxu0 0
  %481 = vmatprep.subr.bf16.mxu0 0
  %482 = vmatpush1.bf16.msra.mxu0 0
  %483 = vmatprep.subr.bf16.mxu0 0
  %484 = vmatpush1.bf16.msra.mxu0 0
  %485 = vmatprep.subr.bf16.mxu0 0
  %486 = vmatpush1.bf16.msra.mxu0 0
  %487 = vmatprep.subr.bf16.mxu0 0
  %488 = vmatpush1.bf16.msra.mxu0 0
  %489 = vmatprep.subr.bf16.mxu0 0
  %490 = vmatpush1.bf16.msra.mxu0 0
  %491 = vmatprep.subr.bf16.mxu0 0
  %492 = vmatpush1.bf16.msra.mxu0 0
  %493 = vmatprep.subr.bf16.mxu0 0
  %494 = vmatpush1.bf16.msra.mxu0 0
  %495 = vmatprep.subr.bf16.mxu0 0
  %496 = vmatpush1.bf16.msra.mxu0 0
  %497 = vmatprep.subr.bf16.mxu0 0
  %498 = vmatpush1.bf16.msra.mxu0 0
  %499 = vmatprep.subr.bf16.mxu0 0
  %500 = vmatpush1.bf16.msra.mxu0 0
  %501 = vmatprep.mubr.bf16.mxu0 0
  %502 = vmatmul.mubr.bf16.gmra.mrb[0].mxu0 %v229
  %v503 = vpop.f32.mrb[0].mxu0
  %v504 = vadd.f32 0.0, %v503
  %v505 = vpop.f32.mrb[0].mxu0
  %v506 = vadd.f32 0.0, %v505
  %v507 = vpop.f32.mrb[0].mxu0
  %v508 = vadd.f32 0.0, %v507
  %v509 = vpop.f32.mrb[0].mxu0
  %v510 = vadd.f32 0.0, %v509
  %511 = vmatprep.mubr.bf16.mxu0 0
  %512 = vmatmul.mubr.bf16.gmra.mrb[0].mxu0 %v232
  %v513 = vpop.f32.mrb[0].mxu0
  %v514 = vadd.f32 0.0, %v513
  %v515 = vpop.f32.mrb[0].mxu0
  %v516 = vadd.f32 0.0, %v515
  %v517 = vpop.f32.mrb[0].mxu0
  %v518 = vadd.f32 0.0, %v517
  %v519 = vpop.f32.mrb[0].mxu0
  %v520 = vadd.f32 0.0, %v519
  %521 = vmatprep.mubr.bf16.mxu0 0
  %522 = vmatmul.mubr.bf16.gmra.mrb[0].mxu0 %v235
  %v523 = vpop.f32.mrb[0].mxu0
  %v524 = vadd.f32 0.0, %v523
  %v525 = vpop.f32.mrb[0].mxu0
  %v526 = vadd.f32 0.0, %v525
  %v527 = vpop.f32.mrb[0].mxu0
  %v528 = vadd.f32 0.0, %v527
  %v529 = vpop.f32.mrb[0].mxu0
  %v530 = vadd.f32 0.0, %v529
  %531 = vmatprep.mubr.bf16.mxu0 0
  %532 = vmatmul.mubr.bf16.gmra.mrb[0].mxu0 %v238
  %v533 = vpop.f32.mrb[0].mxu0
  %v534 = vadd.f32 0.0, %v533
  %v535 = vpop.f32.mrb[0].mxu0
  %v536 = vadd.f32 0.0, %v535
  %v537 = vpop.f32.mrb[0].mxu0
  %v538 = vadd.f32 0.0, %v537
  %v539 = vpop.f32.mrb[0].mxu0
  %v540 = vadd.f32 0.0, %v539
  %541 = vmatprep.mubr.bf16.mxu0 0
  %542 = vmatmul.mubr.bf16.gmra.mrb[0].mxu0 %v241
  %v543 = vpop.f32.mrb[0].mxu0
  %v544 = vadd.f32 0.0, %v543
  %v545 = vpop.f32.mrb[0].mxu0
  %v546 = vadd.f32 0.0, %v545
  %v547 = vpop.f32.mrb[0].mxu0
  %v548 = vadd.f32 0.0, %v547
  %v549 = vpop.f32.mrb[0].mxu0
  %v550 = vadd.f32 0.0, %v549
  %551 = vmatprep.mubr.bf16.mxu0 0
  %552 = vmatmul.mubr.bf16.gmra.mrb[0].mxu0 %v244
  %v553 = vpop.f32.mrb[0].mxu0
  %v554 = vadd.f32 0.0, %v553
  %v555 = vpop.f32.mrb[0].mxu0
  %v556 = vadd.f32 0.0, %v555
  %v557 = vpop.f32.mrb[0].mxu0
  %v558 = vadd.f32 0.0, %v557
  %v559 = vpop.f32.mrb[0].mxu0
  %v560 = vadd.f32 0.0, %v559
  %561 = vmatprep.mubr.bf16.mxu0 0
  %562 = vmatmul.mubr.bf16.gmra.mrb[0].mxu0 %v247
  %v563 = vpop.f32.mrb[0].mxu0
  %v564 = vadd.f32 0.0, %v563
  %v565 = vpop.f32.mrb[0].mxu0
  %v566 = vadd.f32 0.0, %v565
  %v567 = vpop.f32.mrb[0].mxu0
  %v568 = vadd.f32 0.0, %v567
  %v569 = vpop.f32.mrb[0].mxu0
  %v570 = vadd.f32 0.0, %v569
  %571 = vmatprep.mubr.bf16.mxu0 0
  %572 = vmatmul.mubr.bf16.gmra.mrb[0].mxu0 %v250
  %v573 = vpop.f32.mrb[0].mxu0
  %v574 = vadd.f32 0.0, %v573
  %v575 = vpop.f32.mrb[0].mxu0
  %v576 = vadd.f32 0.0, %v575
  %v577 = vpop.f32.mrb[0].mxu0
  %v578 = vadd.f32 0.0, %v577
  %v579 = vpop.f32.mrb[0].mxu0
  %v580 = vadd.f32 0.0, %v579
  %581 = vmatprep.mubr.bf16.mxu0 0
  %582 = vmatmul.mubr.bf16.gmra.mrb[0].mxu0 %v253
  %v583 = vpop.f32.mrb[0].mxu0
  %v584 = vadd.f32 0.0, %v583
  %v585 = vpop.f32.mrb[0].mxu0
  %v586 = vadd.f32 0.0, %v585
  %v587 = vpop.f32.mrb[0].mxu0
  %v588 = vadd.f32 0.0, %v587
  %v589 = vpop.f32.mrb[0].mxu0
  %v590 = vadd.f32 0.0, %v589
  %591 = vmatprep.mubr.bf16.mxu0 0
  %592 = vmatmul.mubr.bf16.gmra.mrb[0].mxu0 %v256
  %v593 = vpop.f32.mrb[0].mxu0
  %v594 = vadd.f32 0.0, %v593
  %v595 = vpop.f32.mrb[0].mxu0
  %v596 = vadd.f32 0.0, %v595
  %v597 = vpop.f32.mrb[0].mxu0
  %v598 = vadd.f32 0.0, %v597
  %v599 = vpop.f32.mrb[0].mxu0
  %v600 = vadd.f32 0.0, %v599
  %601 = vmatprep.mubr.bf16.mxu0 0
  %602 = vmatmul.mubr.bf16.gmra.mrb[0].mxu0 %v259
  %v603 = vpop.f32.mrb[0].mxu0
  %v604 = vadd.f32 0.0, %v603
  %v605 = vpop.f32.mrb[0].mxu0
  %v606 = vadd.f32 0.0, %v605
  %v607 = vpop.f32.mrb[0].mxu0
  %v608 = vadd.f32 0.0, %v607
  %v609 = vpop.f32.mrb[0].mxu0
  %v610 = vadd.f32 0.0, %v609
  %611 = vmatprep.mubr.bf16.mxu0 0
  %612 = vmatmul.mubr.bf16.gmra.mrb[0].mxu0 %v262
  %v613 = vpop.f32.mrb[0].mxu0
  %v614 = vadd.f32 0.0, %v613
  %v615 = vpop.f32.mrb[0].mxu0
  %v616 = vadd.f32 0.0, %v615
  %v617 = vpop.f32.mrb[0].mxu0
  %v618 = vadd.f32 0.0, %v617
  %v619 = vpop.f32.mrb[0].mxu0
  %v620 = vadd.f32 0.0, %v619
  %621 = vmatprep.mubr.bf16.mxu0 0
  %622 = vmatmul.mubr.bf16.gmra.mrb[0].mxu0 %v265
  %v623 = vpop.f32.mrb[0].mxu0
  %v624 = vadd.f32 0.0, %v623
  %v625 = vpop.f32.mrb[0].mxu0
  %v626 = vadd.f32 0.0, %v625
  %v627 = vpop.f32.mrb[0].mxu0
  %v628 = vadd.f32 0.0, %v627
  %v629 = vpop.f32.mrb[0].mxu0
  %v630 = vadd.f32 0.0, %v629
  %631 = vmatprep.mubr.bf16.mxu0 0
  %632 = vmatmul.mubr.bf16.gmra.mrb[0].mxu0 %v268
  %v633 = vpop.f32.mrb[0].mxu0
  %v634 = vadd.f32 0.0, %v633
  %v635 = vpop.f32.mrb[0].mxu0
  %v636 = vadd.f32 0.0, %v635
  %v637 = vpop.f32.mrb[0].mxu0
  %v638 = vadd.f32 0.0, %v637
  %v639 = vpop.f32.mrb[0].mxu0
  %v640 = vadd.f32 0.0, %v639
  %641 = vmatprep.mubr.bf16.mxu0 0
  %642 = vmatmul.mubr.bf16.gmra.mrb[0].mxu0 %v271
  %v643 = vpop.f32.mrb[0].mxu0
  %v644 = vadd.f32 0.0, %v643
  %v645 = vpop.f32.mrb[0].mxu0
  %v646 = vadd.f32 0.0, %v645
  %v647 = vpop.f32.mrb[0].mxu0
  %v648 = vadd.f32 0.0, %v647
  %v649 = vpop.f32.mrb[0].mxu0
  %v650 = vadd.f32 0.0, %v649
  %651 = vmatprep.mubr.bf16.mxu0 0
  %652 = vmatmul.mubr.bf16.gmra.mrb[0].mxu0 %v274
  %v653 = vpop.f32.mrb[0].mxu0
  %v654 = vadd.f32 0.0, %v653
  %v655 = vpop.f32.mrb[0].mxu0
  %v656 = vadd.f32 0.0, %v655
  %v657 = vpop.f32.mrb[0].mxu0
  %v658 = vadd.f32 0.0, %v657
  %v659 = vpop.f32.mrb[0].mxu0
  %v660 = vadd.f32 0.0, %v659
  %661 = vdwg.mxu0
  %v694 = vunpack.c.l.b16 %v27
  %v695 = vunpack.c.l.b16 %v28
  %v696 = vunpack.c.l.b16 %v29
  %v697 = vunpack.c.l.b16 %v30
  %v698 = vunpack.c.l.b16 %v31
  %v699 = vunpack.c.l.b16 %v32
  %v700 = vunpack.c.l.b16 %v33
  %v701 = vunpack.c.l.b16 %v34
  %v702 = vunpack.c.l.b16 %v35
  %v703 = vunpack.c.l.b16 %v36
  %v704 = vunpack.c.l.b16 %v37
  %v705 = vunpack.c.l.b16 %v38
  %v706 = vunpack.c.l.b16 %v39
  %v707 = vunpack.c.l.b16 %v40
  %v708 = vunpack.c.l.b16 %v41
  %v709 = vunpack.c.l.b16 %v42
  %v710 = vunpack.c.l.b16 %v43
  %v711 = vunpack.c.l.b16 %v44
  %v712 = vunpack.c.l.b16 %v45
  %v713 = vunpack.c.l.b16 %v46
  %v714 = vunpack.c.l.b16 %v47
  %v715 = vunpack.c.l.b16 %v48
  %v716 = vunpack.c.l.b16 %v49
  %v717 = vunpack.c.l.b16 %v50
  %v718 = vunpack.c.l.b16 %v51
  %v719 = vunpack.c.l.b16 %v52
  %v720 = vunpack.c.l.b16 %v53
  %v721 = vunpack.c.l.b16 %v54
  %v722 = vunpack.c.l.b16 %v55
  %v723 = vunpack.c.l.b16 %v56
  %v724 = vunpack.c.l.b16 %v57
  %v725 = vunpack.c.l.b16 %v58
  %v726 = vpack.c.b16 %v695, %v694
  %v727 = vpack.c.b16 %v697, %v696
  %v728 = vpack.c.b16 %v699, %v698
  %v729 = vpack.c.b16 %v701, %v700
  %v730 = vpack.c.b16 %v703, %v702
  %v731 = vpack.c.b16 %v705, %v704
  %v732 = vpack.c.b16 %v707, %v706
  %v733 = vpack.c.b16 %v709, %v708
  %v734 = vpack.c.b16 %v711, %v710
  %v735 = vpack.c.b16 %v713, %v712
  %v736 = vpack.c.b16 %v715, %v714
  %v737 = vpack.c.b16 %v717, %v716
  %v738 = vpack.c.b16 %v719, %v718
  %v739 = vpack.c.b16 %v721, %v720
  %v740 = vpack.c.b16 %v723, %v722
  %v741 = vpack.c.b16 %v725, %v724
  %v750 = vunpack.c.l.b16 %v59
  %v751 = vunpack.c.h.b16 %v59
  %v752 = vunpack.c.l.b16 %v60
  %v753 = vunpack.c.h.b16 %v60
  %v754 = vunpack.c.l.b16 %v61
  %v755 = vunpack.c.h.b16 %v61
  %v756 = vunpack.c.l.b16 %v62
  %v757 = vunpack.c.h.b16 %v62
  %v758 = vunpack.c.l.b16 %v63
  %v759 = vunpack.c.h.b16 %v63
  %v760 = vunpack.c.l.b16 %v64
  %v761 = vunpack.c.h.b16 %v64
  %v762 = vunpack.c.l.b16 %v65
  %v763 = vunpack.c.h.b16 %v65
  %v764 = vunpack.c.l.b16 %v66
  %v765 = vunpack.c.h.b16 %v66
  %v766 = vpack.c.b16 %v754, %v750
  %v767 = vpack.c.b16 %v755, %v751
  %v768 = vpack.c.b16 %v756, %v752
  %v769 = vpack.c.b16 %v757, %v753
  %v770 = vpack.c.b16 %v762, %v758
  %v771 = vpack.c.b16 %v763, %v759
  %v772 = vpack.c.b16 %v764, %v760
  %v773 = vpack.c.b16 %v765, %v761
  %v783 = vsel %vm227, %v726, 0
  %v786 = vsel %vm227, %v727, 0
  %v789 = vsel %vm227, %v728, 0
  %v792 = vsel %vm227, %v729, 0
  %v795 = vsel %vm227, %v730, 0
  %v798 = vsel %vm227, %v731, 0
  %v801 = vsel %vm227, %v732, 0
  %v804 = vsel %vm227, %v733, 0
  %v807 = vsel %vm227, %v734, 0
  %v810 = vsel %vm227, %v735, 0
  %v813 = vsel %vm227, %v736, 0
  %v816 = vsel %vm227, %v737, 0
  %v819 = vsel %vm227, %v738, 0
  %v822 = vsel %vm227, %v739, 0
  %v825 = vsel %vm227, %v740, 0
  %v828 = vsel %vm227, %v741, 0
  %830 = vmatprep.subr.bf16.mxu0 %v767
  %831 = vmatpush1.bf16.msra.mxu0 %v766
  %832 = vmatprep.subr.bf16.mxu0 %v771
  %833 = vmatpush1.bf16.msra.mxu0 %v770
  %834 = vmatprep.subr.bf16.mxu0 0
  %835 = vmatpush1.bf16.msra.mxu0 0
  %836 = vmatprep.subr.bf16.mxu0 0
  %837 = vmatpush1.bf16.msra.mxu0 0
  %838 = vmatprep.subr.bf16.mxu0 0
  %839 = vmatpush1.bf16.msra.mxu0 0
  %840 = vmatprep.subr.bf16.mxu0 0
  %841 = vmatpush1.bf16.msra.mxu0 0
  %842 = vmatprep.subr.bf16.mxu0 0
  %843 = vmatpush1.bf16.msra.mxu0 0
  %844 = vmatprep.subr.bf16.mxu0 0
  %845 = vmatpush1.bf16.msra.mxu0 0
  %846 = vmatprep.subr.bf16.mxu0 0
  %847 = vmatpush1.bf16.msra.mxu0 0
  %848 = vmatprep.subr.bf16.mxu0 0
  %849 = vmatpush1.bf16.msra.mxu0 0
  %850 = vmatprep.subr.bf16.mxu0 0
  %851 = vmatpush1.bf16.msra.mxu0 0
  %852 = vmatprep.subr.bf16.mxu0 0
  %853 = vmatpush1.bf16.msra.mxu0 0
  %854 = vmatprep.subr.bf16.mxu0 0
  %855 = vmatpush1.bf16.msra.mxu0 0
  %856 = vmatprep.subr.bf16.mxu0 0
  %857 = vmatpush1.bf16.msra.mxu0 0
  %858 = vmatprep.subr.bf16.mxu0 0
  %859 = vmatpush1.bf16.msra.mxu0 0
  %860 = vmatprep.subr.bf16.mxu0 0
  %861 = vmatpush1.bf16.msra.mxu0 0
  %862 = vmatprep.mubr.bf16.mxu0 0
  %863 = vmatmul.mubr.bf16.gmra.mrb[0].mxu0 %v783
  %v864 = vpop.f32.mrb[0].mxu0
  %v865 = vadd.f32 %v311, %v864
  %v866 = vpop.f32.mrb[0].mxu0
  %v867 = vadd.f32 %v313, %v866
  %v868 = vpop.f32.mrb[0].mxu0
  %v869 = vadd.f32 %v315, %v868
  %v870 = vpop.f32.mrb[0].mxu0
  %v871 = vadd.f32 %v317, %v870
  %872 = vmatprep.mubr.bf16.mxu0 0
  %873 = vmatmul.mubr.bf16.gmra.mrb[0].mxu0 %v786
  %v874 = vpop.f32.mrb[0].mxu0
  %v875 = vadd.f32 %v321, %v874
  %v876 = vpop.f32.mrb[0].mxu0
  %v877 = vadd.f32 %v323, %v876
  %v878 = vpop.f32.mrb[0].mxu0
  %v879 = vadd.f32 %v325, %v878
  %v880 = vpop.f32.mrb[0].mxu0
  %v881 = vadd.f32 %v327, %v880
  %882 = vmatprep.mubr.bf16.mxu0 0
  %883 = vmatmul.mubr.bf16.gmra.mrb[0].mxu0 %v789
  %v884 = vpop.f32.mrb[0].mxu0
  %v885 = vadd.f32 %v331, %v884
  %v886 = vpop.f32.mrb[0].mxu0
  %v887 = vadd.f32 %v333, %v886
  %v888 = vpop.f32.mrb[0].mxu0
  %v889 = vadd.f32 %v335, %v888
  %v890 = vpop.f32.mrb[0].mxu0
  %v891 = vadd.f32 %v337, %v890
  %892 = vmatprep.mubr.bf16.mxu0 0
  %893 = vmatmul.mubr.bf16.gmra.mrb[0].mxu0 %v792
  %v894 = vpop.f32.mrb[0].mxu0
  %v895 = vadd.f32 %v341, %v894
  %v896 = vpop.f32.mrb[0].mxu0
  %v897 = vadd.f32 %v343, %v896
  %v898 = vpop.f32.mrb[0].mxu0
  %v899 = vadd.f32 %v345, %v898
  %v900 = vpop.f32.mrb[0].mxu0
  %v901 = vadd.f32 %v347, %v900
  %902 = vmatprep.mubr.bf16.mxu0 0
  %903 = vmatmul.mubr.bf16.gmra.mrb[0].mxu0 %v795
  %v904 = vpop.f32.mrb[0].mxu0
  %v905 = vadd.f32 %v351, %v904
  %v906 = vpop.f32.mrb[0].mxu0
  %v907 = vadd.f32 %v353, %v906
  %v908 = vpop.f32.mrb[0].mxu0
  %v909 = vadd.f32 %v355, %v908
  %v910 = vpop.f32.mrb[0].mxu0
  %v911 = vadd.f32 %v357, %v910
  %912 = vmatprep.mubr.bf16.mxu0 0
  %913 = vmatmul.mubr.bf16.gmra.mrb[0].mxu0 %v798
  %v914 = vpop.f32.mrb[0].mxu0
  %v915 = vadd.f32 %v361, %v914
  %v916 = vpop.f32.mrb[0].mxu0
  %v917 = vadd.f32 %v363, %v916
  %v918 = vpop.f32.mrb[0].mxu0
  %v919 = vadd.f32 %v365, %v918
  %v920 = vpop.f32.mrb[0].mxu0
  %v921 = vadd.f32 %v367, %v920
  %922 = vmatprep.mubr.bf16.mxu0 0
  %923 = vmatmul.mubr.bf16.gmra.mrb[0].mxu0 %v801
  %v924 = vpop.f32.mrb[0].mxu0
  %v925 = vadd.f32 %v371, %v924
  %v926 = vpop.f32.mrb[0].mxu0
  %v927 = vadd.f32 %v373, %v926
  %v928 = vpop.f32.mrb[0].mxu0
  %v929 = vadd.f32 %v375, %v928
  %v930 = vpop.f32.mrb[0].mxu0
  %v931 = vadd.f32 %v377, %v930
  %932 = vmatprep.mubr.bf16.mxu0 0
  %933 = vmatmul.mubr.bf16.gmra.mrb[0].mxu0 %v804
  %v934 = vpop.f32.mrb[0].mxu0
  %v935 = vadd.f32 %v381, %v934
  %v936 = vpop.f32.mrb[0].mxu0
  %v937 = vadd.f32 %v383, %v936
  %v938 = vpop.f32.mrb[0].mxu0
  %v939 = vadd.f32 %v385, %v938
  %v940 = vpop.f32.mrb[0].mxu0
  %v941 = vadd.f32 %v387, %v940
  %942 = vmatprep.mubr.bf16.mxu0 0
  %943 = vmatmul.mubr.bf16.gmra.mrb[0].mxu0 %v807
  %v944 = vpop.f32.mrb[0].mxu0
  %v945 = vadd.f32 %v391, %v944
  %v946 = vpop.f32.mrb[0].mxu0
  %v947 = vadd.f32 %v393, %v946
  %v948 = vpop.f32.mrb[0].mxu0
  %v949 = vadd.f32 %v395, %v948
  %v950 = vpop.f32.mrb[0].mxu0
  %v951 = vadd.f32 %v397, %v950
  %952 = vmatprep.mubr.bf16.mxu0 0
  %953 = vmatmul.mubr.bf16.gmra.mrb[0].mxu0 %v810
  %v954 = vpop.f32.mrb[0].mxu0
  %v955 = vadd.f32 %v401, %v954
  %v956 = vpop.f32.mrb[0].mxu0
  %v957 = vadd.f32 %v403, %v956
  %v958 = vpop.f32.mrb[0].mxu0
  %v959 = vadd.f32 %v405, %v958
  %v960 = vpop.f32.mrb[0].mxu0
  %v961 = vadd.f32 %v407, %v960
  %962 = vmatprep.mubr.bf16.mxu0 0
  %963 = vmatmul.mubr.bf16.gmra.mrb[0].mxu0 %v813
  %v964 = vpop.f32.mrb[0].mxu0
  %v965 = vadd.f32 %v411, %v964
  %v966 = vpop.f32.mrb[0].mxu0
  %v967 = vadd.f32 %v413, %v966
  %v968 = vpop.f32.mrb[0].mxu0
  %v969 = vadd.f32 %v415, %v968
  %v970 = vpop.f32.mrb[0].mxu0
  %v971 = vadd.f32 %v417, %v970
  %972 = vmatprep.mubr.bf16.mxu0 0
  %973 = vmatmul.mubr.bf16.gmra.mrb[0].mxu0 %v816
  %v974 = vpop.f32.mrb[0].mxu0
  %v975 = vadd.f32 %v421, %v974
  %v976 = vpop.f32.mrb[0].mxu0
  %v977 = vadd.f32 %v423, %v976
  %v978 = vpop.f32.mrb[0].mxu0
  %v979 = vadd.f32 %v425, %v978
  %v980 = vpop.f32.mrb[0].mxu0
  %v981 = vadd.f32 %v427, %v980
  %982 = vmatprep.mubr.bf16.mxu0 0
  %983 = vmatmul.mubr.bf16.gmra.mrb[0].mxu0 %v819
  %v984 = vpop.f32.mrb[0].mxu0
  %v985 = vadd.f32 %v431, %v984
  %v986 = vpop.f32.mrb[0].mxu0
  %v987 = vadd.f32 %v433, %v986
  %v988 = vpop.f32.mrb[0].mxu0
  %v989 = vadd.f32 %v435, %v988
  %v990 = vpop.f32.mrb[0].mxu0
  %v991 = vadd.f32 %v437, %v990
  %992 = vmatprep.mubr.bf16.mxu0 0
  %993 = vmatmul.mubr.bf16.gmra.mrb[0].mxu0 %v822
  %v994 = vpop.f32.mrb[0].mxu0
  %v995 = vadd.f32 %v441, %v994
  %v996 = vpop.f32.mrb[0].mxu0
  %v997 = vadd.f32 %v443, %v996
  %v998 = vpop.f32.mrb[0].mxu0
  %v999 = vadd.f32 %v445, %v998
  %v1000 = vpop.f32.mrb[0].mxu0
  %v1001 = vadd.f32 %v447, %v1000
  %1002 = vmatprep.mubr.bf16.mxu0 0
  %1003 = vmatmul.mubr.bf16.gmra.mrb[0].mxu0 %v825
  %v1004 = vpop.f32.mrb[0].mxu0
  %v1005 = vadd.f32 %v451, %v1004
  %v1006 = vpop.f32.mrb[0].mxu0
  %v1007 = vadd.f32 %v453, %v1006
  %v1008 = vpop.f32.mrb[0].mxu0
  %v1009 = vadd.f32 %v455, %v1008
  %v1010 = vpop.f32.mrb[0].mxu0
  %v1011 = vadd.f32 %v457, %v1010
  %1012 = vmatprep.mubr.bf16.mxu0 0
  %1013 = vmatmul.mubr.bf16.gmra.mrb[0].mxu0 %v828
  %v1014 = vpop.f32.mrb[0].mxu0
  %v1015 = vadd.f32 %v461, %v1014
  %v1016 = vpop.f32.mrb[0].mxu0
  %v1017 = vadd.f32 %v463, %v1016
  %v1018 = vpop.f32.mrb[0].mxu0
  %v1019 = vadd.f32 %v465, %v1018
  %v1020 = vpop.f32.mrb[0].mxu0
  %v1021 = vadd.f32 %v467, %v1020
  %1022 = vdwg.mxu0
  %1023 = vmatprep.subr.bf16.mxu0 %v769
  %1024 = vmatpush1.bf16.msra.mxu0 %v768
  %1025 = vmatprep.subr.bf16.mxu0 %v773
  %1026 = vmatpush1.bf16.msra.mxu0 %v772
  %1027 = vmatprep.subr.bf16.mxu0 0
  %1028 = vmatpush1.bf16.msra.mxu0 0
  %1029 = vmatprep.subr.bf16.mxu0 0
  %1030 = vmatpush1.bf16.msra.mxu0 0
  %1031 = vmatprep.subr.bf16.mxu0 0
  %1032 = vmatpush1.bf16.msra.mxu0 0
  %1033 = vmatprep.subr.bf16.mxu0 0
  %1034 = vmatpush1.bf16.msra.mxu0 0
  %1035 = vmatprep.subr.bf16.mxu0 0
  %1036 = vmatpush1.bf16.msra.mxu0 0
  %1037 = vmatprep.subr.bf16.mxu0 0
  %1038 = vmatpush1.bf16.msra.mxu0 0
  %1039 = vmatprep.subr.bf16.mxu0 0
  %1040 = vmatpush1.bf16.msra.mxu0 0
  %1041 = vmatprep.subr.bf16.mxu0 0
  %1042 = vmatpush1.bf16.msra.mxu0 0
  %1043 = vmatprep.subr.bf16.mxu0 0
  %1044 = vmatpush1.bf16.msra.mxu0 0
  %1045 = vmatprep.subr.bf16.mxu0 0
  %1046 = vmatpush1.bf16.msra.mxu0 0
  %1047 = vmatprep.subr.bf16.mxu0 0
  %1048 = vmatpush1.bf16.msra.mxu0 0
  %1049 = vmatprep.subr.bf16.mxu0 0
  %1050 = vmatpush1.bf16.msra.mxu0 0
  %1051 = vmatprep.subr.bf16.mxu0 0
  %1052 = vmatpush1.bf16.msra.mxu0 0
  %1053 = vmatprep.subr.bf16.mxu0 0
  %1054 = vmatpush1.bf16.msra.mxu0 0
  %1055 = vmatprep.mubr.bf16.mxu0 0
  %1056 = vmatmul.mubr.bf16.gmra.mrb[0].mxu0 %v783
  %v1057 = vpop.f32.mrb[0].mxu0
  %v1058 = vadd.f32 %v504, %v1057
  %v1059 = vpop.f32.mrb[0].mxu0
  %v1060 = vadd.f32 %v506, %v1059
  %v1061 = vpop.f32.mrb[0].mxu0
  %v1062 = vadd.f32 %v508, %v1061
  %v1063 = vpop.f32.mrb[0].mxu0
  %v1064 = vadd.f32 %v510, %v1063
  %1065 = vmatprep.mubr.bf16.mxu0 0
  %1066 = vmatmul.mubr.bf16.gmra.mrb[0].mxu0 %v786
  %v1067 = vpop.f32.mrb[0].mxu0
  %v1068 = vadd.f32 %v514, %v1067
  %v1069 = vpop.f32.mrb[0].mxu0
  %v1070 = vadd.f32 %v516, %v1069
  %v1071 = vpop.f32.mrb[0].mxu0
  %v1072 = vadd.f32 %v518, %v1071
  %v1073 = vpop.f32.mrb[0].mxu0
  %v1074 = vadd.f32 %v520, %v1073
  %1075 = vmatprep.mubr.bf16.mxu0 0
  %1076 = vmatmul.mubr.bf16.gmra.mrb[0].mxu0 %v789
  %v1077 = vpop.f32.mrb[0].mxu0
  %v1078 = vadd.f32 %v524, %v1077
  %v1079 = vpop.f32.mrb[0].mxu0
  %v1080 = vadd.f32 %v526, %v1079
  %v1081 = vpop.f32.mrb[0].mxu0
  %v1082 = vadd.f32 %v528, %v1081
  %v1083 = vpop.f32.mrb[0].mxu0
  %v1084 = vadd.f32 %v530, %v1083
  %1085 = vmatprep.mubr.bf16.mxu0 0
  %1086 = vmatmul.mubr.bf16.gmra.mrb[0].mxu0 %v792
  %v1087 = vpop.f32.mrb[0].mxu0
  %v1088 = vadd.f32 %v534, %v1087
  %v1089 = vpop.f32.mrb[0].mxu0
  %v1090 = vadd.f32 %v536, %v1089
  %v1091 = vpop.f32.mrb[0].mxu0
  %v1092 = vadd.f32 %v538, %v1091
  %v1093 = vpop.f32.mrb[0].mxu0
  %v1094 = vadd.f32 %v540, %v1093
  %1095 = vmatprep.mubr.bf16.mxu0 0
  %1096 = vmatmul.mubr.bf16.gmra.mrb[0].mxu0 %v795
  %v1097 = vpop.f32.mrb[0].mxu0
  %v1098 = vadd.f32 %v544, %v1097
  %v1099 = vpop.f32.mrb[0].mxu0
  %v1100 = vadd.f32 %v546, %v1099
  %v1101 = vpop.f32.mrb[0].mxu0
  %v1102 = vadd.f32 %v548, %v1101
  %v1103 = vpop.f32.mrb[0].mxu0
  %v1104 = vadd.f32 %v550, %v1103
  %1105 = vmatprep.mubr.bf16.mxu0 0
  %1106 = vmatmul.mubr.bf16.gmra.mrb[0].mxu0 %v798
  %v1107 = vpop.f32.mrb[0].mxu0
  %v1108 = vadd.f32 %v554, %v1107
  %v1109 = vpop.f32.mrb[0].mxu0
  %v1110 = vadd.f32 %v556, %v1109
  %v1111 = vpop.f32.mrb[0].mxu0
  %v1112 = vadd.f32 %v558, %v1111
  %v1113 = vpop.f32.mrb[0].mxu0
  %v1114 = vadd.f32 %v560, %v1113
  %1115 = vmatprep.mubr.bf16.mxu0 0
  %1116 = vmatmul.mubr.bf16.gmra.mrb[0].mxu0 %v801
  %v1117 = vpop.f32.mrb[0].mxu0
  %v1118 = vadd.f32 %v564, %v1117
  %v1119 = vpop.f32.mrb[0].mxu0
  %v1120 = vadd.f32 %v566, %v1119
  %v1121 = vpop.f32.mrb[0].mxu0
  %v1122 = vadd.f32 %v568, %v1121
  %v1123 = vpop.f32.mrb[0].mxu0
  %v1124 = vadd.f32 %v570, %v1123
  %1125 = vmatprep.mubr.bf16.mxu0 0
  %1126 = vmatmul.mubr.bf16.gmra.mrb[0].mxu0 %v804
  %v1127 = vpop.f32.mrb[0].mxu0
  %v1128 = vadd.f32 %v574, %v1127
  %v1129 = vpop.f32.mrb[0].mxu0
  %v1130 = vadd.f32 %v576, %v1129
  %v1131 = vpop.f32.mrb[0].mxu0
  %v1132 = vadd.f32 %v578, %v1131
  %v1133 = vpop.f32.mrb[0].mxu0
  %v1134 = vadd.f32 %v580, %v1133
  %1135 = vmatprep.mubr.bf16.mxu0 0
  %1136 = vmatmul.mubr.bf16.gmra.mrb[0].mxu0 %v807
  %v1137 = vpop.f32.mrb[0].mxu0
  %v1138 = vadd.f32 %v584, %v1137
  %v1139 = vpop.f32.mrb[0].mxu0
  %v1140 = vadd.f32 %v586, %v1139
  %v1141 = vpop.f32.mrb[0].mxu0
  %v1142 = vadd.f32 %v588, %v1141
  %v1143 = vpop.f32.mrb[0].mxu0
  %v1144 = vadd.f32 %v590, %v1143
  %1145 = vmatprep.mubr.bf16.mxu0 0
  %1146 = vmatmul.mubr.bf16.gmra.mrb[0].mxu0 %v810
  %v1147 = vpop.f32.mrb[0].mxu0
  %v1148 = vadd.f32 %v594, %v1147
  %v1149 = vpop.f32.mrb[0].mxu0
  %v1150 = vadd.f32 %v596, %v1149
  %v1151 = vpop.f32.mrb[0].mxu0
  %v1152 = vadd.f32 %v598, %v1151
  %v1153 = vpop.f32.mrb[0].mxu0
  %v1154 = vadd.f32 %v600, %v1153
  %1155 = vmatprep.mubr.bf16.mxu0 0
  %1156 = vmatmul.mubr.bf16.gmra.mrb[0].mxu0 %v813
  %v1157 = vpop.f32.mrb[0].mxu0
  %v1158 = vadd.f32 %v604, %v1157
  %v1159 = vpop.f32.mrb[0].mxu0
  %v1160 = vadd.f32 %v606, %v1159
  %v1161 = vpop.f32.mrb[0].mxu0
  %v1162 = vadd.f32 %v608, %v1161
  %v1163 = vpop.f32.mrb[0].mxu0
  %v1164 = vadd.f32 %v610, %v1163
  %1165 = vmatprep.mubr.bf16.mxu0 0
  %1166 = vmatmul.mubr.bf16.gmra.mrb[0].mxu0 %v816
  %v1167 = vpop.f32.mrb[0].mxu0
  %v1168 = vadd.f32 %v614, %v1167
  %v1169 = vpop.f32.mrb[0].mxu0
  %v1170 = vadd.f32 %v616, %v1169
  %v1171 = vpop.f32.mrb[0].mxu0
  %v1172 = vadd.f32 %v618, %v1171
  %v1173 = vpop.f32.mrb[0].mxu0
  %v1174 = vadd.f32 %v620, %v1173
  %1175 = vmatprep.mubr.bf16.mxu0 0
  %1176 = vmatmul.mubr.bf16.gmra.mrb[0].mxu0 %v819
  %v1177 = vpop.f32.mrb[0].mxu0
  %v1178 = vadd.f32 %v624, %v1177
  %v1179 = vpop.f32.mrb[0].mxu0
  %v1180 = vadd.f32 %v626, %v1179
  %v1181 = vpop.f32.mrb[0].mxu0
  %v1182 = vadd.f32 %v628, %v1181
  %v1183 = vpop.f32.mrb[0].mxu0
  %v1184 = vadd.f32 %v630, %v1183
  %1185 = vmatprep.mubr.bf16.mxu0 0
  %1186 = vmatmul.mubr.bf16.gmra.mrb[0].mxu0 %v822
  %v1187 = vpop.f32.mrb[0].mxu0
  %v1188 = vadd.f32 %v634, %v1187
  %v1189 = vpop.f32.mrb[0].mxu0
  %v1190 = vadd.f32 %v636, %v1189
  %v1191 = vpop.f32.mrb[0].mxu0
  %v1192 = vadd.f32 %v638, %v1191
  %v1193 = vpop.f32.mrb[0].mxu0
  %v1194 = vadd.f32 %v640, %v1193
  %1195 = vmatprep.mubr.bf16.mxu0 0
  %1196 = vmatmul.mubr.bf16.gmra.mrb[0].mxu0 %v825
  %v1197 = vpop.f32.mrb[0].mxu0
  %v1198 = vadd.f32 %v644, %v1197
  %v1199 = vpop.f32.mrb[0].mxu0
  %v1200 = vadd.f32 %v646, %v1199
  %v1201 = vpop.f32.mrb[0].mxu0
  %v1202 = vadd.f32 %v648, %v1201
  %v1203 = vpop.f32.mrb[0].mxu0
  %v1204 = vadd.f32 %v650, %v1203
  %1205 = vmatprep.mubr.bf16.mxu0 0
  %1206 = vmatmul.mubr.bf16.gmra.mrb[0].mxu0 %v828
  %v1207 = vpop.f32.mrb[0].mxu0
  %v1208 = vadd.f32 %v654, %v1207
  %v1209 = vpop.f32.mrb[0].mxu0
  %v1210 = vadd.f32 %v656, %v1209
  %v1211 = vpop.f32.mrb[0].mxu0
  %v1212 = vadd.f32 %v658, %v1211
  %v1213 = vpop.f32.mrb[0].mxu0
  %v1214 = vadd.f32 %v660, %v1213
  %1215 = vdwg.mxu0
  %v1216 = vld [vmem:[%s2] sm:$0xff]
  %v1217 = vld [vmem:[%s2 + $0x8] sm:$0xff]
  %v1218 = vld [vmem:[%s2 + $0x10] sm:$0xff]
  %v1219 = vld [vmem:[%s2 + $0x18] sm:$0xff]
  %v1220 = vld [vmem:[%s2 + $0x20] sm:$0xff]
  %v1221 = vld [vmem:[%s2 + $0x28] sm:$0xff]
  %v1222 = vld [vmem:[%s2 + $0x30] sm:$0xff]
  %v1223 = vld [vmem:[%s2 + $0x38] sm:$0xff]
  %v1224 = vld [vmem:[%s2 + $0x40] sm:$0xff]
  %v1225 = vld [vmem:[%s2 + $0x48] sm:$0xff]
  %v1226 = vld [vmem:[%s2 + $0x50] sm:$0xff]
  %v1227 = vld [vmem:[%s2 + $0x58] sm:$0xff]
  %v1228 = vld [vmem:[%s2 + $0x60] sm:$0xff]
  %v1229 = vld [vmem:[%s2 + $0x68] sm:$0xff]
  %v1230 = vld [vmem:[%s2 + $0x70] sm:$0xff]
  %v1231 = vld [vmem:[%s2 + $0x78] sm:$0xff]
  %v1248 = vcombine.low %v1216, %v1217
  %v1249 = vcombine.high %v1216, %v1217
  %v1250 = vcombine.low %v1218, %v1219
  %v1251 = vcombine.high %v1218, %v1219
  %v1253 = vunpack.c.l.s4 1966171168
  %v1254 = vunpack.c.0.s8 %v1253
  %v1255 = vlaneseq
  %v1256 = vshrl.u32 %v1255, 7
  %v1257 = vsub.s32 %v1254, %v1256
  %v1258 = vrot.slane %v1248, %v1257
  %v1260 = vunpack.c.l.s4 1966171168
  %v1261 = vunpack.c.0.s8 %v1260
  %v1262 = vlaneseq
  %v1263 = vshrl.u32 %v1262, 7
  %v1264 = vsub.s32 %v1261, %v1263
  %v1265 = vrot.slane %v1249, %v1264
  %v1267 = vunpack.c.l.s4 1966171168
  %v1268 = vunpack.c.0.s8 %v1267
  %v1269 = vlaneseq
  %v1270 = vshrl.u32 %v1269, 7
  %v1271 = vsub.s32 %v1268, %v1270
  %v1272 = vrot.slane %v1250, %v1271
  %v1274 = vunpack.c.l.s4 1966171168
  %v1275 = vunpack.c.0.s8 %v1274
  %v1276 = vlaneseq
  %v1277 = vshrl.u32 %v1276, 7
  %v1278 = vsub.s32 %v1275, %v1277
  %v1279 = vrot.slane %v1251, %v1278
  %v1280 = vcombine.low %v1258, %v1272
  %v1281 = vcombine.high %v1258, %v1272
  %v1282 = vcombine.low %v1265, %v1279
  %v1283 = vcombine.high %v1265, %v1279
  %v1285 = vunpack.c.l.s4 1966171168
  %v1286 = vunpack.c.0.s8 %v1285
  %v1287 = vlaneseq
  %v1288 = vshrl.u32 %v1287, 7
  %v1289 = vsub.s32 %v1286, %v1288
  %v1290 = vrot.slane %v1280, %v1289
  %v1292 = vunpack.c.l.s4 1966171168
  %v1293 = vunpack.c.0.s8 %v1292
  %v1294 = vlaneseq
  %v1295 = vshrl.u32 %v1294, 7
  %v1296 = vsub.s32 %v1293, %v1295
  %v1297 = vrot.slane %v1282, %v1296
  %v1299 = vunpack.c.l.s4 1966171168
  %v1300 = vunpack.c.0.s8 %v1299
  %v1301 = vlaneseq
  %v1302 = vshrl.u32 %v1301, 7
  %v1303 = vsub.s32 %v1300, %v1302
  %v1304 = vrot.slane %v1281, %v1303
  %v1306 = vunpack.c.l.s4 1966171168
  %v1307 = vunpack.c.0.s8 %v1306
  %v1308 = vlaneseq
  %v1309 = vshrl.u32 %v1308, 7
  %v1310 = vsub.s32 %v1307, %v1309
  %v1311 = vrot.slane %v1283, %v1310
  %v1312 = vcombine.high %v1290, %v1290
  %v1313 = vcombine.high %v1297, %v1297
  %v1314 = vcombine.high %v1304, %v1304
  %v1315 = vcombine.high %v1311, %v1311
  %v1316 = vcombine.low %v1220, %v1221
  %v1317 = vcombine.high %v1220, %v1221
  %v1318 = vcombine.low %v1222, %v1223
  %v1319 = vcombine.high %v1222, %v1223
  %v1321 = vunpack.c.l.s4 1966171168
  %v1322 = vunpack.c.0.s8 %v1321
  %v1323 = vlaneseq
  %v1324 = vshrl.u32 %v1323, 7
  %v1325 = vsub.s32 %v1322, %v1324
  %v1326 = vrot.slane %v1316, %v1325
  %v1328 = vunpack.c.l.s4 1966171168
  %v1329 = vunpack.c.0.s8 %v1328
  %v1330 = vlaneseq
  %v1331 = vshrl.u32 %v1330, 7
  %v1332 = vsub.s32 %v1329, %v1331
  %v1333 = vrot.slane %v1317, %v1332
  %v1335 = vunpack.c.l.s4 1966171168
  %v1336 = vunpack.c.0.s8 %v1335
  %v1337 = vlaneseq
  %v1338 = vshrl.u32 %v1337, 7
  %v1339 = vsub.s32 %v1336, %v1338
  %v1340 = vrot.slane %v1318, %v1339
  %v1342 = vunpack.c.l.s4 1966171168
  %v1343 = vunpack.c.0.s8 %v1342
  %v1344 = vlaneseq
  %v1345 = vshrl.u32 %v1344, 7
  %v1346 = vsub.s32 %v1343, %v1345
  %v1347 = vrot.slane %v1319, %v1346
  %v1348 = vcombine.low %v1326, %v1340
  %v1349 = vcombine.high %v1326, %v1340
  %v1350 = vcombine.low %v1333, %v1347
  %v1351 = vcombine.high %v1333, %v1347
  %v1353 = vunpack.c.l.s4 1966171168
  %v1354 = vunpack.c.0.s8 %v1353
  %v1355 = vlaneseq
  %v1356 = vshrl.u32 %v1355, 7
  %v1357 = vsub.s32 %v1354, %v1356
  %v1358 = vrot.slane %v1348, %v1357
  %v1360 = vunpack.c.l.s4 1966171168
  %v1361 = vunpack.c.0.s8 %v1360
  %v1362 = vlaneseq
  %v1363 = vshrl.u32 %v1362, 7
  %v1364 = vsub.s32 %v1361, %v1363
  %v1365 = vrot.slane %v1350, %v1364
  %v1367 = vunpack.c.l.s4 1966171168
  %v1368 = vunpack.c.0.s8 %v1367
  %v1369 = vlaneseq
  %v1370 = vshrl.u32 %v1369, 7
  %v1371 = vsub.s32 %v1368, %v1370
  %v1372 = vrot.slane %v1349, %v1371
  %v1374 = vunpack.c.l.s4 1966171168
  %v1375 = vunpack.c.0.s8 %v1374
  %v1376 = vlaneseq
  %v1377 = vshrl.u32 %v1376, 7
  %v1378 = vsub.s32 %v1375, %v1377
  %v1379 = vrot.slane %v1351, %v1378
  %v1380 = vcombine.high %v1358, %v1358
  %v1381 = vcombine.high %v1365, %v1365
  %v1382 = vcombine.high %v1372, %v1372
  %v1383 = vcombine.high %v1379, %v1379
  %v1384 = vcombine.low %v1224, %v1225
  %v1385 = vcombine.high %v1224, %v1225
  %v1386 = vcombine.low %v1226, %v1227
  %v1387 = vcombine.high %v1226, %v1227
  %v1389 = vunpack.c.l.s4 1966171168
  %v1390 = vunpack.c.0.s8 %v1389
  %v1391 = vlaneseq
  %v1392 = vshrl.u32 %v1391, 7
  %v1393 = vsub.s32 %v1390, %v1392
  %v1394 = vrot.slane %v1384, %v1393
  %v1396 = vunpack.c.l.s4 1966171168
  %v1397 = vunpack.c.0.s8 %v1396
  %v1398 = vlaneseq
  %v1399 = vshrl.u32 %v1398, 7
  %v1400 = vsub.s32 %v1397, %v1399
  %v1401 = vrot.slane %v1385, %v1400
  %v1403 = vunpack.c.l.s4 1966171168
  %v1404 = vunpack.c.0.s8 %v1403
  %v1405 = vlaneseq
  %v1406 = vshrl.u32 %v1405, 7
  %v1407 = vsub.s32 %v1404, %v1406
  %v1408 = vrot.slane %v1386, %v1407
  %v1410 = vunpack.c.l.s4 1966171168
  %v1411 = vunpack.c.0.s8 %v1410
  %v1412 = vlaneseq
  %v1413 = vshrl.u32 %v1412, 7
  %v1414 = vsub.s32 %v1411, %v1413
  %v1415 = vrot.slane %v1387, %v1414
  %v1416 = vcombine.low %v1394, %v1408
  %v1417 = vcombine.high %v1394, %v1408
  %v1418 = vcombine.low %v1401, %v1415
  %v1419 = vcombine.high %v1401, %v1415
  %v1421 = vunpack.c.l.s4 1966171168
  %v1422 = vunpack.c.0.s8 %v1421
  %v1423 = vlaneseq
  %v1424 = vshrl.u32 %v1423, 7
  %v1425 = vsub.s32 %v1422, %v1424
  %v1426 = vrot.slane %v1416, %v1425
  %v1428 = vunpack.c.l.s4 1966171168
  %v1429 = vunpack.c.0.s8 %v1428
  %v1430 = vlaneseq
  %v1431 = vshrl.u32 %v1430, 7
  %v1432 = vsub.s32 %v1429, %v1431
  %v1433 = vrot.slane %v1418, %v1432
  %v1435 = vunpack.c.l.s4 1966171168
  %v1436 = vunpack.c.0.s8 %v1435
  %v1437 = vlaneseq
  %v1438 = vshrl.u32 %v1437, 7
  %v1439 = vsub.s32 %v1436, %v1438
  %v1440 = vrot.slane %v1417, %v1439
  %v1442 = vunpack.c.l.s4 1966171168
  %v1443 = vunpack.c.0.s8 %v1442
  %v1444 = vlaneseq
  %v1445 = vshrl.u32 %v1444, 7
  %v1446 = vsub.s32 %v1443, %v1445
  %v1447 = vrot.slane %v1419, %v1446
  %v1448 = vcombine.high %v1426, %v1426
  %v1449 = vcombine.high %v1433, %v1433
  %v1450 = vcombine.high %v1440, %v1440
  %v1451 = vcombine.high %v1447, %v1447
  %v1452 = vcombine.low %v1228, %v1229
  %v1453 = vcombine.high %v1228, %v1229
  %v1454 = vcombine.low %v1230, %v1231
  %v1455 = vcombine.high %v1230, %v1231
  %v1457 = vunpack.c.l.s4 1966171168
  %v1458 = vunpack.c.0.s8 %v1457
  %v1459 = vlaneseq
  %v1460 = vshrl.u32 %v1459, 7
  %v1461 = vsub.s32 %v1458, %v1460
  %v1462 = vrot.slane %v1452, %v1461
  %v1464 = vunpack.c.l.s4 1966171168
  %v1465 = vunpack.c.0.s8 %v1464
  %v1466 = vlaneseq
  %v1467 = vshrl.u32 %v1466, 7
  %v1468 = vsub.s32 %v1465, %v1467
  %v1469 = vrot.slane %v1453, %v1468
  %v1471 = vunpack.c.l.s4 1966171168
  %v1472 = vunpack.c.0.s8 %v1471
  %v1473 = vlaneseq
  %v1474 = vshrl.u32 %v1473, 7
  %v1475 = vsub.s32 %v1472, %v1474
  %v1476 = vrot.slane %v1454, %v1475
  %v1478 = vunpack.c.l.s4 1966171168
  %v1479 = vunpack.c.0.s8 %v1478
  %v1480 = vlaneseq
  %v1481 = vshrl.u32 %v1480, 7
  %v1482 = vsub.s32 %v1479, %v1481
  %v1483 = vrot.slane %v1455, %v1482
  %v1484 = vcombine.low %v1462, %v1476
  %v1485 = vcombine.high %v1462, %v1476
  %v1486 = vcombine.low %v1469, %v1483
  %v1487 = vcombine.high %v1469, %v1483
  %v1489 = vunpack.c.l.s4 1966171168
  %v1490 = vunpack.c.0.s8 %v1489
  %v1491 = vlaneseq
  %v1492 = vshrl.u32 %v1491, 7
  %v1493 = vsub.s32 %v1490, %v1492
  %v1494 = vrot.slane %v1484, %v1493
  %v1496 = vunpack.c.l.s4 1966171168
  %v1497 = vunpack.c.0.s8 %v1496
  %v1498 = vlaneseq
  %v1499 = vshrl.u32 %v1498, 7
  %v1500 = vsub.s32 %v1497, %v1499
  %v1501 = vrot.slane %v1486, %v1500
  %v1503 = vunpack.c.l.s4 1966171168
  %v1504 = vunpack.c.0.s8 %v1503
  %v1505 = vlaneseq
  %v1506 = vshrl.u32 %v1505, 7
  %v1507 = vsub.s32 %v1504, %v1506
  %v1508 = vrot.slane %v1485, %v1507
  %v1510 = vunpack.c.l.s4 1966171168
  %v1511 = vunpack.c.0.s8 %v1510
  %v1512 = vlaneseq
  %v1513 = vshrl.u32 %v1512, 7
  %v1514 = vsub.s32 %v1511, %v1513
  %v1515 = vrot.slane %v1487, %v1514
  %v1516 = vcombine.high %v1494, %v1494
  %v1517 = vcombine.high %v1501, %v1501
  %v1518 = vcombine.high %v1508, %v1508
  %v1519 = vcombine.high %v1515, %v1515
  %v1520 = vlaneseq
  %v1521 = vshrl.u32 %v1520, 7
  %v1522 = vsub.s32 0, %v1521
  %v1523 = vrot.slane %v1290, %v1522
  %v1524 = vlaneseq
  %v1525 = vshrl.u32 %v1524, 7
  %v1526 = vsub.s32 1, %v1525
  %v1527 = vrot.slane %v1290, %v1526
  %v1528 = vlaneseq
  %v1529 = vshrl.u32 %v1528, 7
  %v1530 = vsub.s32 2, %v1529
  %v1531 = vrot.slane %v1290, %v1530
  %v1532 = vlaneseq
  %v1533 = vshrl.u32 %v1532, 7
  %v1534 = vsub.s32 3, %v1533
  %v1535 = vrot.slane %v1290, %v1534
  %v1536 = vlaneseq
  %v1537 = vshrl.u32 %v1536, 7
  %v1538 = vsub.s32 0, %v1537
  %v1539 = vrot.slane %v1304, %v1538
  %v1540 = vlaneseq
  %v1541 = vshrl.u32 %v1540, 7
  %v1542 = vsub.s32 1, %v1541
  %v1543 = vrot.slane %v1304, %v1542
  %v1544 = vlaneseq
  %v1545 = vshrl.u32 %v1544, 7
  %v1546 = vsub.s32 2, %v1545
  %v1547 = vrot.slane %v1304, %v1546
  %v1548 = vlaneseq
  %v1549 = vshrl.u32 %v1548, 7
  %v1550 = vsub.s32 3, %v1549
  %v1551 = vrot.slane %v1304, %v1550
  %v1552 = vlaneseq
  %v1553 = vshrl.u32 %v1552, 7
  %v1554 = vsub.s32 0, %v1553
  %v1555 = vrot.slane %v1312, %v1554
  %v1556 = vlaneseq
  %v1557 = vshrl.u32 %v1556, 7
  %v1558 = vsub.s32 1, %v1557
  %v1559 = vrot.slane %v1312, %v1558
  %v1560 = vlaneseq
  %v1561 = vshrl.u32 %v1560, 7
  %v1562 = vsub.s32 2, %v1561
  %v1563 = vrot.slane %v1312, %v1562
  %v1564 = vlaneseq
  %v1565 = vshrl.u32 %v1564, 7
  %v1566 = vsub.s32 3, %v1565
  %v1567 = vrot.slane %v1312, %v1566
  %v1568 = vlaneseq
  %v1569 = vshrl.u32 %v1568, 7
  %v1570 = vsub.s32 0, %v1569
  %v1571 = vrot.slane %v1314, %v1570
  %v1572 = vlaneseq
  %v1573 = vshrl.u32 %v1572, 7
  %v1574 = vsub.s32 1, %v1573
  %v1575 = vrot.slane %v1314, %v1574
  %v1576 = vlaneseq
  %v1577 = vshrl.u32 %v1576, 7
  %v1578 = vsub.s32 2, %v1577
  %v1579 = vrot.slane %v1314, %v1578
  %v1580 = vlaneseq
  %v1581 = vshrl.u32 %v1580, 7
  %v1582 = vsub.s32 3, %v1581
  %v1583 = vrot.slane %v1314, %v1582
  %v1584 = vlaneseq
  %v1585 = vshrl.u32 %v1584, 7
  %v1586 = vsub.s32 0, %v1585
  %v1587 = vrot.slane %v1297, %v1586
  %v1588 = vlaneseq
  %v1589 = vshrl.u32 %v1588, 7
  %v1590 = vsub.s32 1, %v1589
  %v1591 = vrot.slane %v1297, %v1590
  %v1592 = vlaneseq
  %v1593 = vshrl.u32 %v1592, 7
  %v1594 = vsub.s32 2, %v1593
  %v1595 = vrot.slane %v1297, %v1594
  %v1596 = vlaneseq
  %v1597 = vshrl.u32 %v1596, 7
  %v1598 = vsub.s32 3, %v1597
  %v1599 = vrot.slane %v1297, %v1598
  %v1600 = vlaneseq
  %v1601 = vshrl.u32 %v1600, 7
  %v1602 = vsub.s32 0, %v1601
  %v1603 = vrot.slane %v1311, %v1602
  %v1604 = vlaneseq
  %v1605 = vshrl.u32 %v1604, 7
  %v1606 = vsub.s32 1, %v1605
  %v1607 = vrot.slane %v1311, %v1606
  %v1608 = vlaneseq
  %v1609 = vshrl.u32 %v1608, 7
  %v1610 = vsub.s32 2, %v1609
  %v1611 = vrot.slane %v1311, %v1610
  %v1612 = vlaneseq
  %v1613 = vshrl.u32 %v1612, 7
  %v1614 = vsub.s32 3, %v1613
  %v1615 = vrot.slane %v1311, %v1614
  %v1616 = vlaneseq
  %v1617 = vshrl.u32 %v1616, 7
  %v1618 = vsub.s32 0, %v1617
  %v1619 = vrot.slane %v1313, %v1618
  %v1620 = vlaneseq
  %v1621 = vshrl.u32 %v1620, 7
  %v1622 = vsub.s32 1, %v1621
  %v1623 = vrot.slane %v1313, %v1622
  %v1624 = vlaneseq
  %v1625 = vshrl.u32 %v1624, 7
  %v1626 = vsub.s32 2, %v1625
  %v1627 = vrot.slane %v1313, %v1626
  %v1628 = vlaneseq
  %v1629 = vshrl.u32 %v1628, 7
  %v1630 = vsub.s32 3, %v1629
  %v1631 = vrot.slane %v1313, %v1630
  %v1632 = vlaneseq
  %v1633 = vshrl.u32 %v1632, 7
  %v1634 = vsub.s32 0, %v1633
  %v1635 = vrot.slane %v1315, %v1634
  %v1636 = vlaneseq
  %v1637 = vshrl.u32 %v1636, 7
  %v1638 = vsub.s32 1, %v1637
  %v1639 = vrot.slane %v1315, %v1638
  %v1640 = vlaneseq
  %v1641 = vshrl.u32 %v1640, 7
  %v1642 = vsub.s32 2, %v1641
  %v1643 = vrot.slane %v1315, %v1642
  %v1644 = vlaneseq
  %v1645 = vshrl.u32 %v1644, 7
  %v1646 = vsub.s32 3, %v1645
  %v1647 = vrot.slane %v1315, %v1646
  %v1648 = vlaneseq
  %v1649 = vshrl.u32 %v1648, 7
  %v1650 = vsub.s32 0, %v1649
  %v1651 = vrot.slane %v1358, %v1650
  %v1652 = vlaneseq
  %v1653 = vshrl.u32 %v1652, 7
  %v1654 = vsub.s32 1, %v1653
  %v1655 = vrot.slane %v1358, %v1654
  %v1656 = vlaneseq
  %v1657 = vshrl.u32 %v1656, 7
  %v1658 = vsub.s32 2, %v1657
  %v1659 = vrot.slane %v1358, %v1658
  %v1660 = vlaneseq
  %v1661 = vshrl.u32 %v1660, 7
  %v1662 = vsub.s32 3, %v1661
  %v1663 = vrot.slane %v1358, %v1662
  %v1664 = vlaneseq
  %v1665 = vshrl.u32 %v1664, 7
  %v1666 = vsub.s32 0, %v1665
  %v1667 = vrot.slane %v1372, %v1666
  %v1668 = vlaneseq
  %v1669 = vshrl.u32 %v1668, 7
  %v1670 = vsub.s32 1, %v1669
  %v1671 = vrot.slane %v1372, %v1670
  %v1672 = vlaneseq
  %v1673 = vshrl.u32 %v1672, 7
  %v1674 = vsub.s32 2, %v1673
  %v1675 = vrot.slane %v1372, %v1674
  %v1676 = vlaneseq
  %v1677 = vshrl.u32 %v1676, 7
  %v1678 = vsub.s32 3, %v1677
  %v1679 = vrot.slane %v1372, %v1678
  %v1680 = vlaneseq
  %v1681 = vshrl.u32 %v1680, 7
  %v1682 = vsub.s32 0, %v1681
  %v1683 = vrot.slane %v1380, %v1682
  %v1684 = vlaneseq
  %v1685 = vshrl.u32 %v1684, 7
  %v1686 = vsub.s32 1, %v1685
  %v1687 = vrot.slane %v1380, %v1686
  %v1688 = vlaneseq
  %v1689 = vshrl.u32 %v1688, 7
  %v1690 = vsub.s32 2, %v1689
  %v1691 = vrot.slane %v1380, %v1690
  %v1692 = vlaneseq
  %v1693 = vshrl.u32 %v1692, 7
  %v1694 = vsub.s32 3, %v1693
  %v1695 = vrot.slane %v1380, %v1694
  %v1696 = vlaneseq
  %v1697 = vshrl.u32 %v1696, 7
  %v1698 = vsub.s32 0, %v1697
  %v1699 = vrot.slane %v1382, %v1698
  %v1700 = vlaneseq
  %v1701 = vshrl.u32 %v1700, 7
  %v1702 = vsub.s32 1, %v1701
  %v1703 = vrot.slane %v1382, %v1702
  %v1704 = vlaneseq
  %v1705 = vshrl.u32 %v1704, 7
  %v1706 = vsub.s32 2, %v1705
  %v1707 = vrot.slane %v1382, %v1706
  %v1708 = vlaneseq
  %v1709 = vshrl.u32 %v1708, 7
  %v1710 = vsub.s32 3, %v1709
  %v1711 = vrot.slane %v1382, %v1710
  %v1712 = vlaneseq
  %v1713 = vshrl.u32 %v1712, 7
  %v1714 = vsub.s32 0, %v1713
  %v1715 = vrot.slane %v1365, %v1714
  %v1716 = vlaneseq
  %v1717 = vshrl.u32 %v1716, 7
  %v1718 = vsub.s32 1, %v1717
  %v1719 = vrot.slane %v1365, %v1718
  %v1720 = vlaneseq
  %v1721 = vshrl.u32 %v1720, 7
  %v1722 = vsub.s32 2, %v1721
  %v1723 = vrot.slane %v1365, %v1722
  %v1724 = vlaneseq
  %v1725 = vshrl.u32 %v1724, 7
  %v1726 = vsub.s32 3, %v1725
  %v1727 = vrot.slane %v1365, %v1726
  %v1728 = vlaneseq
  %v1729 = vshrl.u32 %v1728, 7
  %v1730 = vsub.s32 0, %v1729
  %v1731 = vrot.slane %v1379, %v1730
  %v1732 = vlaneseq
  %v1733 = vshrl.u32 %v1732, 7
  %v1734 = vsub.s32 1, %v1733
  %v1735 = vrot.slane %v1379, %v1734
  %v1736 = vlaneseq
  %v1737 = vshrl.u32 %v1736, 7
  %v1738 = vsub.s32 2, %v1737
  %v1739 = vrot.slane %v1379, %v1738
  %v1740 = vlaneseq
  %v1741 = vshrl.u32 %v1740, 7
  %v1742 = vsub.s32 3, %v1741
  %v1743 = vrot.slane %v1379, %v1742
  %v1744 = vlaneseq
  %v1745 = vshrl.u32 %v1744, 7
  %v1746 = vsub.s32 0, %v1745
  %v1747 = vrot.slane %v1381, %v1746
  %v1748 = vlaneseq
  %v1749 = vshrl.u32 %v1748, 7
  %v1750 = vsub.s32 1, %v1749
  %v1751 = vrot.slane %v1381, %v1750
  %v1752 = vlaneseq
  %v1753 = vshrl.u32 %v1752, 7
  %v1754 = vsub.s32 2, %v1753
  %v1755 = vrot.slane %v1381, %v1754
  %v1756 = vlaneseq
  %v1757 = vshrl.u32 %v1756, 7
  %v1758 = vsub.s32 3, %v1757
  %v1759 = vrot.slane %v1381, %v1758
  %v1760 = vlaneseq
  %v1761 = vshrl.u32 %v1760, 7
  %v1762 = vsub.s32 0, %v1761
  %v1763 = vrot.slane %v1383, %v1762
  %v1764 = vlaneseq
  %v1765 = vshrl.u32 %v1764, 7
  %v1766 = vsub.s32 1, %v1765
  %v1767 = vrot.slane %v1383, %v1766
  %v1768 = vlaneseq
  %v1769 = vshrl.u32 %v1768, 7
  %v1770 = vsub.s32 2, %v1769
  %v1771 = vrot.slane %v1383, %v1770
  %v1772 = vlaneseq
  %v1773 = vshrl.u32 %v1772, 7
  %v1774 = vsub.s32 3, %v1773
  %v1775 = vrot.slane %v1383, %v1774
  %v1776 = vlaneseq
  %v1777 = vshrl.u32 %v1776, 7
  %v1778 = vsub.s32 0, %v1777
  %v1779 = vrot.slane %v1426, %v1778
  %v1780 = vlaneseq
  %v1781 = vshrl.u32 %v1780, 7
  %v1782 = vsub.s32 1, %v1781
  %v1783 = vrot.slane %v1426, %v1782
  %v1784 = vlaneseq
  %v1785 = vshrl.u32 %v1784, 7
  %v1786 = vsub.s32 2, %v1785
  %v1787 = vrot.slane %v1426, %v1786
  %v1788 = vlaneseq
  %v1789 = vshrl.u32 %v1788, 7
  %v1790 = vsub.s32 3, %v1789
  %v1791 = vrot.slane %v1426, %v1790
  %v1792 = vlaneseq
  %v1793 = vshrl.u32 %v1792, 7
  %v1794 = vsub.s32 0, %v1793
  %v1795 = vrot.slane %v1440, %v1794
  %v1796 = vlaneseq
  %v1797 = vshrl.u32 %v1796, 7
  %v1798 = vsub.s32 1, %v1797
  %v1799 = vrot.slane %v1440, %v1798
  %v1800 = vlaneseq
  %v1801 = vshrl.u32 %v1800, 7
  %v1802 = vsub.s32 2, %v1801
  %v1803 = vrot.slane %v1440, %v1802
  %v1804 = vlaneseq
  %v1805 = vshrl.u32 %v1804, 7
  %v1806 = vsub.s32 3, %v1805
  %v1807 = vrot.slane %v1440, %v1806
  %v1808 = vlaneseq
  %v1809 = vshrl.u32 %v1808, 7
  %v1810 = vsub.s32 0, %v1809
  %v1811 = vrot.slane %v1448, %v1810
  %v1812 = vlaneseq
  %v1813 = vshrl.u32 %v1812, 7
  %v1814 = vsub.s32 1, %v1813
  %v1815 = vrot.slane %v1448, %v1814
  %v1816 = vlaneseq
  %v1817 = vshrl.u32 %v1816, 7
  %v1818 = vsub.s32 2, %v1817
  %v1819 = vrot.slane %v1448, %v1818
  %v1820 = vlaneseq
  %v1821 = vshrl.u32 %v1820, 7
  %v1822 = vsub.s32 3, %v1821
  %v1823 = vrot.slane %v1448, %v1822
  %v1824 = vlaneseq
  %v1825 = vshrl.u32 %v1824, 7
  %v1826 = vsub.s32 0, %v1825
  %v1827 = vrot.slane %v1450, %v1826
  %v1828 = vlaneseq
  %v1829 = vshrl.u32 %v1828, 7
  %v1830 = vsub.s32 1, %v1829
  %v1831 = vrot.slane %v1450, %v1830
  %v1832 = vlaneseq
  %v1833 = vshrl.u32 %v1832, 7
  %v1834 = vsub.s32 2, %v1833
  %v1835 = vrot.slane %v1450, %v1834
  %v1836 = vlaneseq
  %v1837 = vshrl.u32 %v1836, 7
  %v1838 = vsub.s32 3, %v1837
  %v1839 = vrot.slane %v1450, %v1838
  %v1840 = vlaneseq
  %v1841 = vshrl.u32 %v1840, 7
  %v1842 = vsub.s32 0, %v1841
  %v1843 = vrot.slane %v1433, %v1842
  %v1844 = vlaneseq
  %v1845 = vshrl.u32 %v1844, 7
  %v1846 = vsub.s32 1, %v1845
  %v1847 = vrot.slane %v1433, %v1846
  %v1848 = vlaneseq
  %v1849 = vshrl.u32 %v1848, 7
  %v1850 = vsub.s32 2, %v1849
  %v1851 = vrot.slane %v1433, %v1850
  %v1852 = vlaneseq
  %v1853 = vshrl.u32 %v1852, 7
  %v1854 = vsub.s32 3, %v1853
  %v1855 = vrot.slane %v1433, %v1854
  %v1856 = vlaneseq
  %v1857 = vshrl.u32 %v1856, 7
  %v1858 = vsub.s32 0, %v1857
  %v1859 = vrot.slane %v1447, %v1858
  %v1860 = vlaneseq
  %v1861 = vshrl.u32 %v1860, 7
  %v1862 = vsub.s32 1, %v1861
  %v1863 = vrot.slane %v1447, %v1862
  %v1864 = vlaneseq
  %v1865 = vshrl.u32 %v1864, 7
  %v1866 = vsub.s32 2, %v1865
  %v1867 = vrot.slane %v1447, %v1866
  %v1868 = vlaneseq
  %v1869 = vshrl.u32 %v1868, 7
  %v1870 = vsub.s32 3, %v1869
  %v1871 = vrot.slane %v1447, %v1870
  %v1872 = vlaneseq
  %v1873 = vshrl.u32 %v1872, 7
  %v1874 = vsub.s32 0, %v1873
  %v1875 = vrot.slane %v1449, %v1874
  %v1876 = vlaneseq
  %v1877 = vshrl.u32 %v1876, 7
  %v1878 = vsub.s32 1, %v1877
  %v1879 = vrot.slane %v1449, %v1878
  %v1880 = vlaneseq
  %v1881 = vshrl.u32 %v1880, 7
  %v1882 = vsub.s32 2, %v1881
  %v1883 = vrot.slane %v1449, %v1882
  %v1884 = vlaneseq
  %v1885 = vshrl.u32 %v1884, 7
  %v1886 = vsub.s32 3, %v1885
  %v1887 = vrot.slane %v1449, %v1886
  %v1888 = vlaneseq
  %v1889 = vshrl.u32 %v1888, 7
  %v1890 = vsub.s32 0, %v1889
  %v1891 = vrot.slane %v1451, %v1890
  %v1892 = vlaneseq
  %v1893 = vshrl.u32 %v1892, 7
  %v1894 = vsub.s32 1, %v1893
  %v1895 = vrot.slane %v1451, %v1894
  %v1896 = vlaneseq
  %v1897 = vshrl.u32 %v1896, 7
  %v1898 = vsub.s32 2, %v1897
  %v1899 = vrot.slane %v1451, %v1898
  %v1900 = vlaneseq
  %v1901 = vshrl.u32 %v1900, 7
  %v1902 = vsub.s32 3, %v1901
  %v1903 = vrot.slane %v1451, %v1902
  %v1904 = vlaneseq
  %v1905 = vshrl.u32 %v1904, 7
  %v1906 = vsub.s32 0, %v1905
  %v1907 = vrot.slane %v1494, %v1906
  %v1908 = vlaneseq
  %v1909 = vshrl.u32 %v1908, 7
  %v1910 = vsub.s32 1, %v1909
  %v1911 = vrot.slane %v1494, %v1910
  %v1912 = vlaneseq
  %v1913 = vshrl.u32 %v1912, 7
  %v1914 = vsub.s32 2, %v1913
  %v1915 = vrot.slane %v1494, %v1914
  %v1916 = vlaneseq
  %v1917 = vshrl.u32 %v1916, 7
  %v1918 = vsub.s32 3, %v1917
  %v1919 = vrot.slane %v1494, %v1918
  %v1920 = vlaneseq
  %v1921 = vshrl.u32 %v1920, 7
  %v1922 = vsub.s32 0, %v1921
  %v1923 = vrot.slane %v1508, %v1922
  %v1924 = vlaneseq
  %v1925 = vshrl.u32 %v1924, 7
  %v1926 = vsub.s32 1, %v1925
  %v1927 = vrot.slane %v1508, %v1926
  %v1928 = vlaneseq
  %v1929 = vshrl.u32 %v1928, 7
  %v1930 = vsub.s32 2, %v1929
  %v1931 = vrot.slane %v1508, %v1930
  %v1932 = vlaneseq
  %v1933 = vshrl.u32 %v1932, 7
  %v1934 = vsub.s32 3, %v1933
  %v1935 = vrot.slane %v1508, %v1934
  %v1936 = vlaneseq
  %v1937 = vshrl.u32 %v1936, 7
  %v1938 = vsub.s32 0, %v1937
  %v1939 = vrot.slane %v1516, %v1938
  %v1940 = vlaneseq
  %v1941 = vshrl.u32 %v1940, 7
  %v1942 = vsub.s32 1, %v1941
  %v1943 = vrot.slane %v1516, %v1942
  %v1944 = vlaneseq
  %v1945 = vshrl.u32 %v1944, 7
  %v1946 = vsub.s32 2, %v1945
  %v1947 = vrot.slane %v1516, %v1946
  %v1948 = vlaneseq
  %v1949 = vshrl.u32 %v1948, 7
  %v1950 = vsub.s32 3, %v1949
  %v1951 = vrot.slane %v1516, %v1950
  %v1952 = vlaneseq
  %v1953 = vshrl.u32 %v1952, 7
  %v1954 = vsub.s32 0, %v1953
  %v1955 = vrot.slane %v1518, %v1954
  %v1956 = vlaneseq
  %v1957 = vshrl.u32 %v1956, 7
  %v1958 = vsub.s32 1, %v1957
  %v1959 = vrot.slane %v1518, %v1958
  %v1960 = vlaneseq
  %v1961 = vshrl.u32 %v1960, 7
  %v1962 = vsub.s32 2, %v1961
  %v1963 = vrot.slane %v1518, %v1962
  %v1964 = vlaneseq
  %v1965 = vshrl.u32 %v1964, 7
  %v1966 = vsub.s32 3, %v1965
  %v1967 = vrot.slane %v1518, %v1966
  %v1968 = vlaneseq
  %v1969 = vshrl.u32 %v1968, 7
  %v1970 = vsub.s32 0, %v1969
  %v1971 = vrot.slane %v1501, %v1970
  %v1972 = vlaneseq
  %v1973 = vshrl.u32 %v1972, 7
  %v1974 = vsub.s32 1, %v1973
  %v1975 = vrot.slane %v1501, %v1974
  %v1976 = vlaneseq
  %v1977 = vshrl.u32 %v1976, 7
  %v1978 = vsub.s32 2, %v1977
  %v1979 = vrot.slane %v1501, %v1978
  %v1980 = vlaneseq
  %v1981 = vshrl.u32 %v1980, 7
  %v1982 = vsub.s32 3, %v1981
  %v1983 = vrot.slane %v1501, %v1982
  %v1984 = vlaneseq
  %v1985 = vshrl.u32 %v1984, 7
  %v1986 = vsub.s32 0, %v1985
  %v1987 = vrot.slane %v1515, %v1986
  %v1988 = vlaneseq
  %v1989 = vshrl.u32 %v1988, 7
  %v1990 = vsub.s32 1, %v1989
  %v1991 = vrot.slane %v1515, %v1990
  %v1992 = vlaneseq
  %v1993 = vshrl.u32 %v1992, 7
  %v1994 = vsub.s32 2, %v1993
  %v1995 = vrot.slane %v1515, %v1994
  %v1996 = vlaneseq
  %v1997 = vshrl.u32 %v1996, 7
  %v1998 = vsub.s32 3, %v1997
  %v1999 = vrot.slane %v1515, %v1998
  %v2000 = vlaneseq
  %v2001 = vshrl.u32 %v2000, 7
  %v2002 = vsub.s32 0, %v2001
  %v2003 = vrot.slane %v1517, %v2002
  %v2004 = vlaneseq
  %v2005 = vshrl.u32 %v2004, 7
  %v2006 = vsub.s32 1, %v2005
  %v2007 = vrot.slane %v1517, %v2006
  %v2008 = vlaneseq
  %v2009 = vshrl.u32 %v2008, 7
  %v2010 = vsub.s32 2, %v2009
  %v2011 = vrot.slane %v1517, %v2010
  %v2012 = vlaneseq
  %v2013 = vshrl.u32 %v2012, 7
  %v2014 = vsub.s32 3, %v2013
  %v2015 = vrot.slane %v1517, %v2014
  %v2016 = vlaneseq
  %v2017 = vshrl.u32 %v2016, 7
  %v2018 = vsub.s32 0, %v2017
  %v2019 = vrot.slane %v1519, %v2018
  %v2020 = vlaneseq
  %v2021 = vshrl.u32 %v2020, 7
  %v2022 = vsub.s32 1, %v2021
  %v2023 = vrot.slane %v1519, %v2022
  %v2024 = vlaneseq
  %v2025 = vshrl.u32 %v2024, 7
  %v2026 = vsub.s32 2, %v2025
  %v2027 = vrot.slane %v1519, %v2026
  %v2028 = vlaneseq
  %v2029 = vshrl.u32 %v2028, 7
  %v2030 = vsub.s32 3, %v2029
  %v2031 = vrot.slane %v1519, %v2030
  %v2160 = vadd.f32 %v865, %v1523
  %v2161 = vadd.f32 %v867, %v1527
  %v2162 = vadd.f32 %v1058, %v1531
  %v2163 = vadd.f32 %v1060, %v1535
  %v2164 = vadd.f32 %v869, %v1539
  %v2165 = vadd.f32 %v871, %v1543
  %v2166 = vadd.f32 %v1062, %v1547
  %v2167 = vadd.f32 %v1064, %v1551
  %v2168 = vadd.f32 %v875, %v1555
  %v2169 = vadd.f32 %v877, %v1559
  %v2170 = vadd.f32 %v1068, %v1563
  %v2171 = vadd.f32 %v1070, %v1567
  %v2172 = vadd.f32 %v879, %v1571
  %v2173 = vadd.f32 %v881, %v1575
  %v2174 = vadd.f32 %v1072, %v1579
  %v2175 = vadd.f32 %v1074, %v1583
  %v2176 = vadd.f32 %v885, %v1587
  %v2177 = vadd.f32 %v887, %v1591
  %v2178 = vadd.f32 %v1078, %v1595
  %v2179 = vadd.f32 %v1080, %v1599
  %v2180 = vadd.f32 %v889, %v1603
  %v2181 = vadd.f32 %v891, %v1607
  %v2182 = vadd.f32 %v1082, %v1611
  %v2183 = vadd.f32 %v1084, %v1615
  %v2184 = vadd.f32 %v895, %v1619
  %v2185 = vadd.f32 %v897, %v1623
  %v2186 = vadd.f32 %v1088, %v1627
  %v2187 = vadd.f32 %v1090, %v1631
  %v2188 = vadd.f32 %v899, %v1635
  %v2189 = vadd.f32 %v901, %v1639
  %v2190 = vadd.f32 %v1092, %v1643
  %v2191 = vadd.f32 %v1094, %v1647
  %v2192 = vadd.f32 %v905, %v1651
  %v2193 = vadd.f32 %v907, %v1655
  %v2194 = vadd.f32 %v1098, %v1659
  %v2195 = vadd.f32 %v1100, %v1663
  %v2196 = vadd.f32 %v909, %v1667
  %v2197 = vadd.f32 %v911, %v1671
  %v2198 = vadd.f32 %v1102, %v1675
  %v2199 = vadd.f32 %v1104, %v1679
  %v2200 = vadd.f32 %v915, %v1683
  %v2201 = vadd.f32 %v917, %v1687
  %v2202 = vadd.f32 %v1108, %v1691
  %v2203 = vadd.f32 %v1110, %v1695
  %v2204 = vadd.f32 %v919, %v1699
  %v2205 = vadd.f32 %v921, %v1703
  %v2206 = vadd.f32 %v1112, %v1707
  %v2207 = vadd.f32 %v1114, %v1711
  %v2208 = vadd.f32 %v925, %v1715
  %v2209 = vadd.f32 %v927, %v1719
  %v2210 = vadd.f32 %v1118, %v1723
  %v2211 = vadd.f32 %v1120, %v1727
  %v2212 = vadd.f32 %v929, %v1731
  %v2213 = vadd.f32 %v931, %v1735
  %v2214 = vadd.f32 %v1122, %v1739
  %v2215 = vadd.f32 %v1124, %v1743
  %v2216 = vadd.f32 %v935, %v1747
  %v2217 = vadd.f32 %v937, %v1751
  %v2218 = vadd.f32 %v1128, %v1755
  %v2219 = vadd.f32 %v1130, %v1759
  %v2220 = vadd.f32 %v939, %v1763
  %v2221 = vadd.f32 %v941, %v1767
  %v2222 = vadd.f32 %v1132, %v1771
  %v2223 = vadd.f32 %v1134, %v1775
  %v2224 = vadd.f32 %v945, %v1779
  %v2225 = vadd.f32 %v947, %v1783
  %v2226 = vadd.f32 %v1138, %v1787
  %v2227 = vadd.f32 %v1140, %v1791
  %v2228 = vadd.f32 %v949, %v1795
  %v2229 = vadd.f32 %v951, %v1799
  %v2230 = vadd.f32 %v1142, %v1803
  %v2231 = vadd.f32 %v1144, %v1807
  %v2232 = vadd.f32 %v955, %v1811
  %v2233 = vadd.f32 %v957, %v1815
  %v2234 = vadd.f32 %v1148, %v1819
  %v2235 = vadd.f32 %v1150, %v1823
  %v2236 = vadd.f32 %v959, %v1827
  %v2237 = vadd.f32 %v961, %v1831
  %v2238 = vadd.f32 %v1152, %v1835
  %v2239 = vadd.f32 %v1154, %v1839
  %v2240 = vadd.f32 %v965, %v1843
  %v2241 = vadd.f32 %v967, %v1847
  %v2242 = vadd.f32 %v1158, %v1851
  %v2243 = vadd.f32 %v1160, %v1855
  %v2244 = vadd.f32 %v969, %v1859
  %v2245 = vadd.f32 %v971, %v1863
  %v2246 = vadd.f32 %v1162, %v1867
  %v2247 = vadd.f32 %v1164, %v1871
  %v2248 = vadd.f32 %v975, %v1875
  %v2249 = vadd.f32 %v977, %v1879
  %v2250 = vadd.f32 %v1168, %v1883
  %v2251 = vadd.f32 %v1170, %v1887
  %v2252 = vadd.f32 %v979, %v1891
  %v2253 = vadd.f32 %v981, %v1895
  %v2254 = vadd.f32 %v1172, %v1899
  %v2255 = vadd.f32 %v1174, %v1903
  %v2256 = vadd.f32 %v985, %v1907
  %v2257 = vadd.f32 %v987, %v1911
  %v2258 = vadd.f32 %v1178, %v1915
  %v2259 = vadd.f32 %v1180, %v1919
  %v2260 = vadd.f32 %v989, %v1923
  %v2261 = vadd.f32 %v991, %v1927
  %v2262 = vadd.f32 %v1182, %v1931
  %v2263 = vadd.f32 %v1184, %v1935
  %v2264 = vadd.f32 %v995, %v1939
  %v2265 = vadd.f32 %v997, %v1943
  %v2266 = vadd.f32 %v1188, %v1947
  %v2267 = vadd.f32 %v1190, %v1951
  %v2268 = vadd.f32 %v999, %v1955
  %v2269 = vadd.f32 %v1001, %v1959
  %v2270 = vadd.f32 %v1192, %v1963
  %v2271 = vadd.f32 %v1194, %v1967
  %v2272 = vadd.f32 %v1005, %v1971
  %v2273 = vadd.f32 %v1007, %v1975
  %v2274 = vadd.f32 %v1198, %v1979
  %v2275 = vadd.f32 %v1200, %v1983
  %v2276 = vadd.f32 %v1009, %v1987
  %v2277 = vadd.f32 %v1011, %v1991
  %v2278 = vadd.f32 %v1202, %v1995
  %v2279 = vadd.f32 %v1204, %v1999
  %v2280 = vadd.f32 %v1015, %v2003
  %v2281 = vadd.f32 %v1017, %v2007
  %v2282 = vadd.f32 %v1208, %v2011
  %v2283 = vadd.f32 %v1210, %v2015
  %v2284 = vadd.f32 %v1019, %v2019
  %v2285 = vadd.f32 %v1021, %v2023
  %v2286 = vadd.f32 %v1212, %v2027
  %v2287 = vadd.f32 %v1214, %v2031
  %v2288 = vlaneseq
  %v2289 = vshrl.u32 %v2288, 7
  %v2290 = vadd.s32 %v2289, 8
  %v2291 = vadd.s32 %v2289, 16
  %v2292 = vadd.s32 %v2289, 24
  %v2293 = vadd.s32 %v2289, 32
  %v2294 = vadd.s32 %v2289, 40
  %v2295 = vadd.s32 %v2289, 48
  %v2296 = vadd.s32 %v2289, 56
  %v2297 = vadd.s32 %v2289, 64
  %v2298 = vadd.s32 %v2289, 72
  %v2299 = vadd.s32 %v2289, 80
  %v2300 = vadd.s32 %v2289, 88
  %v2301 = vadd.s32 %v2289, 96
  %v2302 = vadd.s32 %v2289, 104
  %v2303 = vadd.s32 %v2289, 112
  %v2304 = vadd.s32 %v2289, 120
  %v2305 = vadd.s32 %v2289, 128
  %v2306 = vadd.s32 %v2289, 136
  %v2307 = vadd.s32 %v2289, 144
  %v2308 = vadd.s32 %v2289, 152
  %v2309 = vadd.s32 %v2289, 160
  %v2310 = vadd.s32 %v2289, 168
  %v2311 = vadd.s32 %v2289, 176
  %v2312 = vadd.s32 %v2289, 184
  %v2313 = vadd.s32 %v2289, 192
  %v2314 = vadd.s32 %v2289, 200
  %v2315 = vadd.s32 %v2289, 208
  %v2316 = vadd.s32 %v2289, 216
  %v2317 = vadd.s32 %v2289, 224
  %v2318 = vadd.s32 %v2289, 232
  %v2319 = vadd.s32 %v2289, 240
  %v2320 = vadd.s32 %v2289, 248
  %vm2321 = vcmp.lt.s32.totalorder %v2289, 0
  %v2322 = vsub.s32 0, %v2289
  %v2323 = vsel %vm2321, %v2322, %v2289
  %v2324 = vshrl.u32 %v2323, 3
  %v2325 = vand.u32 %v2323, 7
  %v2326 = vsub.s32 0, %v2325
  %v2327 = vsel %vm2321, %v2326, %v2325
  %vm2328 = vcmp.lt.s32.totalorder %v2290, 0
  %v2329 = vsub.s32 0, %v2290
  %v2330 = vsel %vm2328, %v2329, %v2290
  %v2331 = vshrl.u32 %v2330, 3
  %v2332 = vand.u32 %v2330, 7
  %v2333 = vsub.s32 0, %v2332
  %v2334 = vsel %vm2328, %v2333, %v2332
  %vm2335 = vcmp.lt.s32.totalorder %v2291, 0
  %v2336 = vsub.s32 0, %v2291
  %v2337 = vsel %vm2335, %v2336, %v2291
  %v2338 = vshrl.u32 %v2337, 3
  %v2339 = vand.u32 %v2337, 7
  %v2340 = vsub.s32 0, %v2339
  %v2341 = vsel %vm2335, %v2340, %v2339
  %vm2342 = vcmp.lt.s32.totalorder %v2292, 0
  %v2343 = vsub.s32 0, %v2292
  %v2344 = vsel %vm2342, %v2343, %v2292
  %v2345 = vshrl.u32 %v2344, 3
  %v2346 = vand.u32 %v2344, 7
  %v2347 = vsub.s32 0, %v2346
  %v2348 = vsel %vm2342, %v2347, %v2346
  %vm2349 = vcmp.lt.s32.totalorder %v2293, 0
  %v2350 = vsub.s32 0, %v2293
  %v2351 = vsel %vm2349, %v2350, %v2293
  %v2352 = vshrl.u32 %v2351, 3
  %v2353 = vand.u32 %v2351, 7
  %v2354 = vsub.s32 0, %v2353
  %v2355 = vsel %vm2349, %v2354, %v2353
  %vm2356 = vcmp.lt.s32.totalorder %v2294, 0
  %v2357 = vsub.s32 0, %v2294
  %v2358 = vsel %vm2356, %v2357, %v2294
  %v2359 = vshrl.u32 %v2358, 3
  %v2360 = vand.u32 %v2358, 7
  %v2361 = vsub.s32 0, %v2360
  %v2362 = vsel %vm2356, %v2361, %v2360
  %vm2363 = vcmp.lt.s32.totalorder %v2295, 0
  %v2364 = vsub.s32 0, %v2295
  %v2365 = vsel %vm2363, %v2364, %v2295
  %v2366 = vshrl.u32 %v2365, 3
  %v2367 = vand.u32 %v2365, 7
  %v2368 = vsub.s32 0, %v2367
  %v2369 = vsel %vm2363, %v2368, %v2367
  %vm2370 = vcmp.lt.s32.totalorder %v2296, 0
  %v2371 = vsub.s32 0, %v2296
  %v2372 = vsel %vm2370, %v2371, %v2296
  %v2373 = vshrl.u32 %v2372, 3
  %v2374 = vand.u32 %v2372, 7
  %v2375 = vsub.s32 0, %v2374
  %v2376 = vsel %vm2370, %v2375, %v2374
  %vm2377 = vcmp.lt.s32.totalorder %v2297, 0
  %v2378 = vsub.s32 0, %v2297
  %v2379 = vsel %vm2377, %v2378, %v2297
  %v2380 = vshrl.u32 %v2379, 3
  %v2381 = vand.u32 %v2379, 7
  %v2382 = vsub.s32 0, %v2381
  %v2383 = vsel %vm2377, %v2382, %v2381
  %vm2384 = vcmp.lt.s32.totalorder %v2298, 0
  %v2385 = vsub.s32 0, %v2298
  %v2386 = vsel %vm2384, %v2385, %v2298
  %v2387 = vshrl.u32 %v2386, 3
  %v2388 = vand.u32 %v2386, 7
  %v2389 = vsub.s32 0, %v2388
  %v2390 = vsel %vm2384, %v2389, %v2388
  %vm2391 = vcmp.lt.s32.totalorder %v2299, 0
  %v2392 = vsub.s32 0, %v2299
  %v2393 = vsel %vm2391, %v2392, %v2299
  %v2394 = vshrl.u32 %v2393, 3
  %v2395 = vand.u32 %v2393, 7
  %v2396 = vsub.s32 0, %v2395
  %v2397 = vsel %vm2391, %v2396, %v2395
  %vm2398 = vcmp.lt.s32.totalorder %v2300, 0
  %v2399 = vsub.s32 0, %v2300
  %v2400 = vsel %vm2398, %v2399, %v2300
  %v2401 = vshrl.u32 %v2400, 3
  %v2402 = vand.u32 %v2400, 7
  %v2403 = vsub.s32 0, %v2402
  %v2404 = vsel %vm2398, %v2403, %v2402
  %vm2405 = vcmp.lt.s32.totalorder %v2301, 0
  %v2406 = vsub.s32 0, %v2301
  %v2407 = vsel %vm2405, %v2406, %v2301
  %v2408 = vshrl.u32 %v2407, 3
  %v2409 = vand.u32 %v2407, 7
  %v2410 = vsub.s32 0, %v2409
  %v2411 = vsel %vm2405, %v2410, %v2409
  %vm2412 = vcmp.lt.s32.totalorder %v2302, 0
  %v2413 = vsub.s32 0, %v2302
  %v2414 = vsel %vm2412, %v2413, %v2302
  %v2415 = vshrl.u32 %v2414, 3
  %v2416 = vand.u32 %v2414, 7
  %v2417 = vsub.s32 0, %v2416
  %v2418 = vsel %vm2412, %v2417, %v2416
  %vm2419 = vcmp.lt.s32.totalorder %v2303, 0
  %v2420 = vsub.s32 0, %v2303
  %v2421 = vsel %vm2419, %v2420, %v2303
  %v2422 = vshrl.u32 %v2421, 3
  %v2423 = vand.u32 %v2421, 7
  %v2424 = vsub.s32 0, %v2423
  %v2425 = vsel %vm2419, %v2424, %v2423
  %vm2426 = vcmp.lt.s32.totalorder %v2304, 0
  %v2427 = vsub.s32 0, %v2304
  %v2428 = vsel %vm2426, %v2427, %v2304
  %v2429 = vshrl.u32 %v2428, 3
  %v2430 = vand.u32 %v2428, 7
  %v2431 = vsub.s32 0, %v2430
  %v2432 = vsel %vm2426, %v2431, %v2430
  %vm2433 = vcmp.lt.s32.totalorder %v2305, 0
  %v2434 = vsub.s32 0, %v2305
  %v2435 = vsel %vm2433, %v2434, %v2305
  %v2436 = vshrl.u32 %v2435, 3
  %v2437 = vand.u32 %v2435, 7
  %v2438 = vsub.s32 0, %v2437
  %v2439 = vsel %vm2433, %v2438, %v2437
  %vm2440 = vcmp.lt.s32.totalorder %v2306, 0
  %v2441 = vsub.s32 0, %v2306
  %v2442 = vsel %vm2440, %v2441, %v2306
  %v2443 = vshrl.u32 %v2442, 3
  %v2444 = vand.u32 %v2442, 7
  %v2445 = vsub.s32 0, %v2444
  %v2446 = vsel %vm2440, %v2445, %v2444
  %vm2447 = vcmp.lt.s32.totalorder %v2307, 0
  %v2448 = vsub.s32 0, %v2307
  %v2449 = vsel %vm2447, %v2448, %v2307
  %v2450 = vshrl.u32 %v2449, 3
  %v2451 = vand.u32 %v2449, 7
  %v2452 = vsub.s32 0, %v2451
  %v2453 = vsel %vm2447, %v2452, %v2451
  %vm2454 = vcmp.lt.s32.totalorder %v2308, 0
  %v2455 = vsub.s32 0, %v2308
  %v2456 = vsel %vm2454, %v2455, %v2308
  %v2457 = vshrl.u32 %v2456, 3
  %v2458 = vand.u32 %v2456, 7
  %v2459 = vsub.s32 0, %v2458
  %v2460 = vsel %vm2454, %v2459, %v2458
  %vm2461 = vcmp.lt.s32.totalorder %v2309, 0
  %v2462 = vsub.s32 0, %v2309
  %v2463 = vsel %vm2461, %v2462, %v2309
  %v2464 = vshrl.u32 %v2463, 3
  %v2465 = vand.u32 %v2463, 7
  %v2466 = vsub.s32 0, %v2465
  %v2467 = vsel %vm2461, %v2466, %v2465
  %vm2468 = vcmp.lt.s32.totalorder %v2310, 0
  %v2469 = vsub.s32 0, %v2310
  %v2470 = vsel %vm2468, %v2469, %v2310
  %v2471 = vshrl.u32 %v2470, 3
  %v2472 = vand.u32 %v2470, 7
  %v2473 = vsub.s32 0, %v2472
  %v2474 = vsel %vm2468, %v2473, %v2472
  %vm2475 = vcmp.lt.s32.totalorder %v2311, 0
  %v2476 = vsub.s32 0, %v2311
  %v2477 = vsel %vm2475, %v2476, %v2311
  %v2478 = vshrl.u32 %v2477, 3
  %v2479 = vand.u32 %v2477, 7
  %v2480 = vsub.s32 0, %v2479
  %v2481 = vsel %vm2475, %v2480, %v2479
  %vm2482 = vcmp.lt.s32.totalorder %v2312, 0
  %v2483 = vsub.s32 0, %v2312
  %v2484 = vsel %vm2482, %v2483, %v2312
  %v2485 = vshrl.u32 %v2484, 3
  %v2486 = vand.u32 %v2484, 7
  %v2487 = vsub.s32 0, %v2486
  %v2488 = vsel %vm2482, %v2487, %v2486
  %vm2489 = vcmp.lt.s32.totalorder %v2313, 0
  %v2490 = vsub.s32 0, %v2313
  %v2491 = vsel %vm2489, %v2490, %v2313
  %v2492 = vshrl.u32 %v2491, 3
  %v2493 = vand.u32 %v2491, 7
  %v2494 = vsub.s32 0, %v2493
  %v2495 = vsel %vm2489, %v2494, %v2493
  %vm2496 = vcmp.lt.s32.totalorder %v2314, 0
  %v2497 = vsub.s32 0, %v2314
  %v2498 = vsel %vm2496, %v2497, %v2314
  %v2499 = vshrl.u32 %v2498, 3
  %v2500 = vand.u32 %v2498, 7
  %v2501 = vsub.s32 0, %v2500
  %v2502 = vsel %vm2496, %v2501, %v2500
  %vm2503 = vcmp.lt.s32.totalorder %v2315, 0
  %v2504 = vsub.s32 0, %v2315
  %v2505 = vsel %vm2503, %v2504, %v2315
  %v2506 = vshrl.u32 %v2505, 3
  %v2507 = vand.u32 %v2505, 7
  %v2508 = vsub.s32 0, %v2507
  %v2509 = vsel %vm2503, %v2508, %v2507
  %vm2510 = vcmp.lt.s32.totalorder %v2316, 0
  %v2511 = vsub.s32 0, %v2316
  %v2512 = vsel %vm2510, %v2511, %v2316
  %v2513 = vshrl.u32 %v2512, 3
  %v2514 = vand.u32 %v2512, 7
  %v2515 = vsub.s32 0, %v2514
  %v2516 = vsel %vm2510, %v2515, %v2514
  %vm2517 = vcmp.lt.s32.totalorder %v2317, 0
  %v2518 = vsub.s32 0, %v2317
  %v2519 = vsel %vm2517, %v2518, %v2317
  %v2520 = vshrl.u32 %v2519, 3
  %v2521 = vand.u32 %v2519, 7
  %v2522 = vsub.s32 0, %v2521
  %v2523 = vsel %vm2517, %v2522, %v2521
  %vm2524 = vcmp.lt.s32.totalorder %v2318, 0
  %v2525 = vsub.s32 0, %v2318
  %v2526 = vsel %vm2524, %v2525, %v2318
  %v2527 = vshrl.u32 %v2526, 3
  %v2528 = vand.u32 %v2526, 7
  %v2529 = vsub.s32 0, %v2528
  %v2530 = vsel %vm2524, %v2529, %v2528
  %vm2531 = vcmp.lt.s32.totalorder %v2319, 0
  %v2532 = vsub.s32 0, %v2319
  %v2533 = vsel %vm2531, %v2532, %v2319
  %v2534 = vshrl.u32 %v2533, 3
  %v2535 = vand.u32 %v2533, 7
  %v2536 = vsub.s32 0, %v2535
  %v2537 = vsel %vm2531, %v2536, %v2535
  %vm2538 = vcmp.lt.s32.totalorder %v2320, 0
  %v2539 = vsub.s32 0, %v2320
  %v2540 = vsel %vm2538, %v2539, %v2320
  %v2541 = vshrl.u32 %v2540, 3
  %v2542 = vand.u32 %v2540, 7
  %v2543 = vsub.s32 0, %v2542
  %v2544 = vsel %vm2538, %v2543, %v2542
  %vm2545 = vcmp.ne.s32.totalorder %v2327, 0
  %vm2546 = vcmp.ne.s32.totalorder %v2334, 0
  %vm2547 = vcmp.ne.s32.totalorder %v2341, 0
  %vm2548 = vcmp.ne.s32.totalorder %v2348, 0
  %vm2549 = vcmp.ne.s32.totalorder %v2355, 0
  %vm2550 = vcmp.ne.s32.totalorder %v2362, 0
  %vm2551 = vcmp.ne.s32.totalorder %v2369, 0
  %vm2552 = vcmp.ne.s32.totalorder %v2376, 0
  %vm2553 = vcmp.ne.s32.totalorder %v2383, 0
  %vm2554 = vcmp.ne.s32.totalorder %v2390, 0
  %vm2555 = vcmp.ne.s32.totalorder %v2397, 0
  %vm2556 = vcmp.ne.s32.totalorder %v2404, 0
  %vm2557 = vcmp.ne.s32.totalorder %v2411, 0
  %vm2558 = vcmp.ne.s32.totalorder %v2418, 0
  %vm2559 = vcmp.ne.s32.totalorder %v2425, 0
  %vm2560 = vcmp.ne.s32.totalorder %v2432, 0
  %vm2561 = vcmp.ne.s32.totalorder %v2439, 0
  %vm2562 = vcmp.ne.s32.totalorder %v2446, 0
  %vm2563 = vcmp.ne.s32.totalorder %v2453, 0
  %vm2564 = vcmp.ne.s32.totalorder %v2460, 0
  %vm2565 = vcmp.ne.s32.totalorder %v2467, 0
  %vm2566 = vcmp.ne.s32.totalorder %v2474, 0
  %vm2567 = vcmp.ne.s32.totalorder %v2481, 0
  %vm2568 = vcmp.ne.s32.totalorder %v2488, 0
  %vm2569 = vcmp.ne.s32.totalorder %v2495, 0
  %vm2570 = vcmp.ne.s32.totalorder %v2502, 0
  %vm2571 = vcmp.ne.s32.totalorder %v2509, 0
  %vm2572 = vcmp.ne.s32.totalorder %v2516, 0
  %vm2573 = vcmp.ne.s32.totalorder %v2523, 0
  %vm2574 = vcmp.ne.s32.totalorder %v2530, 0
  %vm2575 = vcmp.ne.s32.totalorder %v2537, 0
  %vm2576 = vcmp.ne.s32.totalorder %v2544, 0
  %vm2577 = vcmp.lt.s32.totalorder %v2327, 0
  %vm2578 = vcmp.lt.s32.totalorder %v2334, 0
  %vm2579 = vcmp.lt.s32.totalorder %v2341, 0
  %vm2580 = vcmp.lt.s32.totalorder %v2348, 0
  %vm2581 = vcmp.lt.s32.totalorder %v2355, 0
  %vm2582 = vcmp.lt.s32.totalorder %v2362, 0
  %vm2583 = vcmp.lt.s32.totalorder %v2369, 0
  %vm2584 = vcmp.lt.s32.totalorder %v2376, 0
  %vm2585 = vcmp.lt.s32.totalorder %v2383, 0
  %vm2586 = vcmp.lt.s32.totalorder %v2390, 0
  %vm2587 = vcmp.lt.s32.totalorder %v2397, 0
  %vm2588 = vcmp.lt.s32.totalorder %v2404, 0
  %vm2589 = vcmp.lt.s32.totalorder %v2411, 0
  %vm2590 = vcmp.lt.s32.totalorder %v2418, 0
  %vm2591 = vcmp.lt.s32.totalorder %v2425, 0
  %vm2592 = vcmp.lt.s32.totalorder %v2432, 0
  %vm2593 = vcmp.lt.s32.totalorder %v2439, 0
  %vm2594 = vcmp.lt.s32.totalorder %v2446, 0
  %vm2595 = vcmp.lt.s32.totalorder %v2453, 0
  %vm2596 = vcmp.lt.s32.totalorder %v2460, 0
  %vm2597 = vcmp.lt.s32.totalorder %v2467, 0
  %vm2598 = vcmp.lt.s32.totalorder %v2474, 0
  %vm2599 = vcmp.lt.s32.totalorder %v2481, 0
  %vm2600 = vcmp.lt.s32.totalorder %v2488, 0
  %vm2601 = vcmp.lt.s32.totalorder %v2495, 0
  %vm2602 = vcmp.lt.s32.totalorder %v2502, 0
  %vm2603 = vcmp.lt.s32.totalorder %v2509, 0
  %vm2604 = vcmp.lt.s32.totalorder %v2516, 0
  %vm2605 = vcmp.lt.s32.totalorder %v2523, 0
  %vm2606 = vcmp.lt.s32.totalorder %v2530, 0
  %vm2607 = vcmp.lt.s32.totalorder %v2537, 0
  %vm2608 = vcmp.lt.s32.totalorder %v2544, 0
  %vm2609 = vmand %vm2577, %vm2545
  %vm2610 = vmand %vm2578, %vm2546
  %vm2611 = vmand %vm2579, %vm2547
  %vm2612 = vmand %vm2580, %vm2548
  %vm2613 = vmand %vm2581, %vm2549
  %vm2614 = vmand %vm2582, %vm2550
  %vm2615 = vmand %vm2583, %vm2551
  %vm2616 = vmand %vm2584, %vm2552
  %vm2617 = vmand %vm2585, %vm2553
  %vm2618 = vmand %vm2586, %vm2554
  %vm2619 = vmand %vm2587, %vm2555
  %vm2620 = vmand %vm2588, %vm2556
  %vm2621 = vmand %vm2589, %vm2557
  %vm2622 = vmand %vm2590, %vm2558
  %vm2623 = vmand %vm2591, %vm2559
  %vm2624 = vmand %vm2592, %vm2560
  %vm2625 = vmand %vm2593, %vm2561
  %vm2626 = vmand %vm2594, %vm2562
  %vm2627 = vmand %vm2595, %vm2563
  %vm2628 = vmand %vm2596, %vm2564
  %vm2629 = vmand %vm2597, %vm2565
  %vm2630 = vmand %vm2598, %vm2566
  %vm2631 = vmand %vm2599, %vm2567
  %vm2632 = vmand %vm2600, %vm2568
  %vm2633 = vmand %vm2601, %vm2569
  %vm2634 = vmand %vm2602, %vm2570
  %vm2635 = vmand %vm2603, %vm2571
  %vm2636 = vmand %vm2604, %vm2572
  %vm2637 = vmand %vm2605, %vm2573
  %vm2638 = vmand %vm2606, %vm2574
  %vm2639 = vmand %vm2607, %vm2575
  %vm2640 = vmand %vm2608, %vm2576
  %v2641 = vadd.s32 %v2327, 8
  %v2642 = vadd.s32 %v2334, 8
  %v2643 = vadd.s32 %v2341, 8
  %v2644 = vadd.s32 %v2348, 8
  %v2645 = vadd.s32 %v2355, 8
  %v2646 = vadd.s32 %v2362, 8
  %v2647 = vadd.s32 %v2369, 8
  %v2648 = vadd.s32 %v2376, 8
  %v2649 = vadd.s32 %v2383, 8
  %v2650 = vadd.s32 %v2390, 8
  %v2651 = vadd.s32 %v2397, 8
  %v2652 = vadd.s32 %v2404, 8
  %v2653 = vadd.s32 %v2411, 8
  %v2654 = vadd.s32 %v2418, 8
  %v2655 = vadd.s32 %v2425, 8
  %v2656 = vadd.s32 %v2432, 8
  %v2657 = vadd.s32 %v2439, 8
  %v2658 = vadd.s32 %v2446, 8
  %v2659 = vadd.s32 %v2453, 8
  %v2660 = vadd.s32 %v2460, 8
  %v2661 = vadd.s32 %v2467, 8
  %v2662 = vadd.s32 %v2474, 8
  %v2663 = vadd.s32 %v2481, 8
  %v2664 = vadd.s32 %v2488, 8
  %v2665 = vadd.s32 %v2495, 8
  %v2666 = vadd.s32 %v2502, 8
  %v2667 = vadd.s32 %v2509, 8
  %v2668 = vadd.s32 %v2516, 8
  %v2669 = vadd.s32 %v2523, 8
  %v2670 = vadd.s32 %v2530, 8
  %v2671 = vadd.s32 %v2537, 8
  %v2672 = vadd.s32 %v2544, 8
  %v2673 = vsel %vm2609, %v2641, %v2327
  %v2674 = vsel %vm2610, %v2642, %v2334
  %v2675 = vsel %vm2611, %v2643, %v2341
  %v2676 = vsel %vm2612, %v2644, %v2348
  %v2677 = vsel %vm2613, %v2645, %v2355
  %v2678 = vsel %vm2614, %v2646, %v2362
  %v2679 = vsel %vm2615, %v2647, %v2369
  %v2680 = vsel %vm2616, %v2648, %v2376
  %v2681 = vsel %vm2617, %v2649, %v2383
  %v2682 = vsel %vm2618, %v2650, %v2390
  %v2683 = vsel %vm2619, %v2651, %v2397
  %v2684 = vsel %vm2620, %v2652, %v2404
  %v2685 = vsel %vm2621, %v2653, %v2411
  %v2686 = vsel %vm2622, %v2654, %v2418
  %v2687 = vsel %vm2623, %v2655, %v2425
  %v2688 = vsel %vm2624, %v2656, %v2432
  %v2689 = vsel %vm2625, %v2657, %v2439
  %v2690 = vsel %vm2626, %v2658, %v2446
  %v2691 = vsel %vm2627, %v2659, %v2453
  %v2692 = vsel %vm2628, %v2660, %v2460
  %v2693 = vsel %vm2629, %v2661, %v2467
  %v2694 = vsel %vm2630, %v2662, %v2474
  %v2695 = vsel %vm2631, %v2663, %v2481
  %v2696 = vsel %vm2632, %v2664, %v2488
  %v2697 = vsel %vm2633, %v2665, %v2495
  %v2698 = vsel %vm2634, %v2666, %v2502
  %v2699 = vsel %vm2635, %v2667, %v2509
  %v2700 = vsel %vm2636, %v2668, %v2516
  %v2701 = vsel %vm2637, %v2669, %v2523
  %v2702 = vsel %vm2638, %v2670, %v2530
  %v2703 = vsel %vm2639, %v2671, %v2537
  %v2704 = vsel %vm2640, %v2672, %v2544
  %vm2705 = vcmp.eq.s32.totalorder %v2673, 0
  %vm2706 = vcmp.eq.s32.totalorder %v2674, 0
  %vm2707 = vcmp.eq.s32.totalorder %v2675, 0
  %vm2708 = vcmp.eq.s32.totalorder %v2676, 0
  %vm2709 = vcmp.eq.s32.totalorder %v2677, 0
  %vm2710 = vcmp.eq.s32.totalorder %v2678, 0
  %vm2711 = vcmp.eq.s32.totalorder %v2679, 0
  %vm2712 = vcmp.eq.s32.totalorder %v2680, 0
  %vm2713 = vcmp.eq.s32.totalorder %v2681, 0
  %vm2714 = vcmp.eq.s32.totalorder %v2682, 0
  %vm2715 = vcmp.eq.s32.totalorder %v2683, 0
  %vm2716 = vcmp.eq.s32.totalorder %v2684, 0
  %vm2717 = vcmp.eq.s32.totalorder %v2685, 0
  %vm2718 = vcmp.eq.s32.totalorder %v2686, 0
  %vm2719 = vcmp.eq.s32.totalorder %v2687, 0
  %vm2720 = vcmp.eq.s32.totalorder %v2688, 0
  %vm2721 = vcmp.eq.s32.totalorder %v2689, 0
  %vm2722 = vcmp.eq.s32.totalorder %v2690, 0
  %vm2723 = vcmp.eq.s32.totalorder %v2691, 0
  %vm2724 = vcmp.eq.s32.totalorder %v2692, 0
  %vm2725 = vcmp.eq.s32.totalorder %v2693, 0
  %vm2726 = vcmp.eq.s32.totalorder %v2694, 0
  %vm2727 = vcmp.eq.s32.totalorder %v2695, 0
  %vm2728 = vcmp.eq.s32.totalorder %v2696, 0
  %vm2729 = vcmp.eq.s32.totalorder %v2697, 0
  %vm2730 = vcmp.eq.s32.totalorder %v2698, 0
  %vm2731 = vcmp.eq.s32.totalorder %v2699, 0
  %vm2732 = vcmp.eq.s32.totalorder %v2700, 0
  %vm2733 = vcmp.eq.s32.totalorder %v2701, 0
  %vm2734 = vcmp.eq.s32.totalorder %v2702, 0
  %vm2735 = vcmp.eq.s32.totalorder %v2703, 0
  %vm2736 = vcmp.eq.s32.totalorder %v2704, 0
  %v2737 = vld [vmem:[%s6] sm:$0xff]
  %v2738 = vld [vmem:[%s6 + $0x8] sm:$0xff]
  %v2739 = vld [vmem:[%s6 + $0x10] sm:$0xff]
  %v2740 = vld [vmem:[%s6 + $0x18] sm:$0xff]
  %v2741 = vld [vmem:[%s6 + $0x20] sm:$0xff]
  %v2742 = vld [vmem:[%s6 + $0x28] sm:$0xff]
  %v2743 = vld [vmem:[%s6 + $0x30] sm:$0xff]
  %v2744 = vld [vmem:[%s6 + $0x38] sm:$0xff]
  %v2745 = vld [vmem:[%s6 + $0x40] sm:$0xff]
  %v2746 = vld [vmem:[%s6 + $0x48] sm:$0xff]
  %v2747 = vld [vmem:[%s6 + $0x50] sm:$0xff]
  %v2748 = vld [vmem:[%s6 + $0x58] sm:$0xff]
  %v2749 = vld [vmem:[%s6 + $0x60] sm:$0xff]
  %v2750 = vld [vmem:[%s6 + $0x68] sm:$0xff]
  %v2751 = vld [vmem:[%s6 + $0x70] sm:$0xff]
  %v2752 = vld [vmem:[%s6 + $0x78] sm:$0xff]
  %v2753 = vld [vmem:[%s6 + $0x80] sm:$0xff]
  %v2754 = vld [vmem:[%s6 + $0x88] sm:$0xff]
  %v2755 = vld [vmem:[%s6 + $0x90] sm:$0xff]
  %v2756 = vld [vmem:[%s6 + $0x98] sm:$0xff]
  %v2757 = vld [vmem:[%s6 + $0xa0] sm:$0xff]
  %v2758 = vld [vmem:[%s6 + $0xa8] sm:$0xff]
  %v2759 = vld [vmem:[%s6 + $0xb0] sm:$0xff]
  %v2760 = vld [vmem:[%s6 + $0xb8] sm:$0xff]
  %v2761 = vld [vmem:[%s6 + $0xc0] sm:$0xff]
  %v2762 = vld [vmem:[%s6 + $0xc8] sm:$0xff]
  %v2763 = vld [vmem:[%s6 + $0xd0] sm:$0xff]
  %v2764 = vld [vmem:[%s6 + $0xd8] sm:$0xff]
  %v2765 = vld [vmem:[%s6 + $0xe0] sm:$0xff]
  %v2766 = vld [vmem:[%s6 + $0xe8] sm:$0xff]
  %v2767 = vld [vmem:[%s6 + $0xf0] sm:$0xff]
  %v2768 = vld [vmem:[%s6 + $0xf8] sm:$0xff]
  %v2769 = vld [vmem:[%s5] sm:$0xf]
  %v2770 = vsel %vm2705, 1, 0
  %v2771 = vsel %vm2706, 1, 0
  %v2772 = vsel %vm2707, 1, 0
  %v2773 = vsel %vm2708, 1, 0
  %v2774 = vsel %vm2709, 1, 0
  %v2775 = vsel %vm2710, 1, 0
  %v2776 = vsel %vm2711, 1, 0
  %v2777 = vsel %vm2712, 1, 0
  %v2778 = vsel %vm2713, 1, 0
  %v2779 = vsel %vm2714, 1, 0
  %v2780 = vsel %vm2715, 1, 0
  %v2781 = vsel %vm2716, 1, 0
  %v2782 = vsel %vm2717, 1, 0
  %v2783 = vsel %vm2718, 1, 0
  %v2784 = vsel %vm2719, 1, 0
  %v2785 = vsel %vm2720, 1, 0
  %v2786 = vsel %vm2721, 1, 0
  %v2787 = vsel %vm2722, 1, 0
  %v2788 = vsel %vm2723, 1, 0
  %v2789 = vsel %vm2724, 1, 0
  %v2790 = vsel %vm2725, 1, 0
  %v2791 = vsel %vm2726, 1, 0
  %v2792 = vsel %vm2727, 1, 0
  %v2793 = vsel %vm2728, 1, 0
  %v2794 = vsel %vm2729, 1, 0
  %v2795 = vsel %vm2730, 1, 0
  %v2796 = vsel %vm2731, 1, 0
  %v2797 = vsel %vm2732, 1, 0
  %v2798 = vsel %vm2733, 1, 0
  %v2799 = vsel %vm2734, 1, 0
  %v2800 = vsel %vm2735, 1, 0
  %v2801 = vsel %vm2736, 1, 0
  %vm2802 = vcmp.eq.s32.totalorder %v2770, 1
  %vm2803 = vcmp.eq.s32.totalorder %v2771, 1
  %vm2804 = vcmp.eq.s32.totalorder %v2772, 1
  %vm2805 = vcmp.eq.s32.totalorder %v2773, 1
  %vm2806 = vcmp.eq.s32.totalorder %v2774, 1
  %vm2807 = vcmp.eq.s32.totalorder %v2775, 1
  %vm2808 = vcmp.eq.s32.totalorder %v2776, 1
  %vm2809 = vcmp.eq.s32.totalorder %v2777, 1
  %vm2810 = vcmp.eq.s32.totalorder %v2778, 1
  %vm2811 = vcmp.eq.s32.totalorder %v2779, 1
  %vm2812 = vcmp.eq.s32.totalorder %v2780, 1
  %vm2813 = vcmp.eq.s32.totalorder %v2781, 1
  %vm2814 = vcmp.eq.s32.totalorder %v2782, 1
  %vm2815 = vcmp.eq.s32.totalorder %v2783, 1
  %vm2816 = vcmp.eq.s32.totalorder %v2784, 1
  %vm2817 = vcmp.eq.s32.totalorder %v2785, 1
  %vm2818 = vcmp.eq.s32.totalorder %v2786, 1
  %vm2819 = vcmp.eq.s32.totalorder %v2787, 1
  %vm2820 = vcmp.eq.s32.totalorder %v2788, 1
  %vm2821 = vcmp.eq.s32.totalorder %v2789, 1
  %vm2822 = vcmp.eq.s32.totalorder %v2790, 1
  %vm2823 = vcmp.eq.s32.totalorder %v2791, 1
  %vm2824 = vcmp.eq.s32.totalorder %v2792, 1
  %vm2825 = vcmp.eq.s32.totalorder %v2793, 1
  %vm2826 = vcmp.eq.s32.totalorder %v2794, 1
  %vm2827 = vcmp.eq.s32.totalorder %v2795, 1
  %vm2828 = vcmp.eq.s32.totalorder %v2796, 1
  %vm2829 = vcmp.eq.s32.totalorder %v2797, 1
  %vm2830 = vcmp.eq.s32.totalorder %v2798, 1
  %vm2831 = vcmp.eq.s32.totalorder %v2799, 1
  %vm2832 = vcmp.eq.s32.totalorder %v2800, 1
  %vm2833 = vcmp.eq.s32.totalorder %v2801, 1
  %v2835 = vlaneseq
  %v2836 = vshrl.u32 %v2835, 7
  %v2837 = vsub.s32 0, %v2836
  %v2838 = vrot.slane %v2769, %v2837
  %v2839 = vlaneseq
  %v2840 = vshrl.u32 %v2839, 7
  %v2841 = vsub.s32 1, %v2840
  %v2842 = vrot.slane %v2769, %v2841
  %v2843 = vlaneseq
  %v2844 = vshrl.u32 %v2843, 7
  %v2845 = vsub.s32 2, %v2844
  %v2846 = vrot.slane %v2769, %v2845
  %v2847 = vlaneseq
  %v2848 = vshrl.u32 %v2847, 7
  %v2849 = vsub.s32 3, %v2848
  %v2850 = vrot.slane %v2769, %v2849
  %v2855 = vsel %vm2802, %v2838, 1.0
  %v2856 = vsel %vm2802, %v2842, 1.0
  %v2857 = vsel %vm2802, %v2846, 1.0
  %v2858 = vsel %vm2802, %v2850, 1.0
  %v2859 = vsel %vm2803, %v2838, 1.0
  %v2860 = vsel %vm2803, %v2842, 1.0
  %v2861 = vsel %vm2803, %v2846, 1.0
  %v2862 = vsel %vm2803, %v2850, 1.0
  %v2863 = vsel %vm2804, %v2838, 1.0
  %v2864 = vsel %vm2804, %v2842, 1.0
  %v2865 = vsel %vm2804, %v2846, 1.0
  %v2866 = vsel %vm2804, %v2850, 1.0
  %v2867 = vsel %vm2805, %v2838, 1.0
  %v2868 = vsel %vm2805, %v2842, 1.0
  %v2869 = vsel %vm2805, %v2846, 1.0
  %v2870 = vsel %vm2805, %v2850, 1.0
  %v2871 = vsel %vm2806, %v2838, 1.0
  %v2872 = vsel %vm2806, %v2842, 1.0
  %v2873 = vsel %vm2806, %v2846, 1.0
  %v2874 = vsel %vm2806, %v2850, 1.0
  %v2875 = vsel %vm2807, %v2838, 1.0
  %v2876 = vsel %vm2807, %v2842, 1.0
  %v2877 = vsel %vm2807, %v2846, 1.0
  %v2878 = vsel %vm2807, %v2850, 1.0
  %v2879 = vsel %vm2808, %v2838, 1.0
  %v2880 = vsel %vm2808, %v2842, 1.0
  %v2881 = vsel %vm2808, %v2846, 1.0
  %v2882 = vsel %vm2808, %v2850, 1.0
  %v2883 = vsel %vm2809, %v2838, 1.0
  %v2884 = vsel %vm2809, %v2842, 1.0
  %v2885 = vsel %vm2809, %v2846, 1.0
  %v2886 = vsel %vm2809, %v2850, 1.0
  %v2887 = vsel %vm2810, %v2838, 1.0
  %v2888 = vsel %vm2810, %v2842, 1.0
  %v2889 = vsel %vm2810, %v2846, 1.0
  %v2890 = vsel %vm2810, %v2850, 1.0
  %v2891 = vsel %vm2811, %v2838, 1.0
  %v2892 = vsel %vm2811, %v2842, 1.0
  %v2893 = vsel %vm2811, %v2846, 1.0
  %v2894 = vsel %vm2811, %v2850, 1.0
  %v2895 = vsel %vm2812, %v2838, 1.0
  %v2896 = vsel %vm2812, %v2842, 1.0
  %v2897 = vsel %vm2812, %v2846, 1.0
  %v2898 = vsel %vm2812, %v2850, 1.0
  %v2899 = vsel %vm2813, %v2838, 1.0
  %v2900 = vsel %vm2813, %v2842, 1.0
  %v2901 = vsel %vm2813, %v2846, 1.0
  %v2902 = vsel %vm2813, %v2850, 1.0
  %v2903 = vsel %vm2814, %v2838, 1.0
  %v2904 = vsel %vm2814, %v2842, 1.0
  %v2905 = vsel %vm2814, %v2846, 1.0
  %v2906 = vsel %vm2814, %v2850, 1.0
  %v2907 = vsel %vm2815, %v2838, 1.0
  %v2908 = vsel %vm2815, %v2842, 1.0
  %v2909 = vsel %vm2815, %v2846, 1.0
  %v2910 = vsel %vm2815, %v2850, 1.0
  %v2911 = vsel %vm2816, %v2838, 1.0
  %v2912 = vsel %vm2816, %v2842, 1.0
  %v2913 = vsel %vm2816, %v2846, 1.0
  %v2914 = vsel %vm2816, %v2850, 1.0
  %v2915 = vsel %vm2817, %v2838, 1.0
  %v2916 = vsel %vm2817, %v2842, 1.0
  %v2917 = vsel %vm2817, %v2846, 1.0
  %v2918 = vsel %vm2817, %v2850, 1.0
  %v2919 = vsel %vm2818, %v2838, 1.0
  %v2920 = vsel %vm2818, %v2842, 1.0
  %v2921 = vsel %vm2818, %v2846, 1.0
  %v2922 = vsel %vm2818, %v2850, 1.0
  %v2923 = vsel %vm2819, %v2838, 1.0
  %v2924 = vsel %vm2819, %v2842, 1.0
  %v2925 = vsel %vm2819, %v2846, 1.0
  %v2926 = vsel %vm2819, %v2850, 1.0
  %v2927 = vsel %vm2820, %v2838, 1.0
  %v2928 = vsel %vm2820, %v2842, 1.0
  %v2929 = vsel %vm2820, %v2846, 1.0
  %v2930 = vsel %vm2820, %v2850, 1.0
  %v2931 = vsel %vm2821, %v2838, 1.0
  %v2932 = vsel %vm2821, %v2842, 1.0
  %v2933 = vsel %vm2821, %v2846, 1.0
  %v2934 = vsel %vm2821, %v2850, 1.0
  %v2935 = vsel %vm2822, %v2838, 1.0
  %v2936 = vsel %vm2822, %v2842, 1.0
  %v2937 = vsel %vm2822, %v2846, 1.0
  %v2938 = vsel %vm2822, %v2850, 1.0
  %v2939 = vsel %vm2823, %v2838, 1.0
  %v2940 = vsel %vm2823, %v2842, 1.0
  %v2941 = vsel %vm2823, %v2846, 1.0
  %v2942 = vsel %vm2823, %v2850, 1.0
  %v2943 = vsel %vm2824, %v2838, 1.0
  %v2944 = vsel %vm2824, %v2842, 1.0
  %v2945 = vsel %vm2824, %v2846, 1.0
  %v2946 = vsel %vm2824, %v2850, 1.0
  %v2947 = vsel %vm2825, %v2838, 1.0
  %v2948 = vsel %vm2825, %v2842, 1.0
  %v2949 = vsel %vm2825, %v2846, 1.0
  %v2950 = vsel %vm2825, %v2850, 1.0
  %v2951 = vsel %vm2826, %v2838, 1.0
  %v2952 = vsel %vm2826, %v2842, 1.0
  %v2953 = vsel %vm2826, %v2846, 1.0
  %v2954 = vsel %vm2826, %v2850, 1.0
  %v2955 = vsel %vm2827, %v2838, 1.0
  %v2956 = vsel %vm2827, %v2842, 1.0
  %v2957 = vsel %vm2827, %v2846, 1.0
  %v2958 = vsel %vm2827, %v2850, 1.0
  %v2959 = vsel %vm2828, %v2838, 1.0
  %v2960 = vsel %vm2828, %v2842, 1.0
  %v2961 = vsel %vm2828, %v2846, 1.0
  %v2962 = vsel %vm2828, %v2850, 1.0
  %v2963 = vsel %vm2829, %v2838, 1.0
  %v2964 = vsel %vm2829, %v2842, 1.0
  %v2965 = vsel %vm2829, %v2846, 1.0
  %v2966 = vsel %vm2829, %v2850, 1.0
  %v2967 = vsel %vm2830, %v2838, 1.0
  %v2968 = vsel %vm2830, %v2842, 1.0
  %v2969 = vsel %vm2830, %v2846, 1.0
  %v2970 = vsel %vm2830, %v2850, 1.0
  %v2971 = vsel %vm2831, %v2838, 1.0
  %v2972 = vsel %vm2831, %v2842, 1.0
  %v2973 = vsel %vm2831, %v2846, 1.0
  %v2974 = vsel %vm2831, %v2850, 1.0
  %v2975 = vsel %vm2832, %v2838, 1.0
  %v2976 = vsel %vm2832, %v2842, 1.0
  %v2977 = vsel %vm2832, %v2846, 1.0
  %v2978 = vsel %vm2832, %v2850, 1.0
  %v2979 = vsel %vm2833, %v2838, 1.0
  %v2980 = vsel %vm2833, %v2842, 1.0
  %v2981 = vsel %vm2833, %v2846, 1.0
  %v2982 = vsel %vm2833, %v2850, 1.0
  %2984 = vset.pattern.permute.xlu0 0
  %2985 = vperm.xlu0 %2984, %v2737
  %v2986 = vpop.permute.xlu0 %2985
  %2989 = vset.pattern.permute.xlu0 0
  %2990 = vperm.xlu0 %2989, %v2738
  %v2991 = vpop.permute.xlu0 %2990
  %2994 = vset.pattern.permute.xlu0 0
  %2995 = vperm.xlu0 %2994, %v2739
  %v2996 = vpop.permute.xlu0 %2995
  %2999 = vset.pattern.permute.xlu0 0
  %3000 = vperm.xlu0 %2999, %v2740
  %v3001 = vpop.permute.xlu0 %3000
  %3004 = vset.pattern.permute.xlu0 0
  %3005 = vperm.xlu0 %3004, %v2741
  %v3006 = vpop.permute.xlu0 %3005
  %3009 = vset.pattern.permute.xlu0 0
  %3010 = vperm.xlu0 %3009, %v2742
  %v3011 = vpop.permute.xlu0 %3010
  %3014 = vset.pattern.permute.xlu0 0
  %3015 = vperm.xlu0 %3014, %v2743
  %v3016 = vpop.permute.xlu0 %3015
  %3019 = vset.pattern.permute.xlu0 0
  %3020 = vperm.xlu0 %3019, %v2744
  %v3021 = vpop.permute.xlu0 %3020
  %3024 = vset.pattern.permute.xlu0 0
  %3025 = vperm.xlu0 %3024, %v2745
  %v3026 = vpop.permute.xlu0 %3025
  %3029 = vset.pattern.permute.xlu0 0
  %3030 = vperm.xlu0 %3029, %v2746
  %v3031 = vpop.permute.xlu0 %3030
  %3034 = vset.pattern.permute.xlu0 0
  %3035 = vperm.xlu0 %3034, %v2747
  %v3036 = vpop.permute.xlu0 %3035
  %3039 = vset.pattern.permute.xlu0 0
  %3040 = vperm.xlu0 %3039, %v2748
  %v3041 = vpop.permute.xlu0 %3040
  %3044 = vset.pattern.permute.xlu0 0
  %3045 = vperm.xlu0 %3044, %v2749
  %v3046 = vpop.permute.xlu0 %3045
  %3049 = vset.pattern.permute.xlu0 0
  %3050 = vperm.xlu0 %3049, %v2750
  %v3051 = vpop.permute.xlu0 %3050
  %3054 = vset.pattern.permute.xlu0 0
  %3055 = vperm.xlu0 %3054, %v2751
  %v3056 = vpop.permute.xlu0 %3055
  %3059 = vset.pattern.permute.xlu0 0
  %3060 = vperm.xlu0 %3059, %v2752
  %v3061 = vpop.permute.xlu0 %3060
  %3064 = vset.pattern.permute.xlu0 0
  %3065 = vperm.xlu0 %3064, %v2753
  %v3066 = vpop.permute.xlu0 %3065
  %3069 = vset.pattern.permute.xlu0 0
  %3070 = vperm.xlu0 %3069, %v2754
  %v3071 = vpop.permute.xlu0 %3070
  %3074 = vset.pattern.permute.xlu0 0
  %3075 = vperm.xlu0 %3074, %v2755
  %v3076 = vpop.permute.xlu0 %3075
  %3079 = vset.pattern.permute.xlu0 0
  %3080 = vperm.xlu0 %3079, %v2756
  %v3081 = vpop.permute.xlu0 %3080
  %3084 = vset.pattern.permute.xlu0 0
  %3085 = vperm.xlu0 %3084, %v2757
  %v3086 = vpop.permute.xlu0 %3085
  %3089 = vset.pattern.permute.xlu0 0
  %3090 = vperm.xlu0 %3089, %v2758
  %v3091 = vpop.permute.xlu0 %3090
  %3094 = vset.pattern.permute.xlu0 0
  %3095 = vperm.xlu0 %3094, %v2759
  %v3096 = vpop.permute.xlu0 %3095
  %3099 = vset.pattern.permute.xlu0 0
  %3100 = vperm.xlu0 %3099, %v2760
  %v3101 = vpop.permute.xlu0 %3100
  %3104 = vset.pattern.permute.xlu0 0
  %3105 = vperm.xlu0 %3104, %v2761
  %v3106 = vpop.permute.xlu0 %3105
  %3109 = vset.pattern.permute.xlu0 0
  %3110 = vperm.xlu0 %3109, %v2762
  %v3111 = vpop.permute.xlu0 %3110
  %3114 = vset.pattern.permute.xlu0 0
  %3115 = vperm.xlu0 %3114, %v2763
  %v3116 = vpop.permute.xlu0 %3115
  %3119 = vset.pattern.permute.xlu0 0
  %3120 = vperm.xlu0 %3119, %v2764
  %v3121 = vpop.permute.xlu0 %3120
  %3124 = vset.pattern.permute.xlu0 0
  %3125 = vperm.xlu0 %3124, %v2765
  %v3126 = vpop.permute.xlu0 %3125
  %3129 = vset.pattern.permute.xlu0 0
  %3130 = vperm.xlu0 %3129, %v2766
  %v3131 = vpop.permute.xlu0 %3130
  %3134 = vset.pattern.permute.xlu0 0
  %3135 = vperm.xlu0 %3134, %v2767
  %v3136 = vpop.permute.xlu0 %3135
  %3139 = vset.pattern.permute.xlu0 0
  %3140 = vperm.xlu0 %3139, %v2768
  %v3141 = vpop.permute.xlu0 %3140
  %v3143 = vmul.f32 %v2986, %v2855
  %v3144 = vmul.f32 %v2986, %v2856
  %v3145 = vmul.f32 %v2986, %v2857
  %v3146 = vmul.f32 %v2986, %v2858
  %v3147 = vmul.f32 %v2991, %v2859
  %v3148 = vmul.f32 %v2991, %v2860
  %v3149 = vmul.f32 %v2991, %v2861
  %v3150 = vmul.f32 %v2991, %v2862
  %v3151 = vmul.f32 %v2996, %v2863
  %v3152 = vmul.f32 %v2996, %v2864
  %v3153 = vmul.f32 %v2996, %v2865
  %v3154 = vmul.f32 %v2996, %v2866
  %v3155 = vmul.f32 %v3001, %v2867
  %v3156 = vmul.f32 %v3001, %v2868
  %v3157 = vmul.f32 %v3001, %v2869
  %v3158 = vmul.f32 %v3001, %v2870
  %v3159 = vmul.f32 %v3006, %v2871
  %v3160 = vmul.f32 %v3006, %v2872
  %v3161 = vmul.f32 %v3006, %v2873
  %v3162 = vmul.f32 %v3006, %v2874
  %v3163 = vmul.f32 %v3011, %v2875
  %v3164 = vmul.f32 %v3011, %v2876
  %v3165 = vmul.f32 %v3011, %v2877
  %v3166 = vmul.f32 %v3011, %v2878
  %v3167 = vmul.f32 %v3016, %v2879
  %v3168 = vmul.f32 %v3016, %v2880
  %v3169 = vmul.f32 %v3016, %v2881
  %v3170 = vmul.f32 %v3016, %v2882
  %v3171 = vmul.f32 %v3021, %v2883
  %v3172 = vmul.f32 %v3021, %v2884
  %v3173 = vmul.f32 %v3021, %v2885
  %v3174 = vmul.f32 %v3021, %v2886
  %v3175 = vmul.f32 %v3026, %v2887
  %v3176 = vmul.f32 %v3026, %v2888
  %v3177 = vmul.f32 %v3026, %v2889
  %v3178 = vmul.f32 %v3026, %v2890
  %v3179 = vmul.f32 %v3031, %v2891
  %v3180 = vmul.f32 %v3031, %v2892
  %v3181 = vmul.f32 %v3031, %v2893
  %v3182 = vmul.f32 %v3031, %v2894
  %v3183 = vmul.f32 %v3036, %v2895
  %v3184 = vmul.f32 %v3036, %v2896
  %v3185 = vmul.f32 %v3036, %v2897
  %v3186 = vmul.f32 %v3036, %v2898
  %v3187 = vmul.f32 %v3041, %v2899
  %v3188 = vmul.f32 %v3041, %v2900
  %v3189 = vmul.f32 %v3041, %v2901
  %v3190 = vmul.f32 %v3041, %v2902
  %v3191 = vmul.f32 %v3046, %v2903
  %v3192 = vmul.f32 %v3046, %v2904
  %v3193 = vmul.f32 %v3046, %v2905
  %v3194 = vmul.f32 %v3046, %v2906
  %v3195 = vmul.f32 %v3051, %v2907
  %v3196 = vmul.f32 %v3051, %v2908
  %v3197 = vmul.f32 %v3051, %v2909
  %v3198 = vmul.f32 %v3051, %v2910
  %v3199 = vmul.f32 %v3056, %v2911
  %v3200 = vmul.f32 %v3056, %v2912
  %v3201 = vmul.f32 %v3056, %v2913
  %v3202 = vmul.f32 %v3056, %v2914
  %v3203 = vmul.f32 %v3061, %v2915
  %v3204 = vmul.f32 %v3061, %v2916
  %v3205 = vmul.f32 %v3061, %v2917
  %v3206 = vmul.f32 %v3061, %v2918
  %v3207 = vmul.f32 %v3066, %v2919
  %v3208 = vmul.f32 %v3066, %v2920
  %v3209 = vmul.f32 %v3066, %v2921
  %v3210 = vmul.f32 %v3066, %v2922
  %v3211 = vmul.f32 %v3071, %v2923
  %v3212 = vmul.f32 %v3071, %v2924
  %v3213 = vmul.f32 %v3071, %v2925
  %v3214 = vmul.f32 %v3071, %v2926
  %v3215 = vmul.f32 %v3076, %v2927
  %v3216 = vmul.f32 %v3076, %v2928
  %v3217 = vmul.f32 %v3076, %v2929
  %v3218 = vmul.f32 %v3076, %v2930
  %v3219 = vmul.f32 %v3081, %v2931
  %v3220 = vmul.f32 %v3081, %v2932
  %v3221 = vmul.f32 %v3081, %v2933
  %v3222 = vmul.f32 %v3081, %v2934
  %v3223 = vmul.f32 %v3086, %v2935
  %v3224 = vmul.f32 %v3086, %v2936
  %v3225 = vmul.f32 %v3086, %v2937
  %v3226 = vmul.f32 %v3086, %v2938
  %v3227 = vmul.f32 %v3091, %v2939
  %v3228 = vmul.f32 %v3091, %v2940
  %v3229 = vmul.f32 %v3091, %v2941
  %v3230 = vmul.f32 %v3091, %v2942
  %v3231 = vmul.f32 %v3096, %v2943
  %v3232 = vmul.f32 %v3096, %v2944
  %v3233 = vmul.f32 %v3096, %v2945
  %v3234 = vmul.f32 %v3096, %v2946
  %v3235 = vmul.f32 %v3101, %v2947
  %v3236 = vmul.f32 %v3101, %v2948
  %v3237 = vmul.f32 %v3101, %v2949
  %v3238 = vmul.f32 %v3101, %v2950
  %v3239 = vmul.f32 %v3106, %v2951
  %v3240 = vmul.f32 %v3106, %v2952
  %v3241 = vmul.f32 %v3106, %v2953
  %v3242 = vmul.f32 %v3106, %v2954
  %v3243 = vmul.f32 %v3111, %v2955
  %v3244 = vmul.f32 %v3111, %v2956
  %v3245 = vmul.f32 %v3111, %v2957
  %v3246 = vmul.f32 %v3111, %v2958
  %v3247 = vmul.f32 %v3116, %v2959
  %v3248 = vmul.f32 %v3116, %v2960
  %v3249 = vmul.f32 %v3116, %v2961
  %v3250 = vmul.f32 %v3116, %v2962
  %v3251 = vmul.f32 %v3121, %v2963
  %v3252 = vmul.f32 %v3121, %v2964
  %v3253 = vmul.f32 %v3121, %v2965
  %v3254 = vmul.f32 %v3121, %v2966
  %v3255 = vmul.f32 %v3126, %v2967
  %v3256 = vmul.f32 %v3126, %v2968
  %v3257 = vmul.f32 %v3126, %v2969
  %v3258 = vmul.f32 %v3126, %v2970
  %v3259 = vmul.f32 %v3131, %v2971
  %v3260 = vmul.f32 %v3131, %v2972
  %v3261 = vmul.f32 %v3131, %v2973
  %v3262 = vmul.f32 %v3131, %v2974
  %v3263 = vmul.f32 %v3136, %v2975
  %v3264 = vmul.f32 %v3136, %v2976
  %v3265 = vmul.f32 %v3136, %v2977
  %v3266 = vmul.f32 %v3136, %v2978
  %v3267 = vmul.f32 %v3141, %v2979
  %v3268 = vmul.f32 %v3141, %v2980
  %v3269 = vmul.f32 %v3141, %v2981
  %v3270 = vmul.f32 %v3141, %v2982
  %v3271 = vmul.f32 %v2160, %v3143
  %v3272 = vmul.f32 %v2161, %v3144
  %v3273 = vmul.f32 %v2162, %v3145
  %v3274 = vmul.f32 %v2163, %v3146
  %v3275 = vmul.f32 %v2164, %v3147
  %v3276 = vmul.f32 %v2165, %v3148
  %v3277 = vmul.f32 %v2166, %v3149
  %v3278 = vmul.f32 %v2167, %v3150
  %v3279 = vmul.f32 %v2168, %v3151
  %v3280 = vmul.f32 %v2169, %v3152
  %v3281 = vmul.f32 %v2170, %v3153
  %v3282 = vmul.f32 %v2171, %v3154
  %v3283 = vmul.f32 %v2172, %v3155
  %v3284 = vmul.f32 %v2173, %v3156
  %v3285 = vmul.f32 %v2174, %v3157
  %v3286 = vmul.f32 %v2175, %v3158
  %v3287 = vmul.f32 %v2176, %v3159
  %v3288 = vmul.f32 %v2177, %v3160
  %v3289 = vmul.f32 %v2178, %v3161
  %v3290 = vmul.f32 %v2179, %v3162
  %v3291 = vmul.f32 %v2180, %v3163
  %v3292 = vmul.f32 %v2181, %v3164
  %v3293 = vmul.f32 %v2182, %v3165
  %v3294 = vmul.f32 %v2183, %v3166
  %v3295 = vmul.f32 %v2184, %v3167
  %v3296 = vmul.f32 %v2185, %v3168
  %v3297 = vmul.f32 %v2186, %v3169
  %v3298 = vmul.f32 %v2187, %v3170
  %v3299 = vmul.f32 %v2188, %v3171
  %v3300 = vmul.f32 %v2189, %v3172
  %v3301 = vmul.f32 %v2190, %v3173
  %v3302 = vmul.f32 %v2191, %v3174
  %v3303 = vmul.f32 %v2192, %v3175
  %v3304 = vmul.f32 %v2193, %v3176
  %v3305 = vmul.f32 %v2194, %v3177
  %v3306 = vmul.f32 %v2195, %v3178
  %v3307 = vmul.f32 %v2196, %v3179
  %v3308 = vmul.f32 %v2197, %v3180
  %v3309 = vmul.f32 %v2198, %v3181
  %v3310 = vmul.f32 %v2199, %v3182
  %v3311 = vmul.f32 %v2200, %v3183
  %v3312 = vmul.f32 %v2201, %v3184
  %v3313 = vmul.f32 %v2202, %v3185
  %v3314 = vmul.f32 %v2203, %v3186
  %v3315 = vmul.f32 %v2204, %v3187
  %v3316 = vmul.f32 %v2205, %v3188
  %v3317 = vmul.f32 %v2206, %v3189
  %v3318 = vmul.f32 %v2207, %v3190
  %v3319 = vmul.f32 %v2208, %v3191
  %v3320 = vmul.f32 %v2209, %v3192
  %v3321 = vmul.f32 %v2210, %v3193
  %v3322 = vmul.f32 %v2211, %v3194
  %v3323 = vmul.f32 %v2212, %v3195
  %v3324 = vmul.f32 %v2213, %v3196
  %v3325 = vmul.f32 %v2214, %v3197
  %v3326 = vmul.f32 %v2215, %v3198
  %v3327 = vmul.f32 %v2216, %v3199
  %v3328 = vmul.f32 %v2217, %v3200
  %v3329 = vmul.f32 %v2218, %v3201
  %v3330 = vmul.f32 %v2219, %v3202
  %v3331 = vmul.f32 %v2220, %v3203
  %v3332 = vmul.f32 %v2221, %v3204
  %v3333 = vmul.f32 %v2222, %v3205
  %v3334 = vmul.f32 %v2223, %v3206
  %v3335 = vmul.f32 %v2224, %v3207
  %v3336 = vmul.f32 %v2225, %v3208
  %v3337 = vmul.f32 %v2226, %v3209
  %v3338 = vmul.f32 %v2227, %v3210
  %v3339 = vmul.f32 %v2228, %v3211
  %v3340 = vmul.f32 %v2229, %v3212
  %v3341 = vmul.f32 %v2230, %v3213
  %v3342 = vmul.f32 %v2231, %v3214
  %v3343 = vmul.f32 %v2232, %v3215
  %v3344 = vmul.f32 %v2233, %v3216
  %v3345 = vmul.f32 %v2234, %v3217
  %v3346 = vmul.f32 %v2235, %v3218
  %v3347 = vmul.f32 %v2236, %v3219
  %v3348 = vmul.f32 %v2237, %v3220
  %v3349 = vmul.f32 %v2238, %v3221
  %v3350 = vmul.f32 %v2239, %v3222
  %v3351 = vmul.f32 %v2240, %v3223
  %v3352 = vmul.f32 %v2241, %v3224
  %v3353 = vmul.f32 %v2242, %v3225
  %v3354 = vmul.f32 %v2243, %v3226
  %v3355 = vmul.f32 %v2244, %v3227
  %v3356 = vmul.f32 %v2245, %v3228
  %v3357 = vmul.f32 %v2246, %v3229
  %v3358 = vmul.f32 %v2247, %v3230
  %v3359 = vmul.f32 %v2248, %v3231
  %v3360 = vmul.f32 %v2249, %v3232
  %v3361 = vmul.f32 %v2250, %v3233
  %v3362 = vmul.f32 %v2251, %v3234
  %v3363 = vmul.f32 %v2252, %v3235
  %v3364 = vmul.f32 %v2253, %v3236
  %v3365 = vmul.f32 %v2254, %v3237
  %v3366 = vmul.f32 %v2255, %v3238
  %v3367 = vmul.f32 %v2256, %v3239
  %v3368 = vmul.f32 %v2257, %v3240
  %v3369 = vmul.f32 %v2258, %v3241
  %v3370 = vmul.f32 %v2259, %v3242
  %v3371 = vmul.f32 %v2260, %v3243
  %v3372 = vmul.f32 %v2261, %v3244
  %v3373 = vmul.f32 %v2262, %v3245
  %v3374 = vmul.f32 %v2263, %v3246
  %v3375 = vmul.f32 %v2264, %v3247
  %v3376 = vmul.f32 %v2265, %v3248
  %v3377 = vmul.f32 %v2266, %v3249
  %v3378 = vmul.f32 %v2267, %v3250
  %v3379 = vmul.f32 %v2268, %v3251
  %v3380 = vmul.f32 %v2269, %v3252
  %v3381 = vmul.f32 %v2270, %v3253
  %v3382 = vmul.f32 %v2271, %v3254
  %v3383 = vmul.f32 %v2272, %v3255
  %v3384 = vmul.f32 %v2273, %v3256
  %v3385 = vmul.f32 %v2274, %v3257
  %v3386 = vmul.f32 %v2275, %v3258
  %v3387 = vmul.f32 %v2276, %v3259
  %v3388 = vmul.f32 %v2277, %v3260
  %v3389 = vmul.f32 %v2278, %v3261
  %v3390 = vmul.f32 %v2279, %v3262
  %v3391 = vmul.f32 %v2280, %v3263
  %v3392 = vmul.f32 %v2281, %v3264
  %v3393 = vmul.f32 %v2282, %v3265
  %v3394 = vmul.f32 %v2283, %v3266
  %v3395 = vmul.f32 %v2284, %v3267
  %v3396 = vmul.f32 %v2285, %v3268
  %v3397 = vmul.f32 %v2286, %v3269
  %v3398 = vmul.f32 %v2287, %v3270
  %3399 = vst [vmem:[%s7] sm:$0xff] %v3271
  %3400 = vst [vmem:[%s7 + $0x8] sm:$0xff] %v3272
  %3401 = vst [vmem:[%s7 + $0x10] sm:$0xff] %v3273
  %3402 = vst [vmem:[%s7 + $0x18] sm:$0xff] %v3274
  %3403 = vst [vmem:[%s7 + $0x20] sm:$0xff] %v3275
  %3404 = vst [vmem:[%s7 + $0x28] sm:$0xff] %v3276
  %3405 = vst [vmem:[%s7 + $0x30] sm:$0xff] %v3277
  %3406 = vst [vmem:[%s7 + $0x38] sm:$0xff] %v3278
  %3407 = vst [vmem:[%s7 + $0x40] sm:$0xff] %v3279
  %3408 = vst [vmem:[%s7 + $0x48] sm:$0xff] %v3280
  %3409 = vst [vmem:[%s7 + $0x50] sm:$0xff] %v3281
  %3410 = vst [vmem:[%s7 + $0x58] sm:$0xff] %v3282
  %3411 = vst [vmem:[%s7 + $0x60] sm:$0xff] %v3283
  %3412 = vst [vmem:[%s7 + $0x68] sm:$0xff] %v3284
  %3413 = vst [vmem:[%s7 + $0x70] sm:$0xff] %v3285
  %3414 = vst [vmem:[%s7 + $0x78] sm:$0xff] %v3286
  %3415 = vst [vmem:[%s7 + $0x80] sm:$0xff] %v3287
  %3416 = vst [vmem:[%s7 + $0x88] sm:$0xff] %v3288
  %3417 = vst [vmem:[%s7 + $0x90] sm:$0xff] %v3289
  %3418 = vst [vmem:[%s7 + $0x98] sm:$0xff] %v3290
  %3419 = vst [vmem:[%s7 + $0xa0] sm:$0xff] %v3291
  %3420 = vst [vmem:[%s7 + $0xa8] sm:$0xff] %v3292
  %3421 = vst [vmem:[%s7 + $0xb0] sm:$0xff] %v3293
  %3422 = vst [vmem:[%s7 + $0xb8] sm:$0xff] %v3294
  %3423 = vst [vmem:[%s7 + $0xc0] sm:$0xff] %v3295
  %3424 = vst [vmem:[%s7 + $0xc8] sm:$0xff] %v3296
  %3425 = vst [vmem:[%s7 + $0xd0] sm:$0xff] %v3297
  %3426 = vst [vmem:[%s7 + $0xd8] sm:$0xff] %v3298
  %3427 = vst [vmem:[%s7 + $0xe0] sm:$0xff] %v3299
  %3428 = vst [vmem:[%s7 + $0xe8] sm:$0xff] %v3300
  %3429 = vst [vmem:[%s7 + $0xf0] sm:$0xff] %v3301
  %3430 = vst [vmem:[%s7 + $0xf8] sm:$0xff] %v3302
  %3431 = vst [vmem:[%s7 + $0x100] sm:$0xff] %v3303
  %3432 = vst [vmem:[%s7 + $0x108] sm:$0xff] %v3304
  %3433 = vst [vmem:[%s7 + $0x110] sm:$0xff] %v3305
  %3434 = vst [vmem:[%s7 + $0x118] sm:$0xff] %v3306
  %3435 = vst [vmem:[%s7 + $0x120] sm:$0xff] %v3307
  %3436 = vst [vmem:[%s7 + $0x128] sm:$0xff] %v3308
  %3437 = vst [vmem:[%s7 + $0x130] sm:$0xff] %v3309
  %3438 = vst [vmem:[%s7 + $0x138] sm:$0xff] %v3310
  %3439 = vst [vmem:[%s7 + $0x140] sm:$0xff] %v3311
  %3440 = vst [vmem:[%s7 + $0x148] sm:$0xff] %v3312
  %3441 = vst [vmem:[%s7 + $0x150] sm:$0xff] %v3313
  %3442 = vst [vmem:[%s7 + $0x158] sm:$0xff] %v3314
  %3443 = vst [vmem:[%s7 + $0x160] sm:$0xff] %v3315
  %3444 = vst [vmem:[%s7 + $0x168] sm:$0xff] %v3316
  %3445 = vst [vmem:[%s7 + $0x170] sm:$0xff] %v3317
  %3446 = vst [vmem:[%s7 + $0x178] sm:$0xff] %v3318
  %3447 = vst [vmem:[%s7 + $0x180] sm:$0xff] %v3319
  %3448 = vst [vmem:[%s7 + $0x188] sm:$0xff] %v3320
  %3449 = vst [vmem:[%s7 + $0x190] sm:$0xff] %v3321
  %3450 = vst [vmem:[%s7 + $0x198] sm:$0xff] %v3322
  %3451 = vst [vmem:[%s7 + $0x1a0] sm:$0xff] %v3323
  %3452 = vst [vmem:[%s7 + $0x1a8] sm:$0xff] %v3324
  %3453 = vst [vmem:[%s7 + $0x1b0] sm:$0xff] %v3325
  %3454 = vst [vmem:[%s7 + $0x1b8] sm:$0xff] %v3326
  %3455 = vst [vmem:[%s7 + $0x1c0] sm:$0xff] %v3327
  %3456 = vst [vmem:[%s7 + $0x1c8] sm:$0xff] %v3328
  %3457 = vst [vmem:[%s7 + $0x1d0] sm:$0xff] %v3329
  %3458 = vst [vmem:[%s7 + $0x1d8] sm:$0xff] %v3330
  %3459 = vst [vmem:[%s7 + $0x1e0] sm:$0xff] %v3331
  %3460 = vst [vmem:[%s7 + $0x1e8] sm:$0xff] %v3332
  %3461 = vst [vmem:[%s7 + $0x1f0] sm:$0xff] %v3333
  %3462 = vst [vmem:[%s7 + $0x1f8] sm:$0xff] %v3334
  %3463 = vst [vmem:[%s7 + $0x200] sm:$0xff] %v3335
  %3464 = vst [vmem:[%s7 + $0x208] sm:$0xff] %v3336
  %3465 = vst [vmem:[%s7 + $0x210] sm:$0xff] %v3337
  %3466 = vst [vmem:[%s7 + $0x218] sm:$0xff] %v3338
  %3467 = vst [vmem:[%s7 + $0x220] sm:$0xff] %v3339
  %3468 = vst [vmem:[%s7 + $0x228] sm:$0xff] %v3340
  %3469 = vst [vmem:[%s7 + $0x230] sm:$0xff] %v3341
  %3470 = vst [vmem:[%s7 + $0x238] sm:$0xff] %v3342
  %3471 = vst [vmem:[%s7 + $0x240] sm:$0xff] %v3343
  %3472 = vst [vmem:[%s7 + $0x248] sm:$0xff] %v3344
  %3473 = vst [vmem:[%s7 + $0x250] sm:$0xff] %v3345
  %3474 = vst [vmem:[%s7 + $0x258] sm:$0xff] %v3346
  %3475 = vst [vmem:[%s7 + $0x260] sm:$0xff] %v3347
  %3476 = vst [vmem:[%s7 + $0x268] sm:$0xff] %v3348
  %3477 = vst [vmem:[%s7 + $0x270] sm:$0xff] %v3349
  %3478 = vst [vmem:[%s7 + $0x278] sm:$0xff] %v3350
  %3479 = vst [vmem:[%s7 + $0x280] sm:$0xff] %v3351
  %3480 = vst [vmem:[%s7 + $0x288] sm:$0xff] %v3352
  %3481 = vst [vmem:[%s7 + $0x290] sm:$0xff] %v3353
  %3482 = vst [vmem:[%s7 + $0x298] sm:$0xff] %v3354
  %3483 = vst [vmem:[%s7 + $0x2a0] sm:$0xff] %v3355
  %3484 = vst [vmem:[%s7 + $0x2a8] sm:$0xff] %v3356
  %3485 = vst [vmem:[%s7 + $0x2b0] sm:$0xff] %v3357
  %3486 = vst [vmem:[%s7 + $0x2b8] sm:$0xff] %v3358
  %3487 = vst [vmem:[%s7 + $0x2c0] sm:$0xff] %v3359
  %3488 = vst [vmem:[%s7 + $0x2c8] sm:$0xff] %v3360
  %3489 = vst [vmem:[%s7 + $0x2d0] sm:$0xff] %v3361
  %3490 = vst [vmem:[%s7 + $0x2d8] sm:$0xff] %v3362
  %3491 = vst [vmem:[%s7 + $0x2e0] sm:$0xff] %v3363
  %3492 = vst [vmem:[%s7 + $0x2e8] sm:$0xff] %v3364
  %3493 = vst [vmem:[%s7 + $0x2f0] sm:$0xff] %v3365
  %3494 = vst [vmem:[%s7 + $0x2f8] sm:$0xff] %v3366
  %3495 = vst [vmem:[%s7 + $0x300] sm:$0xff] %v3367
  %3496 = vst [vmem:[%s7 + $0x308] sm:$0xff] %v3368
  %3497 = vst [vmem:[%s7 + $0x310] sm:$0xff] %v3369
  %3498 = vst [vmem:[%s7 + $0x318] sm:$0xff] %v3370
  %3499 = vst [vmem:[%s7 + $0x320] sm:$0xff] %v3371
  %3500 = vst [vmem:[%s7 + $0x328] sm:$0xff] %v3372
  %3501 = vst [vmem:[%s7 + $0x330] sm:$0xff] %v3373
  %3502 = vst [vmem:[%s7 + $0x338] sm:$0xff] %v3374
  %3503 = vst [vmem:[%s7 + $0x340] sm:$0xff] %v3375
  %3504 = vst [vmem:[%s7 + $0x348] sm:$0xff] %v3376
  %3505 = vst [vmem:[%s7 + $0x350] sm:$0xff] %v3377
  %3506 = vst [vmem:[%s7 + $0x358] sm:$0xff] %v3378
  %3507 = vst [vmem:[%s7 + $0x360] sm:$0xff] %v3379
  %3508 = vst [vmem:[%s7 + $0x368] sm:$0xff] %v3380
  %3509 = vst [vmem:[%s7 + $0x370] sm:$0xff] %v3381
  %3510 = vst [vmem:[%s7 + $0x378] sm:$0xff] %v3382
  %3511 = vst [vmem:[%s7 + $0x380] sm:$0xff] %v3383
  %3512 = vst [vmem:[%s7 + $0x388] sm:$0xff] %v3384
  %3513 = vst [vmem:[%s7 + $0x390] sm:$0xff] %v3385
  %3514 = vst [vmem:[%s7 + $0x398] sm:$0xff] %v3386
  %3515 = vst [vmem:[%s7 + $0x3a0] sm:$0xff] %v3387
  %3516 = vst [vmem:[%s7 + $0x3a8] sm:$0xff] %v3388
  %3517 = vst [vmem:[%s7 + $0x3b0] sm:$0xff] %v3389
  %3518 = vst [vmem:[%s7 + $0x3b8] sm:$0xff] %v3390
  %3519 = vst [vmem:[%s7 + $0x3c0] sm:$0xff] %v3391
  %3520 = vst [vmem:[%s7 + $0x3c8] sm:$0xff] %v3392
  %3521 = vst [vmem:[%s7 + $0x3d0] sm:$0xff] %v3393
  %3522 = vst [vmem:[%s7 + $0x3d8] sm:$0xff] %v3394
  %3523 = vst [vmem:[%s7 + $0x3e0] sm:$0xff] %v3395
  %3524 = vst [vmem:[%s7 + $0x3e8] sm:$0xff] %v3396
  %3525 = vst [vmem:[%s7 + $0x3f0] sm:$0xff] %v3397
  %3526 = vst [vmem:[%s7 + $0x3f8] sm:$0xff] %v3398
  // Predicated region
  $region30: #{ablated_pair_energies.3} parent=0 // pred_check
    _
  $region31: #{ablated_pair_energies.3} parent=0 // pred_check_branch
    %3528 = sbr.rel (0) target = $region33
  $region32: #{ablated_pair_energies.3} parent=0 // pred_region
    _
  $region33: #{ablated_pair_energies.3} parent=0 // pred_fallthru
    _
  // Predicated region
  $region34: #{ablated_pair_energies.3} parent=0 // pred_check
    _
  $region35: #{ablated_pair_energies.3} parent=0 // pred_check_branch
    %3530 = sbr.rel (0) target = $region37
  $region36: #{ablated_pair_energies.3} parent=0 // pred_region
    _
  $region37: #{ablated_pair_energies.3} parent=0 // pred_fallthru
    _

</llo_original>
